<compile_context>
chip_gen: v6e
topology: v6e:2x2x1
jax: 0.10.0
libtpu: 0.0.40
codegen_flags: <defaults>
</compile_context>

<pallas_src>
import jax
import jax.numpy as jnp
from jax import lax
from jax.experimental import pallas as pl
from jax.experimental.pallas import tpu as pltpu

# Small, forward-consistent hyperparameters
NUM_TAGS   = 8    # K
INPUT_SIZE = 16   # I
HIDDEN     = 32   # H  (4H = 128 -> gates exactly fill one vreg row)
BATCH      = 2    # B  (batch_size)
MAX_OUT    = 8    # T  (max_output == emissions sequence length)
BP         = 8    # sublane-padded batch (rows B..BP-1 are zero padding)


# ---------------------------------------------------------------------------
# Fused kernel body: LSTM recurrence + emission head + CRF Viterbi decode
# ---------------------------------------------------------------------------
def _hlstm_crf_body(x_ref, wih_ref, whh_ref, wout_ref, smallp_ref, trans_ref,
                    path_ref, emis_out_ref, gx_sc, h_all_sc):
    # x_ref:      (T*BP, I)  time-major, sublane-padded rows
    #             (row t*BP + b == timestep t, batch b; b >= B rows are zeros)
    # wih_ref:    (I, 4H)    whh_ref: (H, 4H)    wout_ref: (H, K)
    # smallp_ref: (8, 4H)    row 0 = b, row1[:K]=bout, row2[:K]=start, row3[:K]=end
    # trans_ref:  (K, K)     trans[j, k] : tag j -> tag k
    # path_ref:   (BP, T) int32 output
    # emis_out_ref: (T*BP, K) f32 output (debug kernel only) or None
    # gx_sc:      (T*BP, 4H) f32 scratch (pre-computed input gates)
    # h_all_sc:   (T*BP, H)  f32 scratch (all hidden states)
    BPl, T = path_ref.shape
    H = whh_ref.shape[0]
    K = trans_ref.shape[0]

    # ---- tiny params, loaded exactly once ----------------------------------
    b_row = smallp_ref[0:1, :]                      # (1, 4H)
    bout  = smallp_ref[1:2, 0:K]                    # (1, K)
    start = smallp_ref[2:3, 0:K]                    # (1, K)
    end   = smallp_ref[3:4, 0:K]                    # (1, K)

    # ---- hoisted input projection: one (T*BP, I) @ (I, 4H) MXU pass --------
    gx_sc[...] = (jnp.dot(x_ref[...], wih_ref[...],
                          preferred_element_type=jnp.float32) + b_row)

    # ---- LSTM recurrence (h, c live in vregs; only h @ W_hh inside loop) ---
    def lstm_step(t, carry):
        h, c = carry
        row = pl.multiple_of(t * BPl, BPl)          # BPl == 8: tile-aligned
        gates = (gx_sc[pl.ds(row, BPl), :]
                 + jnp.dot(h, whh_ref[...],
                           preferred_element_type=jnp.float32))           # (BP, 4H)
        # PyTorch LSTM gate order: input, forget, cell(g), output.
        # One full-width sigmoid push; slice i/f/o afterwards (review #3).
        sig = jax.nn.sigmoid(gates)                                        # (BP, 4H)
        i_g = sig[:, 0 * H:1 * H]
        f_g = sig[:, 1 * H:2 * H]
        o_g = sig[:, 3 * H:4 * H]
        g_g = jnp.tanh(gates[:, 2 * H:3 * H])
        c_new = f_g * c + i_g * g_g
        h_new = o_g * jnp.tanh(c_new)
        h_all_sc[pl.ds(row, BPl), :] = h_new                               # aligned store
        return (h_new, c_new)

    zeros_bh = jnp.zeros((BPl, H), jnp.float32)
    lax.fori_loop(0, T, lstm_step, (zeros_bh, zeros_bh), unroll=True)

    # ---- hoisted emission head: one (T*BP, H) @ (H, K) matmul, kept in vregs
    emis_all = (jnp.dot(h_all_sc[...], wout_ref[...],
                        preferred_element_type=jnp.float32) + bout)        # (T*BP, K)
    if emis_out_ref is not None:                    # debug variant only
        emis_out_ref[...] = emis_all

    # ---- CRF Viterbi forward pass (torchcrf semantics, full mask) ----------
    # Hoisted loads/broadcasts (review #2); Python-unrolled over tiny static T
    # so every index is concrete and backpointers stay in vregs (review #4).
    trans_b = trans_ref[...][None, :, :]            # (1, K, K)
    jidx = lax.broadcasted_iota(jnp.int32, (BPl, K, K), 1)   # prev-tag index
    kidx = lax.broadcasted_iota(jnp.int32, (BPl, K), 1)      # tag index

    score = start + emis_all[0:BPl, :]                                     # (BP, K)
    hist = []                                        # backpointers, in vregs
    for t in range(1, T):
        e_t = emis_all[t * BPl:(t + 1) * BPl, :]                           # (BP, K)
        # ns[b, j, k] = score[b, j] + trans[j, k]
        ns = score[:, :, None] + trans_b                                   # (BP, K, K)
        best_prev = jnp.max(ns, axis=1)                                    # (BP, K)
        # argmax over prev tag j with first-index tie-break (exact float max,
        # so a match always exists); kept as iota+min for lowering safety.
        arg_prev = jnp.min(jnp.where(ns == best_prev[:, None, :], jidx, K),
                           axis=1).astype(jnp.int32)                       # (BP, K)
        hist.append(arg_prev)
        score = best_prev + e_t

    # ---- final tag + backtrace (path accumulated in vregs, one store) ------
    final = score + end                                                    # (BP, K)
    maxv = jnp.max(final, axis=1, keepdims=True)
    best = jnp.min(jnp.where(final == maxv, kidx, K),
                   axis=1, keepdims=True).astype(jnp.int32)                # (BP, 1)

    col = lax.broadcasted_iota(jnp.int32, (BPl, T), 1)
    path = jnp.where(col == (T - 1), best, 0)                              # (BP, T)
    for t in range(T - 2, -1, -1):
        hist_t = hist[t]                       # backpointers for step t -> t+1
        prev = jnp.sum(jnp.where(kidx == best, hist_t, 0),
                       axis=1, keepdims=True)                              # (BP, 1)
        path = jnp.where(col == t, prev, path)
        best = prev
    path_ref[...] = path.astype(jnp.int32)


def _hlstm_crf_kernel(x_ref, wih_ref, whh_ref, wout_ref, smallp_ref, trans_ref,
                      path_ref, gx_sc, h_all_sc):
    _hlstm_crf_body(x_ref, wih_ref, whh_ref, wout_ref, smallp_ref, trans_ref,
                    path_ref, None, gx_sc, h_all_sc)


def _hlstm_crf_kernel_debug(x_ref, wih_ref, whh_ref, wout_ref, smallp_ref,
                            trans_ref, path_ref, emis_ref, gx_sc, h_all_sc):
    _hlstm_crf_body(x_ref, wih_ref, whh_ref, wout_ref, smallp_ref, trans_ref,
                    path_ref, emis_ref, gx_sc, h_all_sc)


# ---------------------------------------------------------------------------
# Wrapper
# ---------------------------------------------------------------------------
def hlstm_crf_forward(x, params, *, return_emissions=False):
    """x: (B, T, I) float32 -> best tag path (B, T) int32 (and optionally the
    (B, T, K) emissions used for verification, debug variant only)."""
    B, T, I = x.shape
    H = params['whh_T'].shape[0]
    K = params['wout_T'].shape[1]
    assert B <= BP, "toy kernel assumes batch <= 8 (one sublane tile)"
    assert 4 * H >= K

    # Time-major, sublane-padded input: row t*BP + b == (timestep t, batch b).
    x_tm = jnp.transpose(x, (1, 0, 2))                                   # (T, B, I)
    x_pad = (jnp.zeros((T, BP, I), x.dtype).at[:, :B, :].set(x_tm)
             .reshape(T * BP, I))

    # Pack the four tiny (1, .) parameter rows into one padded slab (review #7).
    smallp = jnp.zeros((8, 4 * H), jnp.float32)
    smallp = smallp.at[0, :4 * H].set(params['b'][0])
    smallp = smallp.at[1, :K].set(params['bout'][0])
    smallp = smallp.at[2, :K].set(params['start'][0])
    smallp = smallp.at[3, :K].set(params['end'][0])

    args = (x_pad, params['wih_T'], params['whh_T'], params['wout_T'],
            smallp, params['trans'])
    common = dict(
        in_specs=[pl.BlockSpec(memory_space=pltpu.MemorySpace.VMEM)] * 6,
        scratch_shapes=[pltpu.VMEM((T * BP, 4 * H), jnp.float32),
                        pltpu.VMEM((T * BP, H), jnp.float32)],
    )

    if return_emissions:
        path_p, emis2d = pl.pallas_call(
            _hlstm_crf_kernel_debug,
            out_shape=(jax.ShapeDtypeStruct((BP, T), jnp.int32),
                       jax.ShapeDtypeStruct((T * BP, K), jnp.float32)),
            out_specs=(pl.BlockSpec(memory_space=pltpu.MemorySpace.VMEM),
                       pl.BlockSpec(memory_space=pltpu.MemorySpace.VMEM)),
            **common,
        )(*args)
        emis_btk = jnp.transpose(emis2d.reshape(T, BP, K)[:, :B, :], (1, 0, 2))
        return path_p[:B, :], emis_btk

    path_p = pl.pallas_call(
        _hlstm_crf_kernel,
        out_shape=jax.ShapeDtypeStruct((BP, T), jnp.int32),
        out_specs=pl.BlockSpec(memory_space=pltpu.MemorySpace.VMEM),
        **common,
    )(*args)
    return path_p[:B, :]


# ---------------------------------------------------------------------------
# Pure-JAX references (sanity checks only)
# ---------------------------------------------------------------------------
def _ref_emissions(x, p):
    B, T, _ = x.shape
    H = p['whh_T'].shape[0]
    h = jnp.zeros((B, H), jnp.float32)
    c = jnp.zeros((B, H), jnp.float32)
    hi = jax.lax.Precision.HIGHEST
    outs = []
    for t in range(T):
        gates = (jnp.dot(x[:, t], p['wih_T'], precision=hi)
                 + jnp.dot(h, p['whh_T'], precision=hi) + p['b'])
        i_g = jax.nn.sigmoid(gates[:, :H])
        f_g = jax.nn.sigmoid(gates[:, H:2 * H])
        g_g = jnp.tanh(gates[:, 2 * H:3 * H])
        o_g = jax.nn.sigmoid(gates[:, 3 * H:])
        c = f_g * c + i_g * g_g
        h = o_g * jnp.tanh(c)
        outs.append(jnp.dot(h, p['wout_T'], precision=hi) + p['bout'])
    return jnp.stack(outs, axis=1)                                        # (B, T, K)


def _ref_viterbi(emis_btk, start, end, trans):
    B, T, _ = emis_btk.shape
    score = start[0] + emis_btk[:, 0]
    hist = []
    for t in range(1, T):
        ns = score[:, :, None] + trans[None, :, :]
        hist.append(jnp.argmax(ns, axis=1))
        score = jnp.max(ns, axis=1) + emis_btk[:, t]
    score = score + end[0]
    best = jnp.argmax(score, axis=-1)
    path = [best]
    for h in reversed(hist):
        best = h[jnp.arange(B), best]
        path.append(best)
    path.reverse()
    return jnp.stack(path, axis=1).astype(jnp.int32)


if __name__ == "__main__":
    key = jax.random.PRNGKey(0)
    ks = jax.random.split(key, 9)
    x = jax.random.normal(ks[0], (BATCH, MAX_OUT, INPUT_SIZE), jnp.float32)
    params = {
        'wih_T':  0.1 * jax.random.normal(ks[1], (INPUT_SIZE, 4 * HIDDEN), jnp.float32),
        'whh_T':  0.1 * jax.random.normal(ks[2], (HIDDEN, 4 * HIDDEN), jnp.float32),
        'b':      0.1 * jax.random.normal(ks[3], (1, 4 * HIDDEN), jnp.float32),
        'wout_T': 0.1 * jax.random.normal(ks[4], (HIDDEN, NUM_TAGS), jnp.float32),
        'bout':   0.1 * jax.random.normal(ks[5], (1, NUM_TAGS), jnp.float32),
        'start':  0.1 * jax.random.normal(ks[6], (1, NUM_TAGS), jnp.float32),
        'end':    0.1 * jax.random.normal(ks[7], (1, NUM_TAGS), jnp.float32),
        'trans':  0.1 * jax.random.normal(ks[8], (NUM_TAGS, NUM_TAGS), jnp.float32),
    }

    fwd = jax.jit(hlstm_crf_forward, static_argnames=('return_emissions',))

    # Hot-path kernel (path only; no emissions writeback).
    path_hot = jax.block_until_ready(fwd(x, params))

    # Debug kernel (also emits emissions) for the cross-checks.
    path_dbg, emis_btk = fwd(x, params, return_emissions=True)
    path_dbg = jax.block_until_ready(path_dbg)
    emis_btk = jax.block_until_ready(emis_btk)

    assert path_hot.shape == (BATCH, MAX_OUT), path_hot.shape
    assert path_hot.dtype == jnp.int32, path_hot.dtype
    assert bool(jnp.all((path_hot >= 0) & (path_hot < NUM_TAGS)))
    assert bool(jnp.all(path_hot == path_dbg)), (path_hot, path_dbg)

    # Viterbi cross-check on the kernel-produced emissions (exact by construction).
    ref_path = _ref_viterbi(emis_btk, params['start'], params['end'], params['trans'])
    assert bool(jnp.all(path_hot == ref_path)), (path_hot, ref_path)

    # LSTM + emission-head numerical cross-check against pure JAX.
    # (In-kernel MXU dots may use a reduced-precision path vs HIGHEST.)
    ref_emis = _ref_emissions(x, params)
    assert bool(jnp.allclose(emis_btk, ref_emis, rtol=5e-3, atol=5e-3)), (
        float(jnp.max(jnp.abs(emis_btk - ref_emis))))

    print("KERNEL_OK")
</pallas_src>

<mosaic_0001>
module attributes {stable_mosaic.version = 11 : i64} {
  func.func @_hlstm_crf_kernel(%arg0: memref<64x16xf32, #tpu.memory_space<vmem>>, %arg1: memref<16x128xf32, #tpu.memory_space<vmem>>, %arg2: memref<32x128xf32, #tpu.memory_space<vmem>>, %arg3: memref<32x8xf32, #tpu.memory_space<vmem>>, %arg4: memref<8x128xf32, #tpu.memory_space<vmem>>, %arg5: memref<8x8xf32, #tpu.memory_space<vmem>>, %arg6: memref<8x8xi32, #tpu.memory_space<vmem>>, %arg7: memref<64x128xf32, #tpu.memory_space<vmem>>, %arg8: memref<64x32xf32, #tpu.memory_space<vmem>>) attributes {dimension_semantics = [], scalar_prefetch = 0 : i64, scratch_operands = 2 : i64, tpu.core_type = #tpu.core_type<tc>} {
    %c0 = arith.constant 0 : index
    %c0_0 = arith.constant 0 : index
    %0 = vector.load %arg4[%c0, %c0_0] : memref<8x128xf32, #tpu.memory_space<vmem>>, vector<1x128xf32>
    %c1 = arith.constant 1 : index
    %c0_1 = arith.constant 0 : index
    %1 = vector.load %arg4[%c1, %c0_1] : memref<8x128xf32, #tpu.memory_space<vmem>>, vector<1x8xf32>
    %c2 = arith.constant 2 : index
    %c0_2 = arith.constant 0 : index
    %2 = vector.load %arg4[%c2, %c0_2] : memref<8x128xf32, #tpu.memory_space<vmem>>, vector<1x8xf32>
    %c3 = arith.constant 3 : index
    %c0_3 = arith.constant 0 : index
    %3 = vector.load %arg4[%c3, %c0_3] : memref<8x128xf32, #tpu.memory_space<vmem>>, vector<1x8xf32>
    %c0_4 = arith.constant 0 : index
    %c0_5 = arith.constant 0 : index
    %4 = vector.load %arg0[%c0_4, %c0_5] : memref<64x16xf32, #tpu.memory_space<vmem>>, vector<64x16xf32>
    %c0_6 = arith.constant 0 : index
    %c0_7 = arith.constant 0 : index
    %5 = vector.load %arg1[%c0_6, %c0_7] : memref<16x128xf32, #tpu.memory_space<vmem>>, vector<16x128xf32>
    %cst = arith.constant dense<0.000000e+00> : vector<64x128xf32>
    %6 = tpu.matmul %4, %5, %cst {dimension_numbers = #tpu.dot_dimension_numbers<[1], [0], [0], [1], [0, 0, 1, 1], [], []>} : vector<64x16xf32>, vector<16x128xf32>, vector<64x128xf32> -> vector<64x128xf32>
    %7 = vector.broadcast %0 : vector<1x128xf32> to vector<64x128xf32>
    %8 = arith.addf %6, %7 : vector<64x128xf32>
    %c0_8 = arith.constant 0 : index
    %c0_9 = arith.constant 0 : index
    %9 = vector.load %arg7[%c0_8, %c0_9] : memref<64x128xf32, #tpu.memory_space<vmem>>, vector<64x128xf32>
    tpu.vector_store %arg7[%c0_8, %c0_9], %8 {strides = array<i32>} : memref<64x128xf32, #tpu.memory_space<vmem>>, vector<64x128xf32>,
    %cst_10 = arith.constant 0.000000e+00 : f32
    %10 = vector.broadcast %cst_10 : f32 to vector<8x32xf32>
    %c0_i32 = arith.constant 0 : i32
    %c8_i32 = arith.constant 8 : i32
    %11 = arith.muli %c0_i32, %c8_i32 : i32
    %12 = tpu.assume_multiple %11, 8 : i32
    %13 = arith.index_cast %12 : i32 to index
    %c0_11 = arith.constant 0 : index
    %14 = vector.load %arg7[%13, %c0_11] : memref<64x128xf32, #tpu.memory_space<vmem>>, vector<8x128xf32>
    %c0_12 = arith.constant 0 : index
    %c0_13 = arith.constant 0 : index
    %15 = vector.load %arg2[%c0_12, %c0_13] : memref<32x128xf32, #tpu.memory_space<vmem>>, vector<32x128xf32>
    %cst_14 = arith.constant dense<0.000000e+00> : vector<8x128xf32>
    %16 = tpu.matmul %10, %15, %cst_14 {dimension_numbers = #tpu.dot_dimension_numbers<[1], [0], [0], [1], [0, 0, 1, 1], [], []>} : vector<8x32xf32>, vector<32x128xf32>, vector<8x128xf32> -> vector<8x128xf32>
    %17 = arith.addf %14, %16 : vector<8x128xf32>
    %18 = arith.negf %17 : vector<8x128xf32>
    %19 = math.exp %18 : vector<8x128xf32>
    %cst_15 = arith.constant 1.000000e+00 : f32
    %20 = vector.broadcast %cst_15 : f32 to vector<8x128xf32>
    %21 = arith.addf %20, %19 : vector<8x128xf32>
    %22 = arith.divf %20, %21 : vector<8x128xf32>
    %23 = vector.extract_strided_slice %22 {offsets = [0, 0], sizes = [8, 32], strides = [1, 1]} : vector<8x128xf32> to vector<8x32xf32>
    %24 = vector.extract_strided_slice %22 {offsets = [0, 32], sizes = [8, 32], strides = [1, 1]} : vector<8x128xf32> to vector<8x32xf32>
    %25 = vector.extract_strided_slice %22 {offsets = [0, 96], sizes = [8, 32], strides = [1, 1]} : vector<8x128xf32> to vector<8x32xf32>
    %26 = vector.extract_strided_slice %17 {offsets = [0, 64], sizes = [8, 32], strides = [1, 1]} : vector<8x128xf32> to vector<8x32xf32>
    %27 = math.tanh %26 : vector<8x32xf32>
    %28 = arith.mulf %24, %10 : vector<8x32xf32>
    %29 = arith.mulf %23, %27 : vector<8x32xf32>
    %30 = arith.addf %28, %29 : vector<8x32xf32>
    %31 = math.tanh %30 : vector<8x32xf32>
    %32 = arith.mulf %25, %31 : vector<8x32xf32>
    %33 = arith.index_cast %12 : i32 to index
    %c0_16 = arith.constant 0 : index
    %34 = vector.load %arg8[%33, %c0_16] : memref<64x32xf32, #tpu.memory_space<vmem>>, vector<8x32xf32>
    tpu.vector_store %arg8[%33, %c0_16], %32 {strides = array<i32>} : memref<64x32xf32, #tpu.memory_space<vmem>>, vector<8x32xf32>,
    %c1_i32 = arith.constant 1 : i32
    %c8_i32_17 = arith.constant 8 : i32
    %35 = arith.muli %c1_i32, %c8_i32_17 : i32
    %36 = tpu.assume_multiple %35, 8 : i32
    %37 = arith.index_cast %36 : i32 to index
    %c0_18 = arith.constant 0 : index
    %38 = vector.load %arg7[%37, %c0_18] : memref<64x128xf32, #tpu.memory_space<vmem>>, vector<8x128xf32>
    %c0_19 = arith.constant 0 : index
    %c0_20 = arith.constant 0 : index
    %39 = vector.load %arg2[%c0_19, %c0_20] : memref<32x128xf32, #tpu.memory_space<vmem>>, vector<32x128xf32>
    %cst_21 = arith.constant dense<0.000000e+00> : vector<8x128xf32>
    %40 = tpu.matmul %32, %39, %cst_21 {dimension_numbers = #tpu.dot_dimension_numbers<[1], [0], [0], [1], [0, 0, 1, 1], [], []>} : vector<8x32xf32>, vector<32x128xf32>, vector<8x128xf32> -> vector<8x128xf32>
    %41 = arith.addf %38, %40 : vector<8x128xf32>
    %42 = arith.negf %41 : vector<8x128xf32>
    %43 = math.exp %42 : vector<8x128xf32>
    %cst_22 = arith.constant 1.000000e+00 : f32
    %44 = vector.broadcast %cst_22 : f32 to vector<8x128xf32>
    %45 = arith.addf %44, %43 : vector<8x128xf32>
    %46 = arith.divf %44, %45 : vector<8x128xf32>
    %47 = vector.extract_strided_slice %46 {offsets = [0, 0], sizes = [8, 32], strides = [1, 1]} : vector<8x128xf32> to vector<8x32xf32>
    %48 = vector.extract_strided_slice %46 {offsets = [0, 32], sizes = [8, 32], strides = [1, 1]} : vector<8x128xf32> to vector<8x32xf32>
    %49 = vector.extract_strided_slice %46 {offsets = [0, 96], sizes = [8, 32], strides = [1, 1]} : vector<8x128xf32> to vector<8x32xf32>
    %50 = vector.extract_strided_slice %41 {offsets = [0, 64], sizes = [8, 32], strides = [1, 1]} : vector<8x128xf32> to vector<8x32xf32>
    %51 = math.tanh %50 : vector<8x32xf32>
    %52 = arith.mulf %48, %30 : vector<8x32xf32>
    %53 = arith.mulf %47, %51 : vector<8x32xf32>
    %54 = arith.addf %52, %53 : vector<8x32xf32>
    %55 = math.tanh %54 : vector<8x32xf32>
    %56 = arith.mulf %49, %55 : vector<8x32xf32>
    %57 = arith.index_cast %36 : i32 to index
    %c0_23 = arith.constant 0 : index
    %58 = vector.load %arg8[%57, %c0_23] : memref<64x32xf32, #tpu.memory_space<vmem>>, vector<8x32xf32>
    tpu.vector_store %arg8[%57, %c0_23], %56 {strides = array<i32>} : memref<64x32xf32, #tpu.memory_space<vmem>>, vector<8x32xf32>,
    %c2_i32 = arith.constant 2 : i32
    %c8_i32_24 = arith.constant 8 : i32
    %59 = arith.muli %c2_i32, %c8_i32_24 : i32
    %60 = tpu.assume_multiple %59, 8 : i32
    %61 = arith.index_cast %60 : i32 to index
    %c0_25 = arith.constant 0 : index
    %62 = vector.load %arg7[%61, %c0_25] : memref<64x128xf32, #tpu.memory_space<vmem>>, vector<8x128xf32>
    %c0_26 = arith.constant 0 : index
    %c0_27 = arith.constant 0 : index
    %63 = vector.load %arg2[%c0_26, %c0_27] : memref<32x128xf32, #tpu.memory_space<vmem>>, vector<32x128xf32>
    %cst_28 = arith.constant dense<0.000000e+00> : vector<8x128xf32>
    %64 = tpu.matmul %56, %63, %cst_28 {dimension_numbers = #tpu.dot_dimension_numbers<[1], [0], [0], [1], [0, 0, 1, 1], [], []>} : vector<8x32xf32>, vector<32x128xf32>, vector<8x128xf32> -> vector<8x128xf32>
    %65 = arith.addf %62, %64 : vector<8x128xf32>
    %66 = arith.negf %65 : vector<8x128xf32>
    %67 = math.exp %66 : vector<8x128xf32>
    %cst_29 = arith.constant 1.000000e+00 : f32
    %68 = vector.broadcast %cst_29 : f32 to vector<8x128xf32>
    %69 = arith.addf %68, %67 : vector<8x128xf32>
    %70 = arith.divf %68, %69 : vector<8x128xf32>
    %71 = vector.extract_strided_slice %70 {offsets = [0, 0], sizes = [8, 32], strides = [1, 1]} : vector<8x128xf32> to vector<8x32xf32>
    %72 = vector.extract_strided_slice %70 {offsets = [0, 32], sizes = [8, 32], strides = [1, 1]} : vector<8x128xf32> to vector<8x32xf32>
    %73 = vector.extract_strided_slice %70 {offsets = [0, 96], sizes = [8, 32], strides = [1, 1]} : vector<8x128xf32> to vector<8x32xf32>
    %74 = vector.extract_strided_slice %65 {offsets = [0, 64], sizes = [8, 32], strides = [1, 1]} : vector<8x128xf32> to vector<8x32xf32>
    %75 = math.tanh %74 : vector<8x32xf32>
    %76 = arith.mulf %72, %54 : vector<8x32xf32>
    %77 = arith.mulf %71, %75 : vector<8x32xf32>
    %78 = arith.addf %76, %77 : vector<8x32xf32>
    %79 = math.tanh %78 : vector<8x32xf32>
    %80 = arith.mulf %73, %79 : vector<8x32xf32>
    %81 = arith.index_cast %60 : i32 to index
    %c0_30 = arith.constant 0 : index
    %82 = vector.load %arg8[%81, %c0_30] : memref<64x32xf32, #tpu.memory_space<vmem>>, vector<8x32xf32>
    tpu.vector_store %arg8[%81, %c0_30], %80 {strides = array<i32>} : memref<64x32xf32, #tpu.memory_space<vmem>>, vector<8x32xf32>,
    %c3_i32 = arith.constant 3 : i32
    %c8_i32_31 = arith.constant 8 : i32
    %83 = arith.muli %c3_i32, %c8_i32_31 : i32
    %84 = tpu.assume_multiple %83, 8 : i32
    %85 = arith.index_cast %84 : i32 to index
    %c0_32 = arith.constant 0 : index
    %86 = vector.load %arg7[%85, %c0_32] : memref<64x128xf32, #tpu.memory_space<vmem>>, vector<8x128xf32>
    %c0_33 = arith.constant 0 : index
    %c0_34 = arith.constant 0 : index
    %87 = vector.load %arg2[%c0_33, %c0_34] : memref<32x128xf32, #tpu.memory_space<vmem>>, vector<32x128xf32>
    %cst_35 = arith.constant dense<0.000000e+00> : vector<8x128xf32>
    %88 = tpu.matmul %80, %87, %cst_35 {dimension_numbers = #tpu.dot_dimension_numbers<[1], [0], [0], [1], [0, 0, 1, 1], [], []>} : vector<8x32xf32>, vector<32x128xf32>, vector<8x128xf32> -> vector<8x128xf32>
    %89 = arith.addf %86, %88 : vector<8x128xf32>
    %90 = arith.negf %89 : vector<8x128xf32>
    %91 = math.exp %90 : vector<8x128xf32>
    %cst_36 = arith.constant 1.000000e+00 : f32
    %92 = vector.broadcast %cst_36 : f32 to vector<8x128xf32>
    %93 = arith.addf %92, %91 : vector<8x128xf32>
    %94 = arith.divf %92, %93 : vector<8x128xf32>
    %95 = vector.extract_strided_slice %94 {offsets = [0, 0], sizes = [8, 32], strides = [1, 1]} : vector<8x128xf32> to vector<8x32xf32>
    %96 = vector.extract_strided_slice %94 {offsets = [0, 32], sizes = [8, 32], strides = [1, 1]} : vector<8x128xf32> to vector<8x32xf32>
    %97 = vector.extract_strided_slice %94 {offsets = [0, 96], sizes = [8, 32], strides = [1, 1]} : vector<8x128xf32> to vector<8x32xf32>
    %98 = vector.extract_strided_slice %89 {offsets = [0, 64], sizes = [8, 32], strides = [1, 1]} : vector<8x128xf32> to vector<8x32xf32>
    %99 = math.tanh %98 : vector<8x32xf32>
    %100 = arith.mulf %96, %78 : vector<8x32xf32>
    %101 = arith.mulf %95, %99 : vector<8x32xf32>
    %102 = arith.addf %100, %101 : vector<8x32xf32>
    %103 = math.tanh %102 : vector<8x32xf32>
    %104 = arith.mulf %97, %103 : vector<8x32xf32>
    %105 = arith.index_cast %84 : i32 to index
    %c0_37 = arith.constant 0 : index
    %106 = vector.load %arg8[%105, %c0_37] : memref<64x32xf32, #tpu.memory_space<vmem>>, vector<8x32xf32>
    tpu.vector_store %arg8[%105, %c0_37], %104 {strides = array<i32>} : memref<64x32xf32, #tpu.memory_space<vmem>>, vector<8x32xf32>,
    %c4_i32 = arith.constant 4 : i32
    %c8_i32_38 = arith.constant 8 : i32
    %107 = arith.muli %c4_i32, %c8_i32_38 : i32
    %108 = tpu.assume_multiple %107, 8 : i32
    %109 = arith.index_cast %108 : i32 to index
    %c0_39 = arith.constant 0 : index
    %110 = vector.load %arg7[%109, %c0_39] : memref<64x128xf32, #tpu.memory_space<vmem>>, vector<8x128xf32>
    %c0_40 = arith.constant 0 : index
    %c0_41 = arith.constant 0 : index
    %111 = vector.load %arg2[%c0_40, %c0_41] : memref<32x128xf32, #tpu.memory_space<vmem>>, vector<32x128xf32>
    %cst_42 = arith.constant dense<0.000000e+00> : vector<8x128xf32>
    %112 = tpu.matmul %104, %111, %cst_42 {dimension_numbers = #tpu.dot_dimension_numbers<[1], [0], [0], [1], [0, 0, 1, 1], [], []>} : vector<8x32xf32>, vector<32x128xf32>, vector<8x128xf32> -> vector<8x128xf32>
    %113 = arith.addf %110, %112 : vector<8x128xf32>
    %114 = arith.negf %113 : vector<8x128xf32>
    %115 = math.exp %114 : vector<8x128xf32>
    %cst_43 = arith.constant 1.000000e+00 : f32
    %116 = vector.broadcast %cst_43 : f32 to vector<8x128xf32>
    %117 = arith.addf %116, %115 : vector<8x128xf32>
    %118 = arith.divf %116, %117 : vector<8x128xf32>
    %119 = vector.extract_strided_slice %118 {offsets = [0, 0], sizes = [8, 32], strides = [1, 1]} : vector<8x128xf32> to vector<8x32xf32>
    %120 = vector.extract_strided_slice %118 {offsets = [0, 32], sizes = [8, 32], strides = [1, 1]} : vector<8x128xf32> to vector<8x32xf32>
    %121 = vector.extract_strided_slice %118 {offsets = [0, 96], sizes = [8, 32], strides = [1, 1]} : vector<8x128xf32> to vector<8x32xf32>
    %122 = vector.extract_strided_slice %113 {offsets = [0, 64], sizes = [8, 32], strides = [1, 1]} : vector<8x128xf32> to vector<8x32xf32>
    %123 = math.tanh %122 : vector<8x32xf32>
    %124 = arith.mulf %120, %102 : vector<8x32xf32>
    %125 = arith.mulf %119, %123 : vector<8x32xf32>
    %126 = arith.addf %124, %125 : vector<8x32xf32>
    %127 = math.tanh %126 : vector<8x32xf32>
    %128 = arith.mulf %121, %127 : vector<8x32xf32>
    %129 = arith.index_cast %108 : i32 to index
    %c0_44 = arith.constant 0 : index
    %130 = vector.load %arg8[%129, %c0_44] : memref<64x32xf32, #tpu.memory_space<vmem>>, vector<8x32xf32>
    tpu.vector_store %arg8[%129, %c0_44], %128 {strides = array<i32>} : memref<64x32xf32, #tpu.memory_space<vmem>>, vector<8x32xf32>,
    %c5_i32 = arith.constant 5 : i32
    %c8_i32_45 = arith.constant 8 : i32
    %131 = arith.muli %c5_i32, %c8_i32_45 : i32
    %132 = tpu.assume_multiple %131, 8 : i32
    %133 = arith.index_cast %132 : i32 to index
    %c0_46 = arith.constant 0 : index
    %134 = vector.load %arg7[%133, %c0_46] : memref<64x128xf32, #tpu.memory_space<vmem>>, vector<8x128xf32>
    %c0_47 = arith.constant 0 : index
    %c0_48 = arith.constant 0 : index
    %135 = vector.load %arg2[%c0_47, %c0_48] : memref<32x128xf32, #tpu.memory_space<vmem>>, vector<32x128xf32>
    %cst_49 = arith.constant dense<0.000000e+00> : vector<8x128xf32>
    %136 = tpu.matmul %128, %135, %cst_49 {dimension_numbers = #tpu.dot_dimension_numbers<[1], [0], [0], [1], [0, 0, 1, 1], [], []>} : vector<8x32xf32>, vector<32x128xf32>, vector<8x128xf32> -> vector<8x128xf32>
    %137 = arith.addf %134, %136 : vector<8x128xf32>
    %138 = arith.negf %137 : vector<8x128xf32>
    %139 = math.exp %138 : vector<8x128xf32>
    %cst_50 = arith.constant 1.000000e+00 : f32
    %140 = vector.broadcast %cst_50 : f32 to vector<8x128xf32>
    %141 = arith.addf %140, %139 : vector<8x128xf32>
    %142 = arith.divf %140, %141 : vector<8x128xf32>
    %143 = vector.extract_strided_slice %142 {offsets = [0, 0], sizes = [8, 32], strides = [1, 1]} : vector<8x128xf32> to vector<8x32xf32>
    %144 = vector.extract_strided_slice %142 {offsets = [0, 32], sizes = [8, 32], strides = [1, 1]} : vector<8x128xf32> to vector<8x32xf32>
    %145 = vector.extract_strided_slice %142 {offsets = [0, 96], sizes = [8, 32], strides = [1, 1]} : vector<8x128xf32> to vector<8x32xf32>
    %146 = vector.extract_strided_slice %137 {offsets = [0, 64], sizes = [8, 32], strides = [1, 1]} : vector<8x128xf32> to vector<8x32xf32>
    %147 = math.tanh %146 : vector<8x32xf32>
    %148 = arith.mulf %144, %126 : vector<8x32xf32>
    %149 = arith.mulf %143, %147 : vector<8x32xf32>
    %150 = arith.addf %148, %149 : vector<8x32xf32>
    %151 = math.tanh %150 : vector<8x32xf32>
    %152 = arith.mulf %145, %151 : vector<8x32xf32>
    %153 = arith.index_cast %132 : i32 to index
    %c0_51 = arith.constant 0 : index
    %154 = vector.load %arg8[%153, %c0_51] : memref<64x32xf32, #tpu.memory_space<vmem>>, vector<8x32xf32>
    tpu.vector_store %arg8[%153, %c0_51], %152 {strides = array<i32>} : memref<64x32xf32, #tpu.memory_space<vmem>>, vector<8x32xf32>,
    %c6_i32 = arith.constant 6 : i32
    %c8_i32_52 = arith.constant 8 : i32
    %155 = arith.muli %c6_i32, %c8_i32_52 : i32
    %156 = tpu.assume_multiple %155, 8 : i32
    %157 = arith.index_cast %156 : i32 to index
    %c0_53 = arith.constant 0 : index
    %158 = vector.load %arg7[%157, %c0_53] : memref<64x128xf32, #tpu.memory_space<vmem>>, vector<8x128xf32>
    %c0_54 = arith.constant 0 : index
    %c0_55 = arith.constant 0 : index
    %159 = vector.load %arg2[%c0_54, %c0_55] : memref<32x128xf32, #tpu.memory_space<vmem>>, vector<32x128xf32>
    %cst_56 = arith.constant dense<0.000000e+00> : vector<8x128xf32>
    %160 = tpu.matmul %152, %159, %cst_56 {dimension_numbers = #tpu.dot_dimension_numbers<[1], [0], [0], [1], [0, 0, 1, 1], [], []>} : vector<8x32xf32>, vector<32x128xf32>, vector<8x128xf32> -> vector<8x128xf32>
    %161 = arith.addf %158, %160 : vector<8x128xf32>
    %162 = arith.negf %161 : vector<8x128xf32>
    %163 = math.exp %162 : vector<8x128xf32>
    %cst_57 = arith.constant 1.000000e+00 : f32
    %164 = vector.broadcast %cst_57 : f32 to vector<8x128xf32>
    %165 = arith.addf %164, %163 : vector<8x128xf32>
    %166 = arith.divf %164, %165 : vector<8x128xf32>
    %167 = vector.extract_strided_slice %166 {offsets = [0, 0], sizes = [8, 32], strides = [1, 1]} : vector<8x128xf32> to vector<8x32xf32>
    %168 = vector.extract_strided_slice %166 {offsets = [0, 32], sizes = [8, 32], strides = [1, 1]} : vector<8x128xf32> to vector<8x32xf32>
    %169 = vector.extract_strided_slice %166 {offsets = [0, 96], sizes = [8, 32], strides = [1, 1]} : vector<8x128xf32> to vector<8x32xf32>
    %170 = vector.extract_strided_slice %161 {offsets = [0, 64], sizes = [8, 32], strides = [1, 1]} : vector<8x128xf32> to vector<8x32xf32>
    %171 = math.tanh %170 : vector<8x32xf32>
    %172 = arith.mulf %168, %150 : vector<8x32xf32>
    %173 = arith.mulf %167, %171 : vector<8x32xf32>
    %174 = arith.addf %172, %173 : vector<8x32xf32>
    %175 = math.tanh %174 : vector<8x32xf32>
    %176 = arith.mulf %169, %175 : vector<8x32xf32>
    %177 = arith.index_cast %156 : i32 to index
    %c0_58 = arith.constant 0 : index
    %178 = vector.load %arg8[%177, %c0_58] : memref<64x32xf32, #tpu.memory_space<vmem>>, vector<8x32xf32>
    tpu.vector_store %arg8[%177, %c0_58], %176 {strides = array<i32>} : memref<64x32xf32, #tpu.memory_space<vmem>>, vector<8x32xf32>,
    %c7_i32 = arith.constant 7 : i32
    %c8_i32_59 = arith.constant 8 : i32
    %179 = arith.muli %c7_i32, %c8_i32_59 : i32
    %180 = tpu.assume_multiple %179, 8 : i32
    %181 = arith.index_cast %180 : i32 to index
    %c0_60 = arith.constant 0 : index
    %182 = vector.load %arg7[%181, %c0_60] : memref<64x128xf32, #tpu.memory_space<vmem>>, vector<8x128xf32>
    %c0_61 = arith.constant 0 : index
    %c0_62 = arith.constant 0 : index
    %183 = vector.load %arg2[%c0_61, %c0_62] : memref<32x128xf32, #tpu.memory_space<vmem>>, vector<32x128xf32>
    %cst_63 = arith.constant dense<0.000000e+00> : vector<8x128xf32>
    %184 = tpu.matmul %176, %183, %cst_63 {dimension_numbers = #tpu.dot_dimension_numbers<[1], [0], [0], [1], [0, 0, 1, 1], [], []>} : vector<8x32xf32>, vector<32x128xf32>, vector<8x128xf32> -> vector<8x128xf32>
    %185 = arith.addf %182, %184 : vector<8x128xf32>
    %186 = arith.negf %185 : vector<8x128xf32>
    %187 = math.exp %186 : vector<8x128xf32>
    %cst_64 = arith.constant 1.000000e+00 : f32
    %188 = vector.broadcast %cst_64 : f32 to vector<8x128xf32>
    %189 = arith.addf %188, %187 : vector<8x128xf32>
    %190 = arith.divf %188, %189 : vector<8x128xf32>
    %191 = vector.extract_strided_slice %190 {offsets = [0, 0], sizes = [8, 32], strides = [1, 1]} : vector<8x128xf32> to vector<8x32xf32>
    %192 = vector.extract_strided_slice %190 {offsets = [0, 32], sizes = [8, 32], strides = [1, 1]} : vector<8x128xf32> to vector<8x32xf32>
    %193 = vector.extract_strided_slice %190 {offsets = [0, 96], sizes = [8, 32], strides = [1, 1]} : vector<8x128xf32> to vector<8x32xf32>
    %194 = vector.extract_strided_slice %185 {offsets = [0, 64], sizes = [8, 32], strides = [1, 1]} : vector<8x128xf32> to vector<8x32xf32>
    %195 = math.tanh %194 : vector<8x32xf32>
    %196 = arith.mulf %192, %174 : vector<8x32xf32>
    %197 = arith.mulf %191, %195 : vector<8x32xf32>
    %198 = arith.addf %196, %197 : vector<8x32xf32>
    %199 = math.tanh %198 : vector<8x32xf32>
    %200 = arith.mulf %193, %199 : vector<8x32xf32>
    %201 = arith.index_cast %180 : i32 to index
    %c0_65 = arith.constant 0 : index
    %202 = vector.load %arg8[%201, %c0_65] : memref<64x32xf32, #tpu.memory_space<vmem>>, vector<8x32xf32>
    tpu.vector_store %arg8[%201, %c0_65], %200 {strides = array<i32>} : memref<64x32xf32, #tpu.memory_space<vmem>>, vector<8x32xf32>,
    %c8_i32_66 = arith.constant 8 : i32
    %c0_67 = arith.constant 0 : index
    %c0_68 = arith.constant 0 : index
    %203 = vector.load %arg8[%c0_67, %c0_68] : memref<64x32xf32, #tpu.memory_space<vmem>>, vector<64x32xf32>
    %c0_69 = arith.constant 0 : index
    %c0_70 = arith.constant 0 : index
    %204 = vector.load %arg3[%c0_69, %c0_70] : memref<32x8xf32, #tpu.memory_space<vmem>>, vector<32x8xf32>
    %cst_71 = arith.constant dense<0.000000e+00> : vector<64x8xf32>
    %205 = tpu.matmul %203, %204, %cst_71 {dimension_numbers = #tpu.dot_dimension_numbers<[1], [0], [0], [1], [0, 0, 1, 1], [], []>} : vector<64x32xf32>, vector<32x8xf32>, vector<64x8xf32> -> vector<64x8xf32>
    %206 = vector.broadcast %1 : vector<1x8xf32> to vector<64x8xf32>
    %207 = arith.addf %205, %206 : vector<64x8xf32>
    %c0_72 = arith.constant 0 : index
    %c0_73 = arith.constant 0 : index
    %208 = vector.load %arg5[%c0_72, %c0_73] : memref<8x8xf32, #tpu.memory_space<vmem>>, vector<8x8xf32>
    %209 = vector.shape_cast %208 : vector<8x8xf32> to vector<1x8x8xf32>
    %210 = tpu.iota {dimensions = array<i32: 1>} : vector<8x8x8xi32>
    %211 = tpu.iota {dimensions = array<i32: 1>} : vector<8x8xi32>
    %212 = vector.extract_strided_slice %207 {offsets = [0, 0], sizes = [8, 8], strides = [1, 1]} : vector<64x8xf32> to vector<8x8xf32>
    %213 = vector.broadcast %2 : vector<1x8xf32> to vector<8x8xf32>
    %214 = arith.addf %213, %212 : vector<8x8xf32>
    %215 = vector.extract_strided_slice %207 {offsets = [8, 0], sizes = [8, 8], strides = [1, 1]} : vector<64x8xf32> to vector<8x8xf32>
    %216 = vector.shape_cast %214 : vector<8x8xf32> to vector<8x8x1xf32>
    %217 = vector.broadcast %216 : vector<8x8x1xf32> to vector<8x8x8xf32>
    %218 = vector.broadcast %209 : vector<1x8x8xf32> to vector<8x8x8xf32>
    %219 = arith.addf %217, %218 : vector<8x8x8xf32>
    %cst_74 = arith.constant dense<0xFF800000> : vector<8x8xf32>
    %220 = vector.multi_reduction <maximumf>, %219, %cst_74 [1] : vector<8x8x8xf32> to vector<8x8xf32>
    %221 = vector.shape_cast %220 : vector<8x8xf32> to vector<8x1x8xf32>
    %222 = vector.broadcast %221 : vector<8x1x8xf32> to vector<8x8x8xf32>
    %223 = arith.cmpf oeq, %219, %222 : vector<8x8x8xf32>
    %c8_i32_75 = arith.constant 8 : i32
    %224 = vector.broadcast %c8_i32_75 : i32 to vector<8x8x8xi32>
    %225 = arith.select %223, %210, %224 : vector<8x8x8xi1>, vector<8x8x8xi32>
    %cst_76 = arith.constant dense<2147483647> : vector<8x8xi32>
    %226 = vector.multi_reduction <minsi>, %225, %cst_76 [1] : vector<8x8x8xi32> to vector<8x8xi32>
    %227 = arith.addf %220, %215 : vector<8x8xf32>
    %228 = vector.extract_strided_slice %207 {offsets = [16, 0], sizes = [8, 8], strides = [1, 1]} : vector<64x8xf32> to vector<8x8xf32>
    %229 = vector.shape_cast %227 : vector<8x8xf32> to vector<8x8x1xf32>
    %230 = vector.broadcast %229 : vector<8x8x1xf32> to vector<8x8x8xf32>
    %231 = vector.broadcast %209 : vector<1x8x8xf32> to vector<8x8x8xf32>
    %232 = arith.addf %230, %231 : vector<8x8x8xf32>
    %cst_77 = arith.constant dense<0xFF800000> : vector<8x8xf32>
    %233 = vector.multi_reduction <maximumf>, %232, %cst_77 [1] : vector<8x8x8xf32> to vector<8x8xf32>
    %234 = vector.shape_cast %233 : vector<8x8xf32> to vector<8x1x8xf32>
    %235 = vector.broadcast %234 : vector<8x1x8xf32> to vector<8x8x8xf32>
    %236 = arith.cmpf oeq, %232, %235 : vector<8x8x8xf32>
    %c8_i32_78 = arith.constant 8 : i32
    %237 = vector.broadcast %c8_i32_78 : i32 to vector<8x8x8xi32>
    %238 = arith.select %236, %210, %237 : vector<8x8x8xi1>, vector<8x8x8xi32>
    %cst_79 = arith.constant dense<2147483647> : vector<8x8xi32>
    %239 = vector.multi_reduction <minsi>, %238, %cst_79 [1] : vector<8x8x8xi32> to vector<8x8xi32>
    %240 = arith.addf %233, %228 : vector<8x8xf32>
    %241 = vector.extract_strided_slice %207 {offsets = [24, 0], sizes = [8, 8], strides = [1, 1]} : vector<64x8xf32> to vector<8x8xf32>
    %242 = vector.shape_cast %240 : vector<8x8xf32> to vector<8x8x1xf32>
    %243 = vector.broadcast %242 : vector<8x8x1xf32> to vector<8x8x8xf32>
    %244 = vector.broadcast %209 : vector<1x8x8xf32> to vector<8x8x8xf32>
    %245 = arith.addf %243, %244 : vector<8x8x8xf32>
    %cst_80 = arith.constant dense<0xFF800000> : vector<8x8xf32>
    %246 = vector.multi_reduction <maximumf>, %245, %cst_80 [1] : vector<8x8x8xf32> to vector<8x8xf32>
    %247 = vector.shape_cast %246 : vector<8x8xf32> to vector<8x1x8xf32>
    %248 = vector.broadcast %247 : vector<8x1x8xf32> to vector<8x8x8xf32>
    %249 = arith.cmpf oeq, %245, %248 : vector<8x8x8xf32>
    %c8_i32_81 = arith.constant 8 : i32
    %250 = vector.broadcast %c8_i32_81 : i32 to vector<8x8x8xi32>
    %251 = arith.select %249, %210, %250 : vector<8x8x8xi1>, vector<8x8x8xi32>
    %cst_82 = arith.constant dense<2147483647> : vector<8x8xi32>
    %252 = vector.multi_reduction <minsi>, %251, %cst_82 [1] : vector<8x8x8xi32> to vector<8x8xi32>
    %253 = arith.addf %246, %241 : vector<8x8xf32>
    %254 = vector.extract_strided_slice %207 {offsets = [32, 0], sizes = [8, 8], strides = [1, 1]} : vector<64x8xf32> to vector<8x8xf32>
    %255 = vector.shape_cast %253 : vector<8x8xf32> to vector<8x8x1xf32>
    %256 = vector.broadcast %255 : vector<8x8x1xf32> to vector<8x8x8xf32>
    %257 = vector.broadcast %209 : vector<1x8x8xf32> to vector<8x8x8xf32>
    %258 = arith.addf %256, %257 : vector<8x8x8xf32>
    %cst_83 = arith.constant dense<0xFF800000> : vector<8x8xf32>
    %259 = vector.multi_reduction <maximumf>, %258, %cst_83 [1] : vector<8x8x8xf32> to vector<8x8xf32>
    %260 = vector.shape_cast %259 : vector<8x8xf32> to vector<8x1x8xf32>
    %261 = vector.broadcast %260 : vector<8x1x8xf32> to vector<8x8x8xf32>
    %262 = arith.cmpf oeq, %258, %261 : vector<8x8x8xf32>
    %c8_i32_84 = arith.constant 8 : i32
    %263 = vector.broadcast %c8_i32_84 : i32 to vector<8x8x8xi32>
    %264 = arith.select %262, %210, %263 : vector<8x8x8xi1>, vector<8x8x8xi32>
    %cst_85 = arith.constant dense<2147483647> : vector<8x8xi32>
    %265 = vector.multi_reduction <minsi>, %264, %cst_85 [1] : vector<8x8x8xi32> to vector<8x8xi32>
    %266 = arith.addf %259, %254 : vector<8x8xf32>
    %267 = vector.extract_strided_slice %207 {offsets = [40, 0], sizes = [8, 8], strides = [1, 1]} : vector<64x8xf32> to vector<8x8xf32>
    %268 = vector.shape_cast %266 : vector<8x8xf32> to vector<8x8x1xf32>
    %269 = vector.broadcast %268 : vector<8x8x1xf32> to vector<8x8x8xf32>
    %270 = vector.broadcast %209 : vector<1x8x8xf32> to vector<8x8x8xf32>
    %271 = arith.addf %269, %270 : vector<8x8x8xf32>
    %cst_86 = arith.constant dense<0xFF800000> : vector<8x8xf32>
    %272 = vector.multi_reduction <maximumf>, %271, %cst_86 [1] : vector<8x8x8xf32> to vector<8x8xf32>
    %273 = vector.shape_cast %272 : vector<8x8xf32> to vector<8x1x8xf32>
    %274 = vector.broadcast %273 : vector<8x1x8xf32> to vector<8x8x8xf32>
    %275 = arith.cmpf oeq, %271, %274 : vector<8x8x8xf32>
    %c8_i32_87 = arith.constant 8 : i32
    %276 = vector.broadcast %c8_i32_87 : i32 to vector<8x8x8xi32>
    %277 = arith.select %275, %210, %276 : vector<8x8x8xi1>, vector<8x8x8xi32>
    %cst_88 = arith.constant dense<2147483647> : vector<8x8xi32>
    %278 = vector.multi_reduction <minsi>, %277, %cst_88 [1] : vector<8x8x8xi32> to vector<8x8xi32>
    %279 = arith.addf %272, %267 : vector<8x8xf32>
    %280 = vector.extract_strided_slice %207 {offsets = [48, 0], sizes = [8, 8], strides = [1, 1]} : vector<64x8xf32> to vector<8x8xf32>
    %281 = vector.shape_cast %279 : vector<8x8xf32> to vector<8x8x1xf32>
    %282 = vector.broadcast %281 : vector<8x8x1xf32> to vector<8x8x8xf32>
    %283 = vector.broadcast %209 : vector<1x8x8xf32> to vector<8x8x8xf32>
    %284 = arith.addf %282, %283 : vector<8x8x8xf32>
    %cst_89 = arith.constant dense<0xFF800000> : vector<8x8xf32>
    %285 = vector.multi_reduction <maximumf>, %284, %cst_89 [1] : vector<8x8x8xf32> to vector<8x8xf32>
    %286 = vector.shape_cast %285 : vector<8x8xf32> to vector<8x1x8xf32>
    %287 = vector.broadcast %286 : vector<8x1x8xf32> to vector<8x8x8xf32>
    %288 = arith.cmpf oeq, %284, %287 : vector<8x8x8xf32>
    %c8_i32_90 = arith.constant 8 : i32
    %289 = vector.broadcast %c8_i32_90 : i32 to vector<8x8x8xi32>
    %290 = arith.select %288, %210, %289 : vector<8x8x8xi1>, vector<8x8x8xi32>
    %cst_91 = arith.constant dense<2147483647> : vector<8x8xi32>
    %291 = vector.multi_reduction <minsi>, %290, %cst_91 [1] : vector<8x8x8xi32> to vector<8x8xi32>
    %292 = arith.addf %285, %280 : vector<8x8xf32>
    %293 = vector.extract_strided_slice %207 {offsets = [56, 0], sizes = [8, 8], strides = [1, 1]} : vector<64x8xf32> to vector<8x8xf32>
    %294 = vector.shape_cast %292 : vector<8x8xf32> to vector<8x8x1xf32>
    %295 = vector.broadcast %294 : vector<8x8x1xf32> to vector<8x8x8xf32>
    %296 = vector.broadcast %209 : vector<1x8x8xf32> to vector<8x8x8xf32>
    %297 = arith.addf %295, %296 : vector<8x8x8xf32>
    %cst_92 = arith.constant dense<0xFF800000> : vector<8x8xf32>
    %298 = vector.multi_reduction <maximumf>, %297, %cst_92 [1] : vector<8x8x8xf32> to vector<8x8xf32>
    %299 = vector.shape_cast %298 : vector<8x8xf32> to vector<8x1x8xf32>
    %300 = vector.broadcast %299 : vector<8x1x8xf32> to vector<8x8x8xf32>
    %301 = arith.cmpf oeq, %297, %300 : vector<8x8x8xf32>
    %c8_i32_93 = arith.constant 8 : i32
    %302 = vector.broadcast %c8_i32_93 : i32 to vector<8x8x8xi32>
    %303 = arith.select %301, %210, %302 : vector<8x8x8xi1>, vector<8x8x8xi32>
    %cst_94 = arith.constant dense<2147483647> : vector<8x8xi32>
    %304 = vector.multi_reduction <minsi>, %303, %cst_94 [1] : vector<8x8x8xi32> to vector<8x8xi32>
    %305 = arith.addf %298, %293 : vector<8x8xf32>
    %306 = vector.broadcast %3 : vector<1x8xf32> to vector<8x8xf32>
    %307 = arith.addf %305, %306 : vector<8x8xf32>
    %cst_95 = arith.constant dense<0xFF800000> : vector<8xf32>
    %308 = vector.multi_reduction <maximumf>, %307, %cst_95 [1] : vector<8x8xf32> to vector<8xf32>
    %309 = vector.shape_cast %308 : vector<8xf32> to vector<8x1xf32>
    %310 = vector.broadcast %309 : vector<8x1xf32> to vector<8x8xf32>
    %311 = arith.cmpf oeq, %307, %310 : vector<8x8xf32>
    %c8_i32_96 = arith.constant 8 : i32
    %312 = vector.broadcast %c8_i32_96 : i32 to vector<8x8xi32>
    %313 = arith.select %311, %211, %312 : vector<8x8xi1>, vector<8x8xi32>
    %cst_97 = arith.constant dense<2147483647> : vector<8xi32>
    %314 = vector.multi_reduction <minsi>, %313, %cst_97 [1] : vector<8x8xi32> to vector<8xi32>
    %315 = vector.shape_cast %314 : vector<8xi32> to vector<8x1xi32>
    %316 = tpu.iota {dimensions = array<i32: 1>} : vector<8x8xi32>
    %c7_i32_98 = arith.constant 7 : i32
    %317 = vector.broadcast %c7_i32_98 : i32 to vector<8x8xi32>
    %318 = arith.cmpi eq, %316, %317 : vector<8x8xi32>
    %c0_i32_99 = arith.constant 0 : i32
    %319 = vector.shape_cast %315 : vector<8x1xi32> to vector<8x1xi32>
    %320 = vector.broadcast %319 : vector<8x1xi32> to vector<8x8xi32>
    %321 = vector.broadcast %c0_i32_99 : i32 to vector<8x8xi32>
    %322 = arith.select %318, %320, %321 : vector<8x8xi1>, vector<8x8xi32>
    %323 = vector.broadcast %315 : vector<8x1xi32> to vector<8x8xi32>
    %324 = arith.cmpi eq, %211, %323 : vector<8x8xi32>
    %c0_i32_100 = arith.constant 0 : i32
    %325 = vector.broadcast %c0_i32_100 : i32 to vector<8x8xi32>
    %326 = arith.select %324, %304, %325 : vector<8x8xi1>, vector<8x8xi32>
    %cst_101 = arith.constant dense<0> : vector<8xi32>
    %327 = vector.multi_reduction <add>, %326, %cst_101 [1] : vector<8x8xi32> to vector<8xi32>
    %328 = vector.shape_cast %327 : vector<8xi32> to vector<8x1xi32>
    %c6_i32_102 = arith.constant 6 : i32
    %329 = vector.broadcast %c6_i32_102 : i32 to vector<8x8xi32>
    %330 = arith.cmpi eq, %316, %329 : vector<8x8xi32>
    %331 = vector.shape_cast %328 : vector<8x1xi32> to vector<8x1xi32>
    %332 = vector.broadcast %331 : vector<8x1xi32> to vector<8x8xi32>
    %333 = arith.select %330, %332, %322 : vector<8x8xi1>, vector<8x8xi32>
    %334 = vector.broadcast %328 : vector<8x1xi32> to vector<8x8xi32>
    %335 = arith.cmpi eq, %211, %334 : vector<8x8xi32>
    %c0_i32_103 = arith.constant 0 : i32
    %336 = vector.broadcast %c0_i32_103 : i32 to vector<8x8xi32>
    %337 = arith.select %335, %291, %336 : vector<8x8xi1>, vector<8x8xi32>
    %cst_104 = arith.constant dense<0> : vector<8xi32>
    %338 = vector.multi_reduction <add>, %337, %cst_104 [1] : vector<8x8xi32> to vector<8xi32>
    %339 = vector.shape_cast %338 : vector<8xi32> to vector<8x1xi32>
    %c5_i32_105 = arith.constant 5 : i32
    %340 = vector.broadcast %c5_i32_105 : i32 to vector<8x8xi32>
    %341 = arith.cmpi eq, %316, %340 : vector<8x8xi32>
    %342 = vector.shape_cast %339 : vector<8x1xi32> to vector<8x1xi32>
    %343 = vector.broadcast %342 : vector<8x1xi32> to vector<8x8xi32>
    %344 = arith.select %341, %343, %333 : vector<8x8xi1>, vector<8x8xi32>
    %345 = vector.broadcast %339 : vector<8x1xi32> to vector<8x8xi32>
    %346 = arith.cmpi eq, %211, %345 : vector<8x8xi32>
    %c0_i32_106 = arith.constant 0 : i32
    %347 = vector.broadcast %c0_i32_106 : i32 to vector<8x8xi32>
    %348 = arith.select %346, %278, %347 : vector<8x8xi1>, vector<8x8xi32>
    %cst_107 = arith.constant dense<0> : vector<8xi32>
    %349 = vector.multi_reduction <add>, %348, %cst_107 [1] : vector<8x8xi32> to vector<8xi32>
    %350 = vector.shape_cast %349 : vector<8xi32> to vector<8x1xi32>
    %c4_i32_108 = arith.constant 4 : i32
    %351 = vector.broadcast %c4_i32_108 : i32 to vector<8x8xi32>
    %352 = arith.cmpi eq, %316, %351 : vector<8x8xi32>
    %353 = vector.shape_cast %350 : vector<8x1xi32> to vector<8x1xi32>
    %354 = vector.broadcast %353 : vector<8x1xi32> to vector<8x8xi32>
    %355 = arith.select %352, %354, %344 : vector<8x8xi1>, vector<8x8xi32>
    %356 = vector.broadcast %350 : vector<8x1xi32> to vector<8x8xi32>
    %357 = arith.cmpi eq, %211, %356 : vector<8x8xi32>
    %c0_i32_109 = arith.constant 0 : i32
    %358 = vector.broadcast %c0_i32_109 : i32 to vector<8x8xi32>
    %359 = arith.select %357, %265, %358 : vector<8x8xi1>, vector<8x8xi32>
    %cst_110 = arith.constant dense<0> : vector<8xi32>
    %360 = vector.multi_reduction <add>, %359, %cst_110 [1] : vector<8x8xi32> to vector<8xi32>
    %361 = vector.shape_cast %360 : vector<8xi32> to vector<8x1xi32>
    %c3_i32_111 = arith.constant 3 : i32
    %362 = vector.broadcast %c3_i32_111 : i32 to vector<8x8xi32>
    %363 = arith.cmpi eq, %316, %362 : vector<8x8xi32>
    %364 = vector.shape_cast %361 : vector<8x1xi32> to vector<8x1xi32>
    %365 = vector.broadcast %364 : vector<8x1xi32> to vector<8x8xi32>
    %366 = arith.select %363, %365, %355 : vector<8x8xi1>, vector<8x8xi32>
    %367 = vector.broadcast %361 : vector<8x1xi32> to vector<8x8xi32>
    %368 = arith.cmpi eq, %211, %367 : vector<8x8xi32>
    %c0_i32_112 = arith.constant 0 : i32
    %369 = vector.broadcast %c0_i32_112 : i32 to vector<8x8xi32>
    %370 = arith.select %368, %252, %369 : vector<8x8xi1>, vector<8x8xi32>
    %cst_113 = arith.constant dense<0> : vector<8xi32>
    %371 = vector.multi_reduction <add>, %370, %cst_113 [1] : vector<8x8xi32> to vector<8xi32>
    %372 = vector.shape_cast %371 : vector<8xi32> to vector<8x1xi32>
    %c2_i32_114 = arith.constant 2 : i32
    %373 = vector.broadcast %c2_i32_114 : i32 to vector<8x8xi32>
    %374 = arith.cmpi eq, %316, %373 : vector<8x8xi32>
    %375 = vector.shape_cast %372 : vector<8x1xi32> to vector<8x1xi32>
    %376 = vector.broadcast %375 : vector<8x1xi32> to vector<8x8xi32>
    %377 = arith.select %374, %376, %366 : vector<8x8xi1>, vector<8x8xi32>
    %378 = vector.broadcast %372 : vector<8x1xi32> to vector<8x8xi32>
    %379 = arith.cmpi eq, %211, %378 : vector<8x8xi32>
    %c0_i32_115 = arith.constant 0 : i32
    %380 = vector.broadcast %c0_i32_115 : i32 to vector<8x8xi32>
    %381 = arith.select %379, %239, %380 : vector<8x8xi1>, vector<8x8xi32>
    %cst_116 = arith.constant dense<0> : vector<8xi32>
    %382 = vector.multi_reduction <add>, %381, %cst_116 [1] : vector<8x8xi32> to vector<8xi32>
    %383 = vector.shape_cast %382 : vector<8xi32> to vector<8x1xi32>
    %c1_i32_117 = arith.constant 1 : i32
    %384 = vector.broadcast %c1_i32_117 : i32 to vector<8x8xi32>
    %385 = arith.cmpi eq, %316, %384 : vector<8x8xi32>
    %386 = vector.shape_cast %383 : vector<8x1xi32> to vector<8x1xi32>
    %387 = vector.broadcast %386 : vector<8x1xi32> to vector<8x8xi32>
    %388 = arith.select %385, %387, %377 : vector<8x8xi1>, vector<8x8xi32>
    %389 = vector.broadcast %383 : vector<8x1xi32> to vector<8x8xi32>
    %390 = arith.cmpi eq, %211, %389 : vector<8x8xi32>
    %c0_i32_118 = arith.constant 0 : i32
    %391 = vector.broadcast %c0_i32_118 : i32 to vector<8x8xi32>
    %392 = arith.select %390, %226, %391 : vector<8x8xi1>, vector<8x8xi32>
    %cst_119 = arith.constant dense<0> : vector<8xi32>
    %393 = vector.multi_reduction <add>, %392, %cst_119 [1] : vector<8x8xi32> to vector<8xi32>
    %394 = vector.shape_cast %393 : vector<8xi32> to vector<8x1xi32>
    %c0_i32_120 = arith.constant 0 : i32
    %395 = vector.broadcast %c0_i32_120 : i32 to vector<8x8xi32>
    %396 = arith.cmpi eq, %316, %395 : vector<8x8xi32>
    %397 = vector.shape_cast %394 : vector<8x1xi32> to vector<8x1xi32>
    %398 = vector.broadcast %397 : vector<8x1xi32> to vector<8x8xi32>
    %399 = arith.select %396, %398, %388 : vector<8x8xi1>, vector<8x8xi32>
    %c0_121 = arith.constant 0 : index
    %c0_122 = arith.constant 0 : index
    %400 = vector.load %arg6[%c0_121, %c0_122] : memref<8x8xi32, #tpu.memory_space<vmem>>, vector<8x8xi32>
    tpu.vector_store %arg6[%c0_121, %c0_122], %399 {strides = array<i32>} : memref<8x8xi32, #tpu.memory_space<vmem>>, vector<8x8xi32>,
    return
  }
}

</mosaic_0001>

<llo_original>
// kernel: hlstm_crf_forward.1
$region0: #{hlstm_crf_forward.1}
  #allocation0 [shape = 'u32[]', space=smem, size = 0x4, offset = 0x4, fixed_abs, tag = 'smem constant byte address 0x4 - core index']
  #allocation1 [shape = 'u32[144,128]{1,0:T(1,128)}', space=vmem, size = 0x12000, scoped, tag = 'internal scratch']
  #allocation2 [shape = 'f32[64,128]{1,0:T(8,128)}', space=vmem, size = 0x8000, scoped, tag = 'scratch operand']
  #allocation3 [shape = 'f32[64,32]{1,0:T(8,128)}', space=vmem, size = 0x8000, scoped, tag = 'scratch operand']
  %s0 = inlined_call_operand.vmem [shape: f32[64,16], index: 0, kind: input, shape index: {}]
  %s1 = inlined_call_operand.vmem [shape: f32[16,128], index: 1, kind: input, shape index: {}]
  %s2 = inlined_call_operand.vmem [shape: f32[32,128], index: 2, kind: input, shape index: {}]
  %s3 = inlined_call_operand.vmem [shape: f32[32,8], index: 3, kind: input, shape index: {}]
  %s4 = inlined_call_operand.vmem [shape: f32[8,128], index: 4, kind: input, shape index: {}]
  %s5 = inlined_call_operand.vmem [shape: f32[8,8], index: 5, kind: input, shape index: {}]
  %s6 = inlined_call_operand.vmem [shape: s32[8,8], index: 6, kind: output, shape index: {}]
  %s7 = sld [smem:[#allocation0]]
  $region34: #{hlstm_crf_forward.1} parent=0
    _
  %s9 = ssub.s32 1, %s7
  %s10 = scalar_select 0, %s9, %s7
  // Predicated region
  $region2: #{hlstm_crf_forward.1} parent=0 // pred_check
    _
  $region3: #{hlstm_crf_forward.1} parent=0 // pred_check_branch
    %12 = sbr.rel (0) target = $region5
  $region4: #{hlstm_crf_forward.1} parent=0 // pred_region
    _
  $region5: #{hlstm_crf_forward.1} parent=0 // pred_fallthru
    _
  // Predicated region
  $region6: #{hlstm_crf_forward.1} parent=0 // pred_check
    _
  $region7: #{hlstm_crf_forward.1} parent=0 // pred_check_branch
    %14 = sbr.rel (0) target = $region9
  $region8: #{hlstm_crf_forward.1} parent=0 // pred_region
    _
  $region9: #{hlstm_crf_forward.1} parent=0 // pred_fallthru
    _
  // Predicated region
  $region10: #{hlstm_crf_forward.1} parent=0 // pred_check
    _
  $region11: #{hlstm_crf_forward.1} parent=0 // pred_check_branch
    %16 = sbr.rel (0) target = $region13
  $region12: #{hlstm_crf_forward.1} parent=0 // pred_region
    _
  $region13: #{hlstm_crf_forward.1} parent=0 // pred_fallthru
    _
  // Predicated region
  $region14: #{hlstm_crf_forward.1} parent=0 // pred_check
    _
  $region15: #{hlstm_crf_forward.1} parent=0 // pred_check_branch
    %18 = sbr.rel (0) target = $region17
  $region16: #{hlstm_crf_forward.1} parent=0 // pred_region
    _
  $region17: #{hlstm_crf_forward.1} parent=0 // pred_fallthru
    _
  // Predicated region
  $region18: #{hlstm_crf_forward.1} parent=0 // pred_check
    _
  $region19: #{hlstm_crf_forward.1} parent=0 // pred_check_branch
    %20 = sbr.rel (0) target = $region21
  $region20: #{hlstm_crf_forward.1} parent=0 // pred_region
    _
  $region21: #{hlstm_crf_forward.1} parent=0 // pred_fallthru
    _
  // Predicated region
  $region22: #{hlstm_crf_forward.1} parent=0 // pred_check
    _
  $region23: #{hlstm_crf_forward.1} parent=0 // pred_check_branch
    %22 = sbr.rel (0) target = $region25
  $region24: #{hlstm_crf_forward.1} parent=0 // pred_region
    _
  $region25: #{hlstm_crf_forward.1} parent=0 // pred_fallthru
    _
  %v23 = vld [vmem:[%s4] sm:$0x1]
  %v24 = vld [vmem:[%s4 + $0x1] sm:$0x1]
  %v25 = vld [vmem:[%s4 + $0x2] sm:$0x1]
  %v26 = vld [vmem:[%s4 + $0x3] sm:$0x1]
  %v27 = vld [vmem:[%s0] sm:$0xff]
  %v28 = vld [vmem:[%s0 + $0x8] sm:$0xff]
  %v29 = vld [vmem:[%s0 + $0x10] sm:$0xff]
  %v30 = vld [vmem:[%s0 + $0x18] sm:$0xff]
  %v31 = vld [vmem:[%s0 + $0x20] sm:$0xff]
  %v32 = vld [vmem:[%s0 + $0x28] sm:$0xff]
  %v33 = vld [vmem:[%s0 + $0x30] sm:$0xff]
  %v34 = vld [vmem:[%s0 + $0x38] sm:$0xff]
  %v35 = vld [vmem:[%s1] sm:$0xff]
  %v36 = vld [vmem:[%s1 + $0x8] sm:$0xff]
  %v37 = vlaneseq
  %v38 = vshrl.u32 %v37, 7
  %v39 = vsub.s32 0, %v38
  %v40 = vrot.slane %v23, %v39
  %vm41 = vcmask 130048
  %v43 = vsel %vm41, %v27, 0
  %v46 = vsel %vm41, %v28, 0
  %v49 = vsel %vm41, %v29, 0
  %v52 = vsel %vm41, %v30, 0
  %v55 = vsel %vm41, %v31, 0
  %v58 = vsel %vm41, %v32, 0
  %v61 = vsel %vm41, %v33, 0
  %v64 = vsel %vm41, %v34, 0
  %66 = vmatprep.subr.mxu0 0.0
  %67 = vmatpush1.msra.mxu0 0.0
  %68 = vmatprep.subr.mxu0 0.0
  %69 = vmatpush1.msra.mxu0 0.0
  %70 = vmatprep.subr.mxu0 0.0
  %71 = vmatpush1.msra.mxu0 0.0
  %72 = vmatprep.subr.mxu0 0.0
  %73 = vmatpush1.msra.mxu0 0.0
  %74 = vmatprep.subr.mxu0 0.0
  %75 = vmatpush1.msra.mxu0 0.0
  %76 = vmatprep.subr.mxu0 0.0
  %77 = vmatpush1.msra.mxu0 0.0
  %78 = vmatprep.subr.mxu0 0.0
  %79 = vmatpush1.msra.mxu0 0.0
  %80 = vmatprep.subr.mxu0 0.0
  %81 = vmatpush1.msra.mxu0 0.0
  %82 = vmatprep.subr.mxu0 0.0
  %83 = vmatpush1.msra.mxu0 0.0
  %84 = vmatprep.subr.mxu0 0.0
  %85 = vmatpush1.msra.mxu0 0.0
  %86 = vmatprep.subr.mxu0 0.0
  %87 = vmatpush1.msra.mxu0 0.0
  %88 = vmatprep.subr.mxu0 0.0
  %89 = vmatpush1.msra.mxu0 0.0
  %90 = vmatprep.subr.mxu0 0.0
  %91 = vmatpush1.msra.mxu0 0.0
  %92 = vmatprep.subr.mxu0 0.0
  %93 = vmatpush1.msra.mxu0 0.0
  %94 = vmatprep.subr.mxu0 0.0
  %95 = vmatpush1.msra.mxu0 %v36
  %96 = vmatprep.subr.mxu0 0.0
  %97 = vmatpush1.msra.mxu0 %v35
  %98 = vmatprep.subr.mxu0 0.0
  %99 = vmatpush2.msra.mxu0 0.0
  %100 = vmatprep.subr.mxu0 0.0
  %101 = vmatpush2.msra.mxu0 0.0
  %102 = vmatprep.subr.mxu0 0.0
  %103 = vmatpush2.msra.mxu0 0.0
  %104 = vmatprep.subr.mxu0 0.0
  %105 = vmatpush2.msra.mxu0 0.0
  %106 = vmatprep.subr.mxu0 0.0
  %107 = vmatpush2.msra.mxu0 0.0
  %108 = vmatprep.subr.mxu0 0.0
  %109 = vmatpush2.msra.mxu0 0.0
  %110 = vmatprep.subr.mxu0 0.0
  %111 = vmatpush2.msra.mxu0 0.0
  %112 = vmatprep.subr.mxu0 0.0
  %113 = vmatpush2.msra.mxu0 0.0
  %114 = vmatprep.subr.mxu0 0.0
  %115 = vmatpush2.msra.mxu0 0.0
  %116 = vmatprep.subr.mxu0 0.0
  %117 = vmatpush2.msra.mxu0 0.0
  %118 = vmatprep.subr.mxu0 0.0
  %119 = vmatpush2.msra.mxu0 0.0
  %120 = vmatprep.subr.mxu0 0.0
  %121 = vmatpush2.msra.mxu0 0.0
  %122 = vmatprep.subr.mxu0 0.0
  %123 = vmatpush2.msra.mxu0 0.0
  %124 = vmatprep.subr.mxu0 0.0
  %125 = vmatpush2.msra.mxu0 0.0
  %126 = vmatprep.subr.mxu0 0.0
  %127 = vmatpush2.msra.mxu0 0.0
  %128 = vmatprep.subr.mxu0 0.0
  %129 = vmatpush2.msra.mxu0 0.0
  %130 = vmatprep.mubr.f32.mxu0 0.0
  %131 = vmatmul.mubr.f32.gmra.mxu0 %v43
  %v132 = vpop.f32.mrf.mxu0
  %v133 = vadd.f32 %v40, %v132
  %v134 = vpop.f32.mrf.mxu0
  %135 = vmatprep.mubr.f32.mxu0 0.0
  %136 = vmatmul.mubr.f32.gmra.mxu0 %v46
  %v137 = vpop.f32.mrf.mxu0
  %v138 = vadd.f32 %v40, %v137
  %v139 = vpop.f32.mrf.mxu0
  %140 = vmatprep.mubr.f32.mxu0 0.0
  %141 = vmatmul.mubr.f32.gmra.mxu0 %v49
  %v142 = vpop.f32.mrf.mxu0
  %v143 = vadd.f32 %v40, %v142
  %v144 = vpop.f32.mrf.mxu0
  %145 = vmatprep.mubr.f32.mxu0 0.0
  %146 = vmatmul.mubr.f32.gmra.mxu0 %v52
  %v147 = vpop.f32.mrf.mxu0
  %v148 = vadd.f32 %v40, %v147
  %v149 = vpop.f32.mrf.mxu0
  %150 = vmatprep.mubr.f32.mxu0 0.0
  %151 = vmatmul.mubr.f32.gmra.mxu0 %v55
  %v152 = vpop.f32.mrf.mxu0
  %v153 = vadd.f32 %v40, %v152
  %v154 = vpop.f32.mrf.mxu0
  %155 = vmatprep.mubr.f32.mxu0 0.0
  %156 = vmatmul.mubr.f32.gmra.mxu0 %v58
  %v157 = vpop.f32.mrf.mxu0
  %v158 = vadd.f32 %v40, %v157
  %v159 = vpop.f32.mrf.mxu0
  %160 = vmatprep.mubr.f32.mxu0 0.0
  %161 = vmatmul.mubr.f32.gmra.mxu0 %v61
  %v162 = vpop.f32.mrf.mxu0
  %v163 = vadd.f32 %v40, %v162
  %v164 = vpop.f32.mrf.mxu0
  %165 = vmatprep.mubr.f32.mxu0 0.0
  %166 = vmatmul.mubr.f32.gmra.mxu0 %v64
  %v167 = vpop.f32.mrf.mxu0
  %v168 = vadd.f32 %v40, %v167
  %v169 = vpop.f32.mrf.mxu0
  %170 = vdwg.mxu0
  %171 = vst [vmem:[#allocation2] sm:$0xff] %v133
  %172 = vst [vmem:[#allocation2 + $0x8] sm:$0xff] %v138
  %173 = vst [vmem:[#allocation2 + $0x10] sm:$0xff] %v143
  %174 = vst [vmem:[#allocation2 + $0x18] sm:$0xff] %v148
  %175 = vst [vmem:[#allocation2 + $0x20] sm:$0xff] %v153
  %176 = vst [vmem:[#allocation2 + $0x28] sm:$0xff] %v158
  %177 = vst [vmem:[#allocation2 + $0x30] sm:$0xff] %v163
  %178 = vst [vmem:[#allocation2 + $0x38] sm:$0xff] %v168
  %v179 = vld [vmem:[#allocation2] sm:$0xff]
  %v180 = vld [vmem:[%s2] sm:$0xff]
  %v181 = vld [vmem:[%s2 + $0x8] sm:$0xff]
  %v182 = vld [vmem:[%s2 + $0x10] sm:$0xff]
  %v183 = vld [vmem:[%s2 + $0x18] sm:$0xff]
  %vm184 = vcmask 261120
  %v186 = vsel %vm184, 0.0, 0
  %188 = vmatprep.subr.mxu0 0.0
  %189 = vmatpush1.msra.mxu0 0.0
  %190 = vmatprep.subr.mxu0 0.0
  %191 = vmatpush1.msra.mxu0 0.0
  %192 = vmatprep.subr.mxu0 0.0
  %193 = vmatpush1.msra.mxu0 0.0
  %194 = vmatprep.subr.mxu0 0.0
  %195 = vmatpush1.msra.mxu0 0.0
  %196 = vmatprep.subr.mxu0 0.0
  %197 = vmatpush1.msra.mxu0 0.0
  %198 = vmatprep.subr.mxu0 0.0
  %199 = vmatpush1.msra.mxu0 0.0
  %200 = vmatprep.subr.mxu0 0.0
  %201 = vmatpush1.msra.mxu0 0.0
  %202 = vmatprep.subr.mxu0 0.0
  %203 = vmatpush1.msra.mxu0 0.0
  %204 = vmatprep.subr.mxu0 0.0
  %205 = vmatpush1.msra.mxu0 0.0
  %206 = vmatprep.subr.mxu0 0.0
  %207 = vmatpush1.msra.mxu0 0.0
  %208 = vmatprep.subr.mxu0 0.0
  %209 = vmatpush1.msra.mxu0 0.0
  %210 = vmatprep.subr.mxu0 0.0
  %211 = vmatpush1.msra.mxu0 0.0
  %212 = vmatprep.subr.mxu0 0.0
  %213 = vmatpush1.msra.mxu0 %v183
  %214 = vmatprep.subr.mxu0 0.0
  %215 = vmatpush1.msra.mxu0 %v182
  %216 = vmatprep.subr.mxu0 0.0
  %217 = vmatpush1.msra.mxu0 %v181
  %218 = vmatprep.subr.mxu0 0.0
  %219 = vmatpush1.msra.mxu0 %v180
  %220 = vmatprep.subr.mxu0 0.0
  %221 = vmatpush2.msra.mxu0 0.0
  %222 = vmatprep.subr.mxu0 0.0
  %223 = vmatpush2.msra.mxu0 0.0
  %224 = vmatprep.subr.mxu0 0.0
  %225 = vmatpush2.msra.mxu0 0.0
  %226 = vmatprep.subr.mxu0 0.0
  %227 = vmatpush2.msra.mxu0 0.0
  %228 = vmatprep.subr.mxu0 0.0
  %229 = vmatpush2.msra.mxu0 0.0
  %230 = vmatprep.subr.mxu0 0.0
  %231 = vmatpush2.msra.mxu0 0.0
  %232 = vmatprep.subr.mxu0 0.0
  %233 = vmatpush2.msra.mxu0 0.0
  %234 = vmatprep.subr.mxu0 0.0
  %235 = vmatpush2.msra.mxu0 0.0
  %236 = vmatprep.subr.mxu0 0.0
  %237 = vmatpush2.msra.mxu0 0.0
  %238 = vmatprep.subr.mxu0 0.0
  %239 = vmatpush2.msra.mxu0 0.0
  %240 = vmatprep.subr.mxu0 0.0
  %241 = vmatpush2.msra.mxu0 0.0
  %242 = vmatprep.subr.mxu0 0.0
  %243 = vmatpush2.msra.mxu0 0.0
  %244 = vmatprep.subr.mxu0 0.0
  %245 = vmatpush2.msra.mxu0 0.0
  %246 = vmatprep.subr.mxu0 0.0
  %247 = vmatpush2.msra.mxu0 0.0
  %248 = vmatprep.subr.mxu0 0.0
  %249 = vmatpush2.msra.mxu0 0.0
  %250 = vmatprep.subr.mxu0 0.0
  %251 = vmatpush2.msra.mxu0 0.0
  %252 = vmatprep.mubr.f32.mxu0 0.0
  %253 = vmatmul.mubr.f32.gmra.mxu0 %v186
  %v254 = vpop.f32.mrf.mxu0
  %v255 = vadd.f32 0.0, %v254
  %v256 = vpop.f32.mrf.mxu0
  %257 = vdwg.mxu0
  %v258 = vadd.f32 %v179, %v255
  %v259 = vxor.u32 %v258, 2147483648
  %v260 = vmul.f32 %v259, 1.442695
  %v261 = vpow.pop %v260
  %v262 = vadd.f32 %v261, 1.0
  %v263 = vrcp.pop %v262
  %v264 = vmul.f32 1.0, %v263
  %v265 = vtanh.pop %v258
  %v266 = vmul.f32 %v264, 0.0
  %268 = vrot.lane.b32.xlu0 %v265, 64
  %v269 = vpop.permute.xlu0 %268
  %v271 = vmul.f32 %v264, %v269
  %273 = vrot.lane.b32.xlu0 %v271, 32
  %v274 = vpop.permute.xlu0 %273
  %v276 = vadd.f32 %v266, %v274
  %v277 = vtanh.pop %v276
  %279 = vrot.lane.b32.xlu0 %v277, 64
  %v280 = vpop.permute.xlu0 %279
  %v282 = vmul.f32 %v264, %v280
  %284 = vrot.lane.b32.xlu0 %v282, 32
  %v285 = vpop.permute.xlu0 %284
  %287 = vst.msk [vmem:[#allocation3] sm:$0xff] %vm184, %v285
  %s288 = scalar_lea.vmem [#allocation2], 8
  %v289 = vld [vmem:[%s288] sm:$0xff]
  %v290 = vld [vmem:[%s2] sm:$0xff]
  %v291 = vld [vmem:[%s2 + $0x8] sm:$0xff]
  %v292 = vld [vmem:[%s2 + $0x10] sm:$0xff]
  %v293 = vld [vmem:[%s2 + $0x18] sm:$0xff]
  %v294 = vsel %vm184, %v285, 0
  %296 = vmatprep.subr.mxu0 0.0
  %297 = vmatpush1.msra.mxu0 0.0
  %298 = vmatprep.subr.mxu0 0.0
  %299 = vmatpush1.msra.mxu0 0.0
  %300 = vmatprep.subr.mxu0 0.0
  %301 = vmatpush1.msra.mxu0 0.0
  %302 = vmatprep.subr.mxu0 0.0
  %303 = vmatpush1.msra.mxu0 0.0
  %304 = vmatprep.subr.mxu0 0.0
  %305 = vmatpush1.msra.mxu0 0.0
  %306 = vmatprep.subr.mxu0 0.0
  %307 = vmatpush1.msra.mxu0 0.0
  %308 = vmatprep.subr.mxu0 0.0
  %309 = vmatpush1.msra.mxu0 0.0
  %310 = vmatprep.subr.mxu0 0.0
  %311 = vmatpush1.msra.mxu0 0.0
  %312 = vmatprep.subr.mxu0 0.0
  %313 = vmatpush1.msra.mxu0 0.0
  %314 = vmatprep.subr.mxu0 0.0
  %315 = vmatpush1.msra.mxu0 0.0
  %316 = vmatprep.subr.mxu0 0.0
  %317 = vmatpush1.msra.mxu0 0.0
  %318 = vmatprep.subr.mxu0 0.0
  %319 = vmatpush1.msra.mxu0 0.0
  %320 = vmatprep.subr.mxu0 0.0
  %321 = vmatpush1.msra.mxu0 %v293
  %322 = vmatprep.subr.mxu0 0.0
  %323 = vmatpush1.msra.mxu0 %v292
  %324 = vmatprep.subr.mxu0 0.0
  %325 = vmatpush1.msra.mxu0 %v291
  %326 = vmatprep.subr.mxu0 0.0
  %327 = vmatpush1.msra.mxu0 %v290
  %328 = vmatprep.subr.mxu0 0.0
  %329 = vmatpush2.msra.mxu0 0.0
  %330 = vmatprep.subr.mxu0 0.0
  %331 = vmatpush2.msra.mxu0 0.0
  %332 = vmatprep.subr.mxu0 0.0
  %333 = vmatpush2.msra.mxu0 0.0
  %334 = vmatprep.subr.mxu0 0.0
  %335 = vmatpush2.msra.mxu0 0.0
  %336 = vmatprep.subr.mxu0 0.0
  %337 = vmatpush2.msra.mxu0 0.0
  %338 = vmatprep.subr.mxu0 0.0
  %339 = vmatpush2.msra.mxu0 0.0
  %340 = vmatprep.subr.mxu0 0.0
  %341 = vmatpush2.msra.mxu0 0.0
  %342 = vmatprep.subr.mxu0 0.0
  %343 = vmatpush2.msra.mxu0 0.0
  %344 = vmatprep.subr.mxu0 0.0
  %345 = vmatpush2.msra.mxu0 0.0
  %346 = vmatprep.subr.mxu0 0.0
  %347 = vmatpush2.msra.mxu0 0.0
  %348 = vmatprep.subr.mxu0 0.0
  %349 = vmatpush2.msra.mxu0 0.0
  %350 = vmatprep.subr.mxu0 0.0
  %351 = vmatpush2.msra.mxu0 0.0
  %352 = vmatprep.subr.mxu0 0.0
  %353 = vmatpush2.msra.mxu0 0.0
  %354 = vmatprep.subr.mxu0 0.0
  %355 = vmatpush2.msra.mxu0 0.0
  %356 = vmatprep.subr.mxu0 0.0
  %357 = vmatpush2.msra.mxu0 0.0
  %358 = vmatprep.subr.mxu0 0.0
  %359 = vmatpush2.msra.mxu0 0.0
  %360 = vmatprep.mubr.f32.mxu0 0.0
  %361 = vmatmul.mubr.f32.gmra.mxu0 %v294
  %v362 = vpop.f32.mrf.mxu0
  %v363 = vadd.f32 0.0, %v362
  %v364 = vpop.f32.mrf.mxu0
  %365 = vdwg.mxu0
  %v366 = vadd.f32 %v289, %v363
  %v367 = vxor.u32 %v366, 2147483648
  %v368 = vmul.f32 %v367, 1.442695
  %v369 = vpow.pop %v368
  %v370 = vadd.f32 %v369, 1.0
  %v371 = vrcp.pop %v370
  %v372 = vmul.f32 1.0, %v371
  %v373 = vtanh.pop %v366
  %v374 = vmul.f32 %v372, %v276
  %376 = vrot.lane.b32.xlu0 %v373, 64
  %v377 = vpop.permute.xlu0 %376
  %v379 = vmul.f32 %v372, %v377
  %381 = vrot.lane.b32.xlu0 %v379, 32
  %v382 = vpop.permute.xlu0 %381
  %v384 = vadd.f32 %v374, %v382
  %v385 = vtanh.pop %v384
  %387 = vrot.lane.b32.xlu0 %v385, 64
  %v388 = vpop.permute.xlu0 %387
  %v390 = vmul.f32 %v372, %v388
  %392 = vrot.lane.b32.xlu0 %v390, 32
  %v393 = vpop.permute.xlu0 %392
  %s395 = scalar_lea.vmem [#allocation3], 8
  %396 = vst.msk [vmem:[%s395] sm:$0xff] %vm184, %v393
  %s397 = scalar_lea.vmem [#allocation2], 16
  %v398 = vld [vmem:[%s397] sm:$0xff]
  %v399 = vld [vmem:[%s2] sm:$0xff]
  %v400 = vld [vmem:[%s2 + $0x8] sm:$0xff]
  %v401 = vld [vmem:[%s2 + $0x10] sm:$0xff]
  %v402 = vld [vmem:[%s2 + $0x18] sm:$0xff]
  %v403 = vsel %vm184, %v393, 0
  %405 = vmatprep.subr.mxu0 0.0
  %406 = vmatpush1.msra.mxu0 0.0
  %407 = vmatprep.subr.mxu0 0.0
  %408 = vmatpush1.msra.mxu0 0.0
  %409 = vmatprep.subr.mxu0 0.0
  %410 = vmatpush1.msra.mxu0 0.0
  %411 = vmatprep.subr.mxu0 0.0
  %412 = vmatpush1.msra.mxu0 0.0
  %413 = vmatprep.subr.mxu0 0.0
  %414 = vmatpush1.msra.mxu0 0.0
  %415 = vmatprep.subr.mxu0 0.0
  %416 = vmatpush1.msra.mxu0 0.0
  %417 = vmatprep.subr.mxu0 0.0
  %418 = vmatpush1.msra.mxu0 0.0
  %419 = vmatprep.subr.mxu0 0.0
  %420 = vmatpush1.msra.mxu0 0.0
  %421 = vmatprep.subr.mxu0 0.0
  %422 = vmatpush1.msra.mxu0 0.0
  %423 = vmatprep.subr.mxu0 0.0
  %424 = vmatpush1.msra.mxu0 0.0
  %425 = vmatprep.subr.mxu0 0.0
  %426 = vmatpush1.msra.mxu0 0.0
  %427 = vmatprep.subr.mxu0 0.0
  %428 = vmatpush1.msra.mxu0 0.0
  %429 = vmatprep.subr.mxu0 0.0
  %430 = vmatpush1.msra.mxu0 %v402
  %431 = vmatprep.subr.mxu0 0.0
  %432 = vmatpush1.msra.mxu0 %v401
  %433 = vmatprep.subr.mxu0 0.0
  %434 = vmatpush1.msra.mxu0 %v400
  %435 = vmatprep.subr.mxu0 0.0
  %436 = vmatpush1.msra.mxu0 %v399
  %437 = vmatprep.subr.mxu0 0.0
  %438 = vmatpush2.msra.mxu0 0.0
  %439 = vmatprep.subr.mxu0 0.0
  %440 = vmatpush2.msra.mxu0 0.0
  %441 = vmatprep.subr.mxu0 0.0
  %442 = vmatpush2.msra.mxu0 0.0
  %443 = vmatprep.subr.mxu0 0.0
  %444 = vmatpush2.msra.mxu0 0.0
  %445 = vmatprep.subr.mxu0 0.0
  %446 = vmatpush2.msra.mxu0 0.0
  %447 = vmatprep.subr.mxu0 0.0
  %448 = vmatpush2.msra.mxu0 0.0
  %449 = vmatprep.subr.mxu0 0.0
  %450 = vmatpush2.msra.mxu0 0.0
  %451 = vmatprep.subr.mxu0 0.0
  %452 = vmatpush2.msra.mxu0 0.0
  %453 = vmatprep.subr.mxu0 0.0
  %454 = vmatpush2.msra.mxu0 0.0
  %455 = vmatprep.subr.mxu0 0.0
  %456 = vmatpush2.msra.mxu0 0.0
  %457 = vmatprep.subr.mxu0 0.0
  %458 = vmatpush2.msra.mxu0 0.0
  %459 = vmatprep.subr.mxu0 0.0
  %460 = vmatpush2.msra.mxu0 0.0
  %461 = vmatprep.subr.mxu0 0.0
  %462 = vmatpush2.msra.mxu0 0.0
  %463 = vmatprep.subr.mxu0 0.0
  %464 = vmatpush2.msra.mxu0 0.0
  %465 = vmatprep.subr.mxu0 0.0
  %466 = vmatpush2.msra.mxu0 0.0
  %467 = vmatprep.subr.mxu0 0.0
  %468 = vmatpush2.msra.mxu0 0.0
  %469 = vmatprep.mubr.f32.mxu0 0.0
  %470 = vmatmul.mubr.f32.gmra.mxu0 %v403
  %v471 = vpop.f32.mrf.mxu0
  %v472 = vadd.f32 0.0, %v471
  %v473 = vpop.f32.mrf.mxu0
  %474 = vdwg.mxu0
  %v475 = vadd.f32 %v398, %v472
  %v476 = vxor.u32 %v475, 2147483648
  %v477 = vmul.f32 %v476, 1.442695
  %v478 = vpow.pop %v477
  %v479 = vadd.f32 %v478, 1.0
  %v480 = vrcp.pop %v479
  %v481 = vmul.f32 1.0, %v480
  %v482 = vtanh.pop %v475
  %v483 = vmul.f32 %v481, %v384
  %485 = vrot.lane.b32.xlu0 %v482, 64
  %v486 = vpop.permute.xlu0 %485
  %v488 = vmul.f32 %v481, %v486
  %490 = vrot.lane.b32.xlu0 %v488, 32
  %v491 = vpop.permute.xlu0 %490
  %v493 = vadd.f32 %v483, %v491
  %v494 = vtanh.pop %v493
  %496 = vrot.lane.b32.xlu0 %v494, 64
  %v497 = vpop.permute.xlu0 %496
  %v499 = vmul.f32 %v481, %v497
  %501 = vrot.lane.b32.xlu0 %v499, 32
  %v502 = vpop.permute.xlu0 %501
  %s504 = scalar_lea.vmem [#allocation3], 16
  %505 = vst.msk [vmem:[%s504] sm:$0xff] %vm184, %v502
  %s506 = scalar_lea.vmem [#allocation2], 24
  %v507 = vld [vmem:[%s506] sm:$0xff]
  %v508 = vld [vmem:[%s2] sm:$0xff]
  %v509 = vld [vmem:[%s2 + $0x8] sm:$0xff]
  %v510 = vld [vmem:[%s2 + $0x10] sm:$0xff]
  %v511 = vld [vmem:[%s2 + $0x18] sm:$0xff]
  %v512 = vsel %vm184, %v502, 0
  %514 = vmatprep.subr.mxu0 0.0
  %515 = vmatpush1.msra.mxu0 0.0
  %516 = vmatprep.subr.mxu0 0.0
  %517 = vmatpush1.msra.mxu0 0.0
  %518 = vmatprep.subr.mxu0 0.0
  %519 = vmatpush1.msra.mxu0 0.0
  %520 = vmatprep.subr.mxu0 0.0
  %521 = vmatpush1.msra.mxu0 0.0
  %522 = vmatprep.subr.mxu0 0.0
  %523 = vmatpush1.msra.mxu0 0.0
  %524 = vmatprep.subr.mxu0 0.0
  %525 = vmatpush1.msra.mxu0 0.0
  %526 = vmatprep.subr.mxu0 0.0
  %527 = vmatpush1.msra.mxu0 0.0
  %528 = vmatprep.subr.mxu0 0.0
  %529 = vmatpush1.msra.mxu0 0.0
  %530 = vmatprep.subr.mxu0 0.0
  %531 = vmatpush1.msra.mxu0 0.0
  %532 = vmatprep.subr.mxu0 0.0
  %533 = vmatpush1.msra.mxu0 0.0
  %534 = vmatprep.subr.mxu0 0.0
  %535 = vmatpush1.msra.mxu0 0.0
  %536 = vmatprep.subr.mxu0 0.0
  %537 = vmatpush1.msra.mxu0 0.0
  %538 = vmatprep.subr.mxu0 0.0
  %539 = vmatpush1.msra.mxu0 %v511
  %540 = vmatprep.subr.mxu0 0.0
  %541 = vmatpush1.msra.mxu0 %v510
  %542 = vmatprep.subr.mxu0 0.0
  %543 = vmatpush1.msra.mxu0 %v509
  %544 = vmatprep.subr.mxu0 0.0
  %545 = vmatpush1.msra.mxu0 %v508
  %546 = vmatprep.subr.mxu0 0.0
  %547 = vmatpush2.msra.mxu0 0.0
  %548 = vmatprep.subr.mxu0 0.0
  %549 = vmatpush2.msra.mxu0 0.0
  %550 = vmatprep.subr.mxu0 0.0
  %551 = vmatpush2.msra.mxu0 0.0
  %552 = vmatprep.subr.mxu0 0.0
  %553 = vmatpush2.msra.mxu0 0.0
  %554 = vmatprep.subr.mxu0 0.0
  %555 = vmatpush2.msra.mxu0 0.0
  %556 = vmatprep.subr.mxu0 0.0
  %557 = vmatpush2.msra.mxu0 0.0
  %558 = vmatprep.subr.mxu0 0.0
  %559 = vmatpush2.msra.mxu0 0.0
  %560 = vmatprep.subr.mxu0 0.0
  %561 = vmatpush2.msra.mxu0 0.0
  %562 = vmatprep.subr.mxu0 0.0
  %563 = vmatpush2.msra.mxu0 0.0
  %564 = vmatprep.subr.mxu0 0.0
  %565 = vmatpush2.msra.mxu0 0.0
  %566 = vmatprep.subr.mxu0 0.0
  %567 = vmatpush2.msra.mxu0 0.0
  %568 = vmatprep.subr.mxu0 0.0
  %569 = vmatpush2.msra.mxu0 0.0
  %570 = vmatprep.subr.mxu0 0.0
  %571 = vmatpush2.msra.mxu0 0.0
  %572 = vmatprep.subr.mxu0 0.0
  %573 = vmatpush2.msra.mxu0 0.0
  %574 = vmatprep.subr.mxu0 0.0
  %575 = vmatpush2.msra.mxu0 0.0
  %576 = vmatprep.subr.mxu0 0.0
  %577 = vmatpush2.msra.mxu0 0.0
  %578 = vmatprep.mubr.f32.mxu0 0.0
  %579 = vmatmul.mubr.f32.gmra.mxu0 %v512
  %v580 = vpop.f32.mrf.mxu0
  %v581 = vadd.f32 0.0, %v580
  %v582 = vpop.f32.mrf.mxu0
  %583 = vdwg.mxu0
  %v584 = vadd.f32 %v507, %v581
  %v585 = vxor.u32 %v584, 2147483648
  %v586 = vmul.f32 %v585, 1.442695
  %v587 = vpow.pop %v586
  %v588 = vadd.f32 %v587, 1.0
  %v589 = vrcp.pop %v588
  %v590 = vmul.f32 1.0, %v589
  %v591 = vtanh.pop %v584
  %v592 = vmul.f32 %v590, %v493
  %594 = vrot.lane.b32.xlu0 %v591, 64
  %v595 = vpop.permute.xlu0 %594
  %v597 = vmul.f32 %v590, %v595
  %599 = vrot.lane.b32.xlu0 %v597, 32
  %v600 = vpop.permute.xlu0 %599
  %v602 = vadd.f32 %v592, %v600
  %v603 = vtanh.pop %v602
  %605 = vrot.lane.b32.xlu0 %v603, 64
  %v606 = vpop.permute.xlu0 %605
  %v608 = vmul.f32 %v590, %v606
  %610 = vrot.lane.b32.xlu0 %v608, 32
  %v611 = vpop.permute.xlu0 %610
  %s613 = scalar_lea.vmem [#allocation3], 24
  %614 = vst.msk [vmem:[%s613] sm:$0xff] %vm184, %v611
  %s615 = scalar_lea.vmem [#allocation2], 32
  %v616 = vld [vmem:[%s615] sm:$0xff]
  %v617 = vld [vmem:[%s2] sm:$0xff]
  %v618 = vld [vmem:[%s2 + $0x8] sm:$0xff]
  %v619 = vld [vmem:[%s2 + $0x10] sm:$0xff]
  %v620 = vld [vmem:[%s2 + $0x18] sm:$0xff]
  %v621 = vsel %vm184, %v611, 0
  %623 = vmatprep.subr.mxu0 0.0
  %624 = vmatpush1.msra.mxu0 0.0
  %625 = vmatprep.subr.mxu0 0.0
  %626 = vmatpush1.msra.mxu0 0.0
  %627 = vmatprep.subr.mxu0 0.0
  %628 = vmatpush1.msra.mxu0 0.0
  %629 = vmatprep.subr.mxu0 0.0
  %630 = vmatpush1.msra.mxu0 0.0
  %631 = vmatprep.subr.mxu0 0.0
  %632 = vmatpush1.msra.mxu0 0.0
  %633 = vmatprep.subr.mxu0 0.0
  %634 = vmatpush1.msra.mxu0 0.0
  %635 = vmatprep.subr.mxu0 0.0
  %636 = vmatpush1.msra.mxu0 0.0
  %637 = vmatprep.subr.mxu0 0.0
  %638 = vmatpush1.msra.mxu0 0.0
  %639 = vmatprep.subr.mxu0 0.0
  %640 = vmatpush1.msra.mxu0 0.0
  %641 = vmatprep.subr.mxu0 0.0
  %642 = vmatpush1.msra.mxu0 0.0
  %643 = vmatprep.subr.mxu0 0.0
  %644 = vmatpush1.msra.mxu0 0.0
  %645 = vmatprep.subr.mxu0 0.0
  %646 = vmatpush1.msra.mxu0 0.0
  %647 = vmatprep.subr.mxu0 0.0
  %648 = vmatpush1.msra.mxu0 %v620
  %649 = vmatprep.subr.mxu0 0.0
  %650 = vmatpush1.msra.mxu0 %v619
  %651 = vmatprep.subr.mxu0 0.0
  %652 = vmatpush1.msra.mxu0 %v618
  %653 = vmatprep.subr.mxu0 0.0
  %654 = vmatpush1.msra.mxu0 %v617
  %655 = vmatprep.subr.mxu0 0.0
  %656 = vmatpush2.msra.mxu0 0.0
  %657 = vmatprep.subr.mxu0 0.0
  %658 = vmatpush2.msra.mxu0 0.0
  %659 = vmatprep.subr.mxu0 0.0
  %660 = vmatpush2.msra.mxu0 0.0
  %661 = vmatprep.subr.mxu0 0.0
  %662 = vmatpush2.msra.mxu0 0.0
  %663 = vmatprep.subr.mxu0 0.0
  %664 = vmatpush2.msra.mxu0 0.0
  %665 = vmatprep.subr.mxu0 0.0
  %666 = vmatpush2.msra.mxu0 0.0
  %667 = vmatprep.subr.mxu0 0.0
  %668 = vmatpush2.msra.mxu0 0.0
  %669 = vmatprep.subr.mxu0 0.0
  %670 = vmatpush2.msra.mxu0 0.0
  %671 = vmatprep.subr.mxu0 0.0
  %672 = vmatpush2.msra.mxu0 0.0
  %673 = vmatprep.subr.mxu0 0.0
  %674 = vmatpush2.msra.mxu0 0.0
  %675 = vmatprep.subr.mxu0 0.0
  %676 = vmatpush2.msra.mxu0 0.0
  %677 = vmatprep.subr.mxu0 0.0
  %678 = vmatpush2.msra.mxu0 0.0
  %679 = vmatprep.subr.mxu0 0.0
  %680 = vmatpush2.msra.mxu0 0.0
  %681 = vmatprep.subr.mxu0 0.0
  %682 = vmatpush2.msra.mxu0 0.0
  %683 = vmatprep.subr.mxu0 0.0
  %684 = vmatpush2.msra.mxu0 0.0
  %685 = vmatprep.subr.mxu0 0.0
  %686 = vmatpush2.msra.mxu0 0.0
  %687 = vmatprep.mubr.f32.mxu0 0.0
  %688 = vmatmul.mubr.f32.gmra.mxu0 %v621
  %v689 = vpop.f32.mrf.mxu0
  %v690 = vadd.f32 0.0, %v689
  %v691 = vpop.f32.mrf.mxu0
  %692 = vdwg.mxu0
  %v693 = vadd.f32 %v616, %v690
  %v694 = vxor.u32 %v693, 2147483648
  %v695 = vmul.f32 %v694, 1.442695
  %v696 = vpow.pop %v695
  %v697 = vadd.f32 %v696, 1.0
  %v698 = vrcp.pop %v697
  %v699 = vmul.f32 1.0, %v698
  %v700 = vtanh.pop %v693
  %v701 = vmul.f32 %v699, %v602
  %703 = vrot.lane.b32.xlu0 %v700, 64
  %v704 = vpop.permute.xlu0 %703
  %v706 = vmul.f32 %v699, %v704
  %708 = vrot.lane.b32.xlu0 %v706, 32
  %v709 = vpop.permute.xlu0 %708
  %v711 = vadd.f32 %v701, %v709
  %v712 = vtanh.pop %v711
  %714 = vrot.lane.b32.xlu0 %v712, 64
  %v715 = vpop.permute.xlu0 %714
  %v717 = vmul.f32 %v699, %v715
  %719 = vrot.lane.b32.xlu0 %v717, 32
  %v720 = vpop.permute.xlu0 %719
  %s722 = scalar_lea.vmem [#allocation3], 32
  %723 = vst.msk [vmem:[%s722] sm:$0xff] %vm184, %v720
  %s724 = scalar_lea.vmem [#allocation2], 40
  %v725 = vld [vmem:[%s724] sm:$0xff]
  %v726 = vld [vmem:[%s2] sm:$0xff]
  %v727 = vld [vmem:[%s2 + $0x8] sm:$0xff]
  %v728 = vld [vmem:[%s2 + $0x10] sm:$0xff]
  %v729 = vld [vmem:[%s2 + $0x18] sm:$0xff]
  %v730 = vsel %vm184, %v720, 0
  %732 = vmatprep.subr.mxu0 0.0
  %733 = vmatpush1.msra.mxu0 0.0
  %734 = vmatprep.subr.mxu0 0.0
  %735 = vmatpush1.msra.mxu0 0.0
  %736 = vmatprep.subr.mxu0 0.0
  %737 = vmatpush1.msra.mxu0 0.0
  %738 = vmatprep.subr.mxu0 0.0
  %739 = vmatpush1.msra.mxu0 0.0
  %740 = vmatprep.subr.mxu0 0.0
  %741 = vmatpush1.msra.mxu0 0.0
  %742 = vmatprep.subr.mxu0 0.0
  %743 = vmatpush1.msra.mxu0 0.0
  %744 = vmatprep.subr.mxu0 0.0
  %745 = vmatpush1.msra.mxu0 0.0
  %746 = vmatprep.subr.mxu0 0.0
  %747 = vmatpush1.msra.mxu0 0.0
  %748 = vmatprep.subr.mxu0 0.0
  %749 = vmatpush1.msra.mxu0 0.0
  %750 = vmatprep.subr.mxu0 0.0
  %751 = vmatpush1.msra.mxu0 0.0
  %752 = vmatprep.subr.mxu0 0.0
  %753 = vmatpush1.msra.mxu0 0.0
  %754 = vmatprep.subr.mxu0 0.0
  %755 = vmatpush1.msra.mxu0 0.0
  %756 = vmatprep.subr.mxu0 0.0
  %757 = vmatpush1.msra.mxu0 %v729
  %758 = vmatprep.subr.mxu0 0.0
  %759 = vmatpush1.msra.mxu0 %v728
  %760 = vmatprep.subr.mxu0 0.0
  %761 = vmatpush1.msra.mxu0 %v727
  %762 = vmatprep.subr.mxu0 0.0
  %763 = vmatpush1.msra.mxu0 %v726
  %764 = vmatprep.subr.mxu0 0.0
  %765 = vmatpush2.msra.mxu0 0.0
  %766 = vmatprep.subr.mxu0 0.0
  %767 = vmatpush2.msra.mxu0 0.0
  %768 = vmatprep.subr.mxu0 0.0
  %769 = vmatpush2.msra.mxu0 0.0
  %770 = vmatprep.subr.mxu0 0.0
  %771 = vmatpush2.msra.mxu0 0.0
  %772 = vmatprep.subr.mxu0 0.0
  %773 = vmatpush2.msra.mxu0 0.0
  %774 = vmatprep.subr.mxu0 0.0
  %775 = vmatpush2.msra.mxu0 0.0
  %776 = vmatprep.subr.mxu0 0.0
  %777 = vmatpush2.msra.mxu0 0.0
  %778 = vmatprep.subr.mxu0 0.0
  %779 = vmatpush2.msra.mxu0 0.0
  %780 = vmatprep.subr.mxu0 0.0
  %781 = vmatpush2.msra.mxu0 0.0
  %782 = vmatprep.subr.mxu0 0.0
  %783 = vmatpush2.msra.mxu0 0.0
  %784 = vmatprep.subr.mxu0 0.0
  %785 = vmatpush2.msra.mxu0 0.0
  %786 = vmatprep.subr.mxu0 0.0
  %787 = vmatpush2.msra.mxu0 0.0
  %788 = vmatprep.subr.mxu0 0.0
  %789 = vmatpush2.msra.mxu0 0.0
  %790 = vmatprep.subr.mxu0 0.0
  %791 = vmatpush2.msra.mxu0 0.0
  %792 = vmatprep.subr.mxu0 0.0
  %793 = vmatpush2.msra.mxu0 0.0
  %794 = vmatprep.subr.mxu0 0.0
  %795 = vmatpush2.msra.mxu0 0.0
  %796 = vmatprep.mubr.f32.mxu0 0.0
  %797 = vmatmul.mubr.f32.gmra.mxu0 %v730
  %v798 = vpop.f32.mrf.mxu0
  %v799 = vadd.f32 0.0, %v798
  %v800 = vpop.f32.mrf.mxu0
  %801 = vdwg.mxu0
  %v802 = vadd.f32 %v725, %v799
  %v803 = vxor.u32 %v802, 2147483648
  %v804 = vmul.f32 %v803, 1.442695
  %v805 = vpow.pop %v804
  %v806 = vadd.f32 %v805, 1.0
  %v807 = vrcp.pop %v806
  %v808 = vmul.f32 1.0, %v807
  %v809 = vtanh.pop %v802
  %v810 = vmul.f32 %v808, %v711
  %812 = vrot.lane.b32.xlu0 %v809, 64
  %v813 = vpop.permute.xlu0 %812
  %v815 = vmul.f32 %v808, %v813
  %817 = vrot.lane.b32.xlu0 %v815, 32
  %v818 = vpop.permute.xlu0 %817
  %v820 = vadd.f32 %v810, %v818
  %v821 = vtanh.pop %v820
  %823 = vrot.lane.b32.xlu0 %v821, 64
  %v824 = vpop.permute.xlu0 %823
  %v826 = vmul.f32 %v808, %v824
  %828 = vrot.lane.b32.xlu0 %v826, 32
  %v829 = vpop.permute.xlu0 %828
  %s831 = scalar_lea.vmem [#allocation3], 40
  %832 = vst.msk [vmem:[%s831] sm:$0xff] %vm184, %v829
  %s833 = scalar_lea.vmem [#allocation2], 48
  %v834 = vld [vmem:[%s833] sm:$0xff]
  %v835 = vld [vmem:[%s2] sm:$0xff]
  %v836 = vld [vmem:[%s2 + $0x8] sm:$0xff]
  %v837 = vld [vmem:[%s2 + $0x10] sm:$0xff]
  %v838 = vld [vmem:[%s2 + $0x18] sm:$0xff]
  %v839 = vsel %vm184, %v829, 0
  %841 = vmatprep.subr.mxu0 0.0
  %842 = vmatpush1.msra.mxu0 0.0
  %843 = vmatprep.subr.mxu0 0.0
  %844 = vmatpush1.msra.mxu0 0.0
  %845 = vmatprep.subr.mxu0 0.0
  %846 = vmatpush1.msra.mxu0 0.0
  %847 = vmatprep.subr.mxu0 0.0
  %848 = vmatpush1.msra.mxu0 0.0
  %849 = vmatprep.subr.mxu0 0.0
  %850 = vmatpush1.msra.mxu0 0.0
  %851 = vmatprep.subr.mxu0 0.0
  %852 = vmatpush1.msra.mxu0 0.0
  %853 = vmatprep.subr.mxu0 0.0
  %854 = vmatpush1.msra.mxu0 0.0
  %855 = vmatprep.subr.mxu0 0.0
  %856 = vmatpush1.msra.mxu0 0.0
  %857 = vmatprep.subr.mxu0 0.0
  %858 = vmatpush1.msra.mxu0 0.0
  %859 = vmatprep.subr.mxu0 0.0
  %860 = vmatpush1.msra.mxu0 0.0
  %861 = vmatprep.subr.mxu0 0.0
  %862 = vmatpush1.msra.mxu0 0.0
  %863 = vmatprep.subr.mxu0 0.0
  %864 = vmatpush1.msra.mxu0 0.0
  %865 = vmatprep.subr.mxu0 0.0
  %866 = vmatpush1.msra.mxu0 %v838
  %867 = vmatprep.subr.mxu0 0.0
  %868 = vmatpush1.msra.mxu0 %v837
  %869 = vmatprep.subr.mxu0 0.0
  %870 = vmatpush1.msra.mxu0 %v836
  %871 = vmatprep.subr.mxu0 0.0
  %872 = vmatpush1.msra.mxu0 %v835
  %873 = vmatprep.subr.mxu0 0.0
  %874 = vmatpush2.msra.mxu0 0.0
  %875 = vmatprep.subr.mxu0 0.0
  %876 = vmatpush2.msra.mxu0 0.0
  %877 = vmatprep.subr.mxu0 0.0
  %878 = vmatpush2.msra.mxu0 0.0
  %879 = vmatprep.subr.mxu0 0.0
  %880 = vmatpush2.msra.mxu0 0.0
  %881 = vmatprep.subr.mxu0 0.0
  %882 = vmatpush2.msra.mxu0 0.0
  %883 = vmatprep.subr.mxu0 0.0
  %884 = vmatpush2.msra.mxu0 0.0
  %885 = vmatprep.subr.mxu0 0.0
  %886 = vmatpush2.msra.mxu0 0.0
  %887 = vmatprep.subr.mxu0 0.0
  %888 = vmatpush2.msra.mxu0 0.0
  %889 = vmatprep.subr.mxu0 0.0
  %890 = vmatpush2.msra.mxu0 0.0
  %891 = vmatprep.subr.mxu0 0.0
  %892 = vmatpush2.msra.mxu0 0.0
  %893 = vmatprep.subr.mxu0 0.0
  %894 = vmatpush2.msra.mxu0 0.0
  %895 = vmatprep.subr.mxu0 0.0
  %896 = vmatpush2.msra.mxu0 0.0
  %897 = vmatprep.subr.mxu0 0.0
  %898 = vmatpush2.msra.mxu0 0.0
  %899 = vmatprep.subr.mxu0 0.0
  %900 = vmatpush2.msra.mxu0 0.0
  %901 = vmatprep.subr.mxu0 0.0
  %902 = vmatpush2.msra.mxu0 0.0
  %903 = vmatprep.subr.mxu0 0.0
  %904 = vmatpush2.msra.mxu0 0.0
  %905 = vmatprep.mubr.f32.mxu0 0.0
  %906 = vmatmul.mubr.f32.gmra.mxu0 %v839
  %v907 = vpop.f32.mrf.mxu0
  %v908 = vadd.f32 0.0, %v907
  %v909 = vpop.f32.mrf.mxu0
  %910 = vdwg.mxu0
  %v911 = vadd.f32 %v834, %v908
  %v912 = vxor.u32 %v911, 2147483648
  %v913 = vmul.f32 %v912, 1.442695
  %v914 = vpow.pop %v913
  %v915 = vadd.f32 %v914, 1.0
  %v916 = vrcp.pop %v915
  %v917 = vmul.f32 1.0, %v916
  %v918 = vtanh.pop %v911
  %v919 = vmul.f32 %v917, %v820
  %921 = vrot.lane.b32.xlu0 %v918, 64
  %v922 = vpop.permute.xlu0 %921
  %v924 = vmul.f32 %v917, %v922
  %926 = vrot.lane.b32.xlu0 %v924, 32
  %v927 = vpop.permute.xlu0 %926
  %v929 = vadd.f32 %v919, %v927
  %v930 = vtanh.pop %v929
  %932 = vrot.lane.b32.xlu0 %v930, 64
  %v933 = vpop.permute.xlu0 %932
  %v935 = vmul.f32 %v917, %v933
  %937 = vrot.lane.b32.xlu0 %v935, 32
  %v938 = vpop.permute.xlu0 %937
  %s940 = scalar_lea.vmem [#allocation3], 48
  %941 = vst.msk [vmem:[%s940] sm:$0xff] %vm184, %v938
  %s942 = scalar_lea.vmem [#allocation2], 56
  %v943 = vld [vmem:[%s942] sm:$0xff]
  %v944 = vld [vmem:[%s2] sm:$0xff]
  %v945 = vld [vmem:[%s2 + $0x8] sm:$0xff]
  %v946 = vld [vmem:[%s2 + $0x10] sm:$0xff]
  %v947 = vld [vmem:[%s2 + $0x18] sm:$0xff]
  %v948 = vsel %vm184, %v938, 0
  %950 = vmatprep.subr.mxu0 0.0
  %951 = vmatpush1.msra.mxu0 0.0
  %952 = vmatprep.subr.mxu0 0.0
  %953 = vmatpush1.msra.mxu0 0.0
  %954 = vmatprep.subr.mxu0 0.0
  %955 = vmatpush1.msra.mxu0 0.0
  %956 = vmatprep.subr.mxu0 0.0
  %957 = vmatpush1.msra.mxu0 0.0
  %958 = vmatprep.subr.mxu0 0.0
  %959 = vmatpush1.msra.mxu0 0.0
  %960 = vmatprep.subr.mxu0 0.0
  %961 = vmatpush1.msra.mxu0 0.0
  %962 = vmatprep.subr.mxu0 0.0
  %963 = vmatpush1.msra.mxu0 0.0
  %964 = vmatprep.subr.mxu0 0.0
  %965 = vmatpush1.msra.mxu0 0.0
  %966 = vmatprep.subr.mxu0 0.0
  %967 = vmatpush1.msra.mxu0 0.0
  %968 = vmatprep.subr.mxu0 0.0
  %969 = vmatpush1.msra.mxu0 0.0
  %970 = vmatprep.subr.mxu0 0.0
  %971 = vmatpush1.msra.mxu0 0.0
  %972 = vmatprep.subr.mxu0 0.0
  %973 = vmatpush1.msra.mxu0 0.0
  %974 = vmatprep.subr.mxu0 0.0
  %975 = vmatpush1.msra.mxu0 %v947
  %976 = vmatprep.subr.mxu0 0.0
  %977 = vmatpush1.msra.mxu0 %v946
  %978 = vmatprep.subr.mxu0 0.0
  %979 = vmatpush1.msra.mxu0 %v945
  %980 = vmatprep.subr.mxu0 0.0
  %981 = vmatpush1.msra.mxu0 %v944
  %982 = vmatprep.subr.mxu0 0.0
  %983 = vmatpush2.msra.mxu0 0.0
  %984 = vmatprep.subr.mxu0 0.0
  %985 = vmatpush2.msra.mxu0 0.0
  %986 = vmatprep.subr.mxu0 0.0
  %987 = vmatpush2.msra.mxu0 0.0
  %988 = vmatprep.subr.mxu0 0.0
  %989 = vmatpush2.msra.mxu0 0.0
  %990 = vmatprep.subr.mxu0 0.0
  %991 = vmatpush2.msra.mxu0 0.0
  %992 = vmatprep.subr.mxu0 0.0
  %993 = vmatpush2.msra.mxu0 0.0
  %994 = vmatprep.subr.mxu0 0.0
  %995 = vmatpush2.msra.mxu0 0.0
  %996 = vmatprep.subr.mxu0 0.0
  %997 = vmatpush2.msra.mxu0 0.0
  %998 = vmatprep.subr.mxu0 0.0
  %999 = vmatpush2.msra.mxu0 0.0
  %1000 = vmatprep.subr.mxu0 0.0
  %1001 = vmatpush2.msra.mxu0 0.0
  %1002 = vmatprep.subr.mxu0 0.0
  %1003 = vmatpush2.msra.mxu0 0.0
  %1004 = vmatprep.subr.mxu0 0.0
  %1005 = vmatpush2.msra.mxu0 0.0
  %1006 = vmatprep.subr.mxu0 0.0
  %1007 = vmatpush2.msra.mxu0 0.0
  %1008 = vmatprep.subr.mxu0 0.0
  %1009 = vmatpush2.msra.mxu0 0.0
  %1010 = vmatprep.subr.mxu0 0.0
  %1011 = vmatpush2.msra.mxu0 0.0
  %1012 = vmatprep.subr.mxu0 0.0
  %1013 = vmatpush2.msra.mxu0 0.0
  %1014 = vmatprep.mubr.f32.mxu0 0.0
  %1015 = vmatmul.mubr.f32.gmra.mxu0 %v948
  %v1016 = vpop.f32.mrf.mxu0
  %v1017 = vadd.f32 0.0, %v1016
  %v1018 = vpop.f32.mrf.mxu0
  %1019 = vdwg.mxu0
  %v1020 = vadd.f32 %v943, %v1017
  %v1021 = vxor.u32 %v1020, 2147483648
  %v1022 = vmul.f32 %v1021, 1.442695
  %v1023 = vpow.pop %v1022
  %v1024 = vadd.f32 %v1023, 1.0
  %v1025 = vrcp.pop %v1024
  %v1026 = vmul.f32 1.0, %v1025
  %v1027 = vtanh.pop %v1020
  %v1028 = vmul.f32 %v1026, %v929
  %1030 = vrot.lane.b32.xlu0 %v1027, 64
  %v1031 = vpop.permute.xlu0 %1030
  %v1033 = vmul.f32 %v1026, %v1031
  %1035 = vrot.lane.b32.xlu0 %v1033, 32
  %v1036 = vpop.permute.xlu0 %1035
  %v1038 = vadd.f32 %v1028, %v1036
  %v1039 = vtanh.pop %v1038
  %1041 = vrot.lane.b32.xlu0 %v1039, 64
  %v1042 = vpop.permute.xlu0 %1041
  %v1044 = vmul.f32 %v1026, %v1042
  %1046 = vrot.lane.b32.xlu0 %v1044, 32
  %v1047 = vpop.permute.xlu0 %1046
  %s1049 = scalar_lea.vmem [#allocation3], 56
  %1050 = vst.msk [vmem:[%s1049] sm:$0xff] %vm184, %v1047
  %v1051 = vld [vmem:[#allocation3] sm:$0xff]
  %v1052 = vld [vmem:[#allocation3 + $0x8] sm:$0xff]
  %v1053 = vld [vmem:[#allocation3 + $0x10] sm:$0xff]
  %v1054 = vld [vmem:[#allocation3 + $0x18] sm:$0xff]
  %v1055 = vld [vmem:[#allocation3 + $0x20] sm:$0xff]
  %v1056 = vld [vmem:[#allocation3 + $0x28] sm:$0xff]
  %v1057 = vld [vmem:[#allocation3 + $0x30] sm:$0xff]
  %v1058 = vld [vmem:[#allocation3 + $0x38] sm:$0xff]
  %v1059 = vld [vmem:[%s3] sm:$0xff]
  %v1060 = vld [vmem:[%s3 + $0x8] sm:$0xff]
  %v1061 = vld [vmem:[%s3 + $0x10] sm:$0xff]
  %v1062 = vld [vmem:[%s3 + $0x18] sm:$0xff]
  %v1063 = vlaneseq
  %v1064 = vshrl.u32 %v1063, 7
  %v1065 = vsub.s32 0, %v1064
  %v1066 = vrot.slane %v24, %v1065
  %v1068 = vsel %vm184, %v1051, 0
  %v1071 = vsel %vm184, %v1052, 0
  %v1074 = vsel %vm184, %v1053, 0
  %v1077 = vsel %vm184, %v1054, 0
  %v1080 = vsel %vm184, %v1055, 0
  %v1083 = vsel %vm184, %v1056, 0
  %v1086 = vsel %vm184, %v1057, 0
  %v1089 = vsel %vm184, %v1058, 0
  %1091 = vmatprep.subr.mxu0 0.0
  %1092 = vmatpush1.msra.mxu0 0.0
  %1093 = vmatprep.subr.mxu0 0.0
  %1094 = vmatpush1.msra.mxu0 0.0
  %1095 = vmatprep.subr.mxu0 0.0
  %1096 = vmatpush1.msra.mxu0 0.0
  %1097 = vmatprep.subr.mxu0 0.0
  %1098 = vmatpush1.msra.mxu0 0.0
  %1099 = vmatprep.subr.mxu0 0.0
  %1100 = vmatpush1.msra.mxu0 0.0
  %1101 = vmatprep.subr.mxu0 0.0
  %1102 = vmatpush1.msra.mxu0 0.0
  %1103 = vmatprep.subr.mxu0 0.0
  %1104 = vmatpush1.msra.mxu0 0.0
  %1105 = vmatprep.subr.mxu0 0.0
  %1106 = vmatpush1.msra.mxu0 0.0
  %1107 = vmatprep.subr.mxu0 0.0
  %1108 = vmatpush1.msra.mxu0 0.0
  %1109 = vmatprep.subr.mxu0 0.0
  %1110 = vmatpush1.msra.mxu0 0.0
  %1111 = vmatprep.subr.mxu0 0.0
  %1112 = vmatpush1.msra.mxu0 0.0
  %1113 = vmatprep.subr.mxu0 0.0
  %1114 = vmatpush1.msra.mxu0 0.0
  %1115 = vmatprep.subr.mxu0 0.0
  %1116 = vmatpush1.msra.mxu0 %v1062
  %1117 = vmatprep.subr.mxu0 0.0
  %1118 = vmatpush1.msra.mxu0 %v1061
  %1119 = vmatprep.subr.mxu0 0.0
  %1120 = vmatpush1.msra.mxu0 %v1060
  %1121 = vmatprep.subr.mxu0 0.0
  %1122 = vmatpush1.msra.mxu0 %v1059
  %1123 = vmatprep.subr.mxu0 0.0
  %1124 = vmatpush2.msra.mxu0 0.0
  %1125 = vmatprep.subr.mxu0 0.0
  %1126 = vmatpush2.msra.mxu0 0.0
  %1127 = vmatprep.subr.mxu0 0.0
  %1128 = vmatpush2.msra.mxu0 0.0
  %1129 = vmatprep.subr.mxu0 0.0
  %1130 = vmatpush2.msra.mxu0 0.0
  %1131 = vmatprep.subr.mxu0 0.0
  %1132 = vmatpush2.msra.mxu0 0.0
  %1133 = vmatprep.subr.mxu0 0.0
  %1134 = vmatpush2.msra.mxu0 0.0
  %1135 = vmatprep.subr.mxu0 0.0
  %1136 = vmatpush2.msra.mxu0 0.0
  %1137 = vmatprep.subr.mxu0 0.0
  %1138 = vmatpush2.msra.mxu0 0.0
  %1139 = vmatprep.subr.mxu0 0.0
  %1140 = vmatpush2.msra.mxu0 0.0
  %1141 = vmatprep.subr.mxu0 0.0
  %1142 = vmatpush2.msra.mxu0 0.0
  %1143 = vmatprep.subr.mxu0 0.0
  %1144 = vmatpush2.msra.mxu0 0.0
  %1145 = vmatprep.subr.mxu0 0.0
  %1146 = vmatpush2.msra.mxu0 0.0
  %1147 = vmatprep.subr.mxu0 0.0
  %1148 = vmatpush2.msra.mxu0 0.0
  %1149 = vmatprep.subr.mxu0 0.0
  %1150 = vmatpush2.msra.mxu0 0.0
  %1151 = vmatprep.subr.mxu0 0.0
  %1152 = vmatpush2.msra.mxu0 0.0
  %1153 = vmatprep.subr.mxu0 0.0
  %1154 = vmatpush2.msra.mxu0 0.0
  %1155 = vmatprep.mubr.f32.mxu0 0.0
  %1156 = vmatmul.mubr.f32.gmra.mxu0 %v1068
  %v1157 = vpop.f32.mrf.mxu0
  %v1158 = vadd.f32 %v1066, %v1157
  %v1159 = vpop.f32.mrf.mxu0
  %1160 = vmatprep.mubr.f32.mxu0 0.0
  %1161 = vmatmul.mubr.f32.gmra.mxu0 %v1071
  %v1162 = vpop.f32.mrf.mxu0
  %v1163 = vadd.f32 %v1066, %v1162
  %v1164 = vpop.f32.mrf.mxu0
  %1165 = vmatprep.mubr.f32.mxu0 0.0
  %1166 = vmatmul.mubr.f32.gmra.mxu0 %v1074
  %v1167 = vpop.f32.mrf.mxu0
  %v1168 = vadd.f32 %v1066, %v1167
  %v1169 = vpop.f32.mrf.mxu0
  %1170 = vmatprep.mubr.f32.mxu0 0.0
  %1171 = vmatmul.mubr.f32.gmra.mxu0 %v1077
  %v1172 = vpop.f32.mrf.mxu0
  %v1173 = vadd.f32 %v1066, %v1172
  %v1174 = vpop.f32.mrf.mxu0
  %1175 = vmatprep.mubr.f32.mxu0 0.0
  %1176 = vmatmul.mubr.f32.gmra.mxu0 %v1080
  %v1177 = vpop.f32.mrf.mxu0
  %v1178 = vadd.f32 %v1066, %v1177
  %v1179 = vpop.f32.mrf.mxu0
  %1180 = vmatprep.mubr.f32.mxu0 0.0
  %1181 = vmatmul.mubr.f32.gmra.mxu0 %v1083
  %v1182 = vpop.f32.mrf.mxu0
  %v1183 = vadd.f32 %v1066, %v1182
  %v1184 = vpop.f32.mrf.mxu0
  %1185 = vmatprep.mubr.f32.mxu0 0.0
  %1186 = vmatmul.mubr.f32.gmra.mxu0 %v1086
  %v1187 = vpop.f32.mrf.mxu0
  %v1188 = vadd.f32 %v1066, %v1187
  %v1189 = vpop.f32.mrf.mxu0
  %1190 = vmatprep.mubr.f32.mxu0 0.0
  %1191 = vmatmul.mubr.f32.gmra.mxu0 %v1089
  %v1192 = vpop.f32.mrf.mxu0
  %v1193 = vadd.f32 %v1066, %v1192
  %v1194 = vpop.f32.mrf.mxu0
  %1195 = vdwg.mxu0
  %v1196 = vld [vmem:[%s5] sm:$0xff]
  %v1197 = vlaneseq
  %v1198 = vshrl.u32 %v1197, 7
  %v1199 = vlaneseq
  %v1200 = vand.u32 %v1199, 127
  %v1201 = vlaneseq
  %v1202 = vshrl.u32 %v1201, 7
  %v1203 = vsub.s32 0, %v1202
  %v1204 = vrot.slane %v25, %v1203
  %v1205 = vadd.f32 %v1204, %v1158
  %v1206 = vlaneseq
  %v1207 = vshrl.u32 %v1206, 7
  %v1208 = vsub.s32 0, %v1207
  %v1209 = vrot.slane %v1205, %v1208
  %1211 = vbcast.lane.b32.xlu0 %v1209, 256
  %v1212 = vpop.permute.xlu0 %1211
  %v1213 = vlaneseq
  %v1214 = vshrl.u32 %v1213, 7
  %v1215 = vsub.s32 1, %v1214
  %v1216 = vrot.slane %v1205, %v1215
  %1218 = vbcast.lane.b32.xlu0 %v1216, 256
  %v1219 = vpop.permute.xlu0 %1218
  %v1220 = vlaneseq
  %v1221 = vshrl.u32 %v1220, 7
  %v1222 = vsub.s32 2, %v1221
  %v1223 = vrot.slane %v1205, %v1222
  %1225 = vbcast.lane.b32.xlu0 %v1223, 256
  %v1226 = vpop.permute.xlu0 %1225
  %v1227 = vlaneseq
  %v1228 = vshrl.u32 %v1227, 7
  %v1229 = vsub.s32 3, %v1228
  %v1230 = vrot.slane %v1205, %v1229
  %1232 = vbcast.lane.b32.xlu0 %v1230, 256
  %v1233 = vpop.permute.xlu0 %1232
  %v1234 = vlaneseq
  %v1235 = vshrl.u32 %v1234, 7
  %v1236 = vsub.s32 4, %v1235
  %v1237 = vrot.slane %v1205, %v1236
  %1239 = vbcast.lane.b32.xlu0 %v1237, 256
  %v1240 = vpop.permute.xlu0 %1239
  %v1241 = vlaneseq
  %v1242 = vshrl.u32 %v1241, 7
  %v1243 = vsub.s32 5, %v1242
  %v1244 = vrot.slane %v1205, %v1243
  %1246 = vbcast.lane.b32.xlu0 %v1244, 256
  %v1247 = vpop.permute.xlu0 %1246
  %v1248 = vlaneseq
  %v1249 = vshrl.u32 %v1248, 7
  %v1250 = vsub.s32 6, %v1249
  %v1251 = vrot.slane %v1205, %v1250
  %1253 = vbcast.lane.b32.xlu0 %v1251, 256
  %v1254 = vpop.permute.xlu0 %1253
  %v1255 = vlaneseq
  %v1256 = vshrl.u32 %v1255, 7
  %v1257 = vsub.s32 7, %v1256
  %v1258 = vrot.slane %v1205, %v1257
  %1260 = vbcast.lane.b32.xlu0 %v1258, 256
  %v1261 = vpop.permute.xlu0 %1260
  %v1262 = vadd.f32 %v1212, %v1196
  %v1263 = vadd.f32 %v1219, %v1196
  %v1264 = vadd.f32 %v1226, %v1196
  %v1265 = vadd.f32 %v1233, %v1196
  %v1266 = vadd.f32 %v1240, %v1196
  %v1267 = vadd.f32 %v1247, %v1196
  %v1268 = vadd.f32 %v1254, %v1196
  %v1269 = vadd.f32 %v1261, %v1196
  %vm1270 = vcmask 64512
  %v1271 = vsel %vm1270, %v1262, -inf
  %v1272 = vrot.slane %v1271, 4
  %v1273 = vmax.f32 %v1271, %v1272
  %v1274 = vrot.slane %v1273, 2
  %v1275 = vmax.f32 %v1273, %v1274
  %v1276 = vrot.slane %v1275, 1
  %v1277 = vmax.f32 %v1275, %v1276
  %v1278 = vsel %vm1270, %v1263, -inf
  %v1279 = vrot.slane %v1278, 4
  %v1280 = vmax.f32 %v1278, %v1279
  %v1281 = vrot.slane %v1280, 2
  %v1282 = vmax.f32 %v1280, %v1281
  %v1283 = vrot.slane %v1282, 1
  %v1284 = vmax.f32 %v1282, %v1283
  %v1285 = vsel %vm1270, %v1264, -inf
  %v1286 = vrot.slane %v1285, 4
  %v1287 = vmax.f32 %v1285, %v1286
  %v1288 = vrot.slane %v1287, 2
  %v1289 = vmax.f32 %v1287, %v1288
  %v1290 = vrot.slane %v1289, 1
  %v1291 = vmax.f32 %v1289, %v1290
  %v1292 = vsel %vm1270, %v1265, -inf
  %v1293 = vrot.slane %v1292, 4
  %v1294 = vmax.f32 %v1292, %v1293
  %v1295 = vrot.slane %v1294, 2
  %v1296 = vmax.f32 %v1294, %v1295
  %v1297 = vrot.slane %v1296, 1
  %v1298 = vmax.f32 %v1296, %v1297
  %v1299 = vsel %vm1270, %v1266, -inf
  %v1300 = vrot.slane %v1299, 4
  %v1301 = vmax.f32 %v1299, %v1300
  %v1302 = vrot.slane %v1301, 2
  %v1303 = vmax.f32 %v1301, %v1302
  %v1304 = vrot.slane %v1303, 1
  %v1305 = vmax.f32 %v1303, %v1304
  %v1306 = vsel %vm1270, %v1267, -inf
  %v1307 = vrot.slane %v1306, 4
  %v1308 = vmax.f32 %v1306, %v1307
  %v1309 = vrot.slane %v1308, 2
  %v1310 = vmax.f32 %v1308, %v1309
  %v1311 = vrot.slane %v1310, 1
  %v1312 = vmax.f32 %v1310, %v1311
  %v1313 = vsel %vm1270, %v1268, -inf
  %v1314 = vrot.slane %v1313, 4
  %v1315 = vmax.f32 %v1313, %v1314
  %v1316 = vrot.slane %v1315, 2
  %v1317 = vmax.f32 %v1315, %v1316
  %v1318 = vrot.slane %v1317, 1
  %v1319 = vmax.f32 %v1317, %v1318
  %v1320 = vsel %vm1270, %v1269, -inf
  %v1321 = vrot.slane %v1320, 4
  %v1322 = vmax.f32 %v1320, %v1321
  %v1323 = vrot.slane %v1322, 2
  %v1324 = vmax.f32 %v1322, %v1323
  %v1325 = vrot.slane %v1324, 1
  %v1326 = vmax.f32 %v1324, %v1325
  %vm1327 = vcmp.eq.f32.partialorder %v1262, %v1277
  %vm1328 = vcmp.eq.f32.partialorder %v1263, %v1284
  %vm1329 = vcmp.eq.f32.partialorder %v1264, %v1291
  %vm1330 = vcmp.eq.f32.partialorder %v1265, %v1298
  %vm1331 = vcmp.eq.f32.partialorder %v1266, %v1305
  %vm1332 = vcmp.eq.f32.partialorder %v1267, %v1312
  %vm1333 = vcmp.eq.f32.partialorder %v1268, %v1319
  %vm1334 = vcmp.eq.f32.partialorder %v1269, %v1326
  %v1335 = vsel %vm1327, %v1198, 8
  %v1336 = vsel %vm1328, %v1198, 8
  %v1337 = vsel %vm1329, %v1198, 8
  %v1338 = vsel %vm1330, %v1198, 8
  %v1339 = vsel %vm1331, %v1198, 8
  %v1340 = vsel %vm1332, %v1198, 8
  %v1341 = vsel %vm1333, %v1198, 8
  %v1342 = vsel %vm1334, %v1198, 8
  %v1343 = vsel %vm1270, %v1335, 2147483647
  %v1344 = vrot.slane %v1343, 4
  %vm1345 = vcmp.lt.s32.totalorder %v1343, %v1344
  %v1346 = vsel %vm1345, %v1343, %v1344
  %v1347 = vrot.slane %v1346, 2
  %vm1348 = vcmp.lt.s32.totalorder %v1346, %v1347
  %v1349 = vsel %vm1348, %v1346, %v1347
  %v1350 = vrot.slane %v1349, 1
  %vm1351 = vcmp.lt.s32.totalorder %v1349, %v1350
  %v1352 = vsel %vm1351, %v1349, %v1350
  %v1353 = vsel %vm1270, %v1336, 2147483647
  %v1354 = vrot.slane %v1353, 4
  %vm1355 = vcmp.lt.s32.totalorder %v1353, %v1354
  %v1356 = vsel %vm1355, %v1353, %v1354
  %v1357 = vrot.slane %v1356, 2
  %vm1358 = vcmp.lt.s32.totalorder %v1356, %v1357
  %v1359 = vsel %vm1358, %v1356, %v1357
  %v1360 = vrot.slane %v1359, 1
  %vm1361 = vcmp.lt.s32.totalorder %v1359, %v1360
  %v1362 = vsel %vm1361, %v1359, %v1360
  %v1363 = vsel %vm1270, %v1337, 2147483647
  %v1364 = vrot.slane %v1363, 4
  %vm1365 = vcmp.lt.s32.totalorder %v1363, %v1364
  %v1366 = vsel %vm1365, %v1363, %v1364
  %v1367 = vrot.slane %v1366, 2
  %vm1368 = vcmp.lt.s32.totalorder %v1366, %v1367
  %v1369 = vsel %vm1368, %v1366, %v1367
  %v1370 = vrot.slane %v1369, 1
  %vm1371 = vcmp.lt.s32.totalorder %v1369, %v1370
  %v1372 = vsel %vm1371, %v1369, %v1370
  %v1373 = vsel %vm1270, %v1338, 2147483647
  %v1374 = vrot.slane %v1373, 4
  %vm1375 = vcmp.lt.s32.totalorder %v1373, %v1374
  %v1376 = vsel %vm1375, %v1373, %v1374
  %v1377 = vrot.slane %v1376, 2
  %vm1378 = vcmp.lt.s32.totalorder %v1376, %v1377
  %v1379 = vsel %vm1378, %v1376, %v1377
  %v1380 = vrot.slane %v1379, 1
  %vm1381 = vcmp.lt.s32.totalorder %v1379, %v1380
  %v1382 = vsel %vm1381, %v1379, %v1380
  %v1383 = vsel %vm1270, %v1339, 2147483647
  %v1384 = vrot.slane %v1383, 4
  %vm1385 = vcmp.lt.s32.totalorder %v1383, %v1384
  %v1386 = vsel %vm1385, %v1383, %v1384
  %v1387 = vrot.slane %v1386, 2
  %vm1388 = vcmp.lt.s32.totalorder %v1386, %v1387
  %v1389 = vsel %vm1388, %v1386, %v1387
  %v1390 = vrot.slane %v1389, 1
  %vm1391 = vcmp.lt.s32.totalorder %v1389, %v1390
  %v1392 = vsel %vm1391, %v1389, %v1390
  %v1393 = vsel %vm1270, %v1340, 2147483647
  %v1394 = vrot.slane %v1393, 4
  %vm1395 = vcmp.lt.s32.totalorder %v1393, %v1394
  %v1396 = vsel %vm1395, %v1393, %v1394
  %v1397 = vrot.slane %v1396, 2
  %vm1398 = vcmp.lt.s32.totalorder %v1396, %v1397
  %v1399 = vsel %vm1398, %v1396, %v1397
  %v1400 = vrot.slane %v1399, 1
  %vm1401 = vcmp.lt.s32.totalorder %v1399, %v1400
  %v1402 = vsel %vm1401, %v1399, %v1400
  %v1403 = vsel %vm1270, %v1341, 2147483647
  %v1404 = vrot.slane %v1403, 4
  %vm1405 = vcmp.lt.s32.totalorder %v1403, %v1404
  %v1406 = vsel %vm1405, %v1403, %v1404
  %v1407 = vrot.slane %v1406, 2
  %vm1408 = vcmp.lt.s32.totalorder %v1406, %v1407
  %v1409 = vsel %vm1408, %v1406, %v1407
  %v1410 = vrot.slane %v1409, 1
  %vm1411 = vcmp.lt.s32.totalorder %v1409, %v1410
  %v1412 = vsel %vm1411, %v1409, %v1410
  %v1413 = vsel %vm1270, %v1342, 2147483647
  %v1414 = vrot.slane %v1413, 4
  %vm1415 = vcmp.lt.s32.totalorder %v1413, %v1414
  %v1416 = vsel %vm1415, %v1413, %v1414
  %v1417 = vrot.slane %v1416, 2
  %vm1418 = vcmp.lt.s32.totalorder %v1416, %v1417
  %v1419 = vsel %vm1418, %v1416, %v1417
  %v1420 = vrot.slane %v1419, 1
  %vm1421 = vcmp.lt.s32.totalorder %v1419, %v1420
  %v1422 = vsel %vm1421, %v1419, %v1420
  %v1424 = vrot.slane %v1163, 1
  %v1425 = vrot.slane %v1163, 2
  %v1426 = vrot.slane %v1163, 3
  %v1427 = vrot.slane %v1163, 4
  %v1428 = vrot.slane %v1163, 5
  %v1429 = vrot.slane %v1163, 6
  %v1430 = vrot.slane %v1163, 7
  %v1439 = vadd.f32 %v1277, %v1163
  %v1440 = vadd.f32 %v1284, %v1424
  %v1441 = vadd.f32 %v1291, %v1425
  %v1442 = vadd.f32 %v1298, %v1426
  %v1443 = vadd.f32 %v1305, %v1427
  %v1444 = vadd.f32 %v1312, %v1428
  %v1445 = vadd.f32 %v1319, %v1429
  %v1446 = vadd.f32 %v1326, %v1430
  %v1447 = vlaneseq
  %v1448 = vshrl.u32 %v1447, 7
  %v1449 = vsub.s32 0, %v1448
  %v1450 = vrot.slane %v1439, %v1449
  %1452 = vbcast.lane.b32.xlu0 %v1450, 256
  %v1453 = vpop.permute.xlu0 %1452
  %v1454 = vlaneseq
  %v1455 = vshrl.u32 %v1454, 7
  %v1456 = vsub.s32 0, %v1455
  %v1457 = vrot.slane %v1440, %v1456
  %1459 = vbcast.lane.b32.xlu0 %v1457, 256
  %v1460 = vpop.permute.xlu0 %1459
  %v1461 = vlaneseq
  %v1462 = vshrl.u32 %v1461, 7
  %v1463 = vsub.s32 0, %v1462
  %v1464 = vrot.slane %v1441, %v1463
  %1466 = vbcast.lane.b32.xlu0 %v1464, 256
  %v1467 = vpop.permute.xlu0 %1466
  %v1468 = vlaneseq
  %v1469 = vshrl.u32 %v1468, 7
  %v1470 = vsub.s32 0, %v1469
  %v1471 = vrot.slane %v1442, %v1470
  %1473 = vbcast.lane.b32.xlu0 %v1471, 256
  %v1474 = vpop.permute.xlu0 %1473
  %v1475 = vlaneseq
  %v1476 = vshrl.u32 %v1475, 7
  %v1477 = vsub.s32 0, %v1476
  %v1478 = vrot.slane %v1443, %v1477
  %1480 = vbcast.lane.b32.xlu0 %v1478, 256
  %v1481 = vpop.permute.xlu0 %1480
  %v1482 = vlaneseq
  %v1483 = vshrl.u32 %v1482, 7
  %v1484 = vsub.s32 0, %v1483
  %v1485 = vrot.slane %v1444, %v1484
  %1487 = vbcast.lane.b32.xlu0 %v1485, 256
  %v1488 = vpop.permute.xlu0 %1487
  %v1489 = vlaneseq
  %v1490 = vshrl.u32 %v1489, 7
  %v1491 = vsub.s32 0, %v1490
  %v1492 = vrot.slane %v1445, %v1491
  %1494 = vbcast.lane.b32.xlu0 %v1492, 256
  %v1495 = vpop.permute.xlu0 %1494
  %v1496 = vlaneseq
  %v1497 = vshrl.u32 %v1496, 7
  %v1498 = vsub.s32 0, %v1497
  %v1499 = vrot.slane %v1446, %v1498
  %1501 = vbcast.lane.b32.xlu0 %v1499, 256
  %v1502 = vpop.permute.xlu0 %1501
  %v1503 = vadd.f32 %v1453, %v1196
  %v1504 = vadd.f32 %v1460, %v1196
  %v1505 = vadd.f32 %v1467, %v1196
  %v1506 = vadd.f32 %v1474, %v1196
  %v1507 = vadd.f32 %v1481, %v1196
  %v1508 = vadd.f32 %v1488, %v1196
  %v1509 = vadd.f32 %v1495, %v1196
  %v1510 = vadd.f32 %v1502, %v1196
  %v1511 = vsel %vm1270, %v1503, -inf
  %v1512 = vrot.slane %v1511, 4
  %v1513 = vmax.f32 %v1511, %v1512
  %v1514 = vrot.slane %v1513, 2
  %v1515 = vmax.f32 %v1513, %v1514
  %v1516 = vrot.slane %v1515, 1
  %v1517 = vmax.f32 %v1515, %v1516
  %v1518 = vsel %vm1270, %v1504, -inf
  %v1519 = vrot.slane %v1518, 4
  %v1520 = vmax.f32 %v1518, %v1519
  %v1521 = vrot.slane %v1520, 2
  %v1522 = vmax.f32 %v1520, %v1521
  %v1523 = vrot.slane %v1522, 1
  %v1524 = vmax.f32 %v1522, %v1523
  %v1525 = vsel %vm1270, %v1505, -inf
  %v1526 = vrot.slane %v1525, 4
  %v1527 = vmax.f32 %v1525, %v1526
  %v1528 = vrot.slane %v1527, 2
  %v1529 = vmax.f32 %v1527, %v1528
  %v1530 = vrot.slane %v1529, 1
  %v1531 = vmax.f32 %v1529, %v1530
  %v1532 = vsel %vm1270, %v1506, -inf
  %v1533 = vrot.slane %v1532, 4
  %v1534 = vmax.f32 %v1532, %v1533
  %v1535 = vrot.slane %v1534, 2
  %v1536 = vmax.f32 %v1534, %v1535
  %v1537 = vrot.slane %v1536, 1
  %v1538 = vmax.f32 %v1536, %v1537
  %v1539 = vsel %vm1270, %v1507, -inf
  %v1540 = vrot.slane %v1539, 4
  %v1541 = vmax.f32 %v1539, %v1540
  %v1542 = vrot.slane %v1541, 2
  %v1543 = vmax.f32 %v1541, %v1542
  %v1544 = vrot.slane %v1543, 1
  %v1545 = vmax.f32 %v1543, %v1544
  %v1546 = vsel %vm1270, %v1508, -inf
  %v1547 = vrot.slane %v1546, 4
  %v1548 = vmax.f32 %v1546, %v1547
  %v1549 = vrot.slane %v1548, 2
  %v1550 = vmax.f32 %v1548, %v1549
  %v1551 = vrot.slane %v1550, 1
  %v1552 = vmax.f32 %v1550, %v1551
  %v1553 = vsel %vm1270, %v1509, -inf
  %v1554 = vrot.slane %v1553, 4
  %v1555 = vmax.f32 %v1553, %v1554
  %v1556 = vrot.slane %v1555, 2
  %v1557 = vmax.f32 %v1555, %v1556
  %v1558 = vrot.slane %v1557, 1
  %v1559 = vmax.f32 %v1557, %v1558
  %v1560 = vsel %vm1270, %v1510, -inf
  %v1561 = vrot.slane %v1560, 4
  %v1562 = vmax.f32 %v1560, %v1561
  %v1563 = vrot.slane %v1562, 2
  %v1564 = vmax.f32 %v1562, %v1563
  %v1565 = vrot.slane %v1564, 1
  %v1566 = vmax.f32 %v1564, %v1565
  %vm1567 = vcmp.eq.f32.partialorder %v1503, %v1517
  %vm1568 = vcmp.eq.f32.partialorder %v1504, %v1524
  %vm1569 = vcmp.eq.f32.partialorder %v1505, %v1531
  %vm1570 = vcmp.eq.f32.partialorder %v1506, %v1538
  %vm1571 = vcmp.eq.f32.partialorder %v1507, %v1545
  %vm1572 = vcmp.eq.f32.partialorder %v1508, %v1552
  %vm1573 = vcmp.eq.f32.partialorder %v1509, %v1559
  %vm1574 = vcmp.eq.f32.partialorder %v1510, %v1566
  %v1575 = vsel %vm1567, %v1198, 8
  %v1576 = vsel %vm1568, %v1198, 8
  %v1577 = vsel %vm1569, %v1198, 8
  %v1578 = vsel %vm1570, %v1198, 8
  %v1579 = vsel %vm1571, %v1198, 8
  %v1580 = vsel %vm1572, %v1198, 8
  %v1581 = vsel %vm1573, %v1198, 8
  %v1582 = vsel %vm1574, %v1198, 8
  %v1583 = vsel %vm1270, %v1575, 2147483647
  %v1584 = vrot.slane %v1583, 4
  %vm1585 = vcmp.lt.s32.totalorder %v1583, %v1584
  %v1586 = vsel %vm1585, %v1583, %v1584
  %v1587 = vrot.slane %v1586, 2
  %vm1588 = vcmp.lt.s32.totalorder %v1586, %v1587
  %v1589 = vsel %vm1588, %v1586, %v1587
  %v1590 = vrot.slane %v1589, 1
  %vm1591 = vcmp.lt.s32.totalorder %v1589, %v1590
  %v1592 = vsel %vm1591, %v1589, %v1590
  %v1593 = vsel %vm1270, %v1576, 2147483647
  %v1594 = vrot.slane %v1593, 4
  %vm1595 = vcmp.lt.s32.totalorder %v1593, %v1594
  %v1596 = vsel %vm1595, %v1593, %v1594
  %v1597 = vrot.slane %v1596, 2
  %vm1598 = vcmp.lt.s32.totalorder %v1596, %v1597
  %v1599 = vsel %vm1598, %v1596, %v1597
  %v1600 = vrot.slane %v1599, 1
  %vm1601 = vcmp.lt.s32.totalorder %v1599, %v1600
  %v1602 = vsel %vm1601, %v1599, %v1600
  %v1603 = vsel %vm1270, %v1577, 2147483647
  %v1604 = vrot.slane %v1603, 4
  %vm1605 = vcmp.lt.s32.totalorder %v1603, %v1604
  %v1606 = vsel %vm1605, %v1603, %v1604
  %v1607 = vrot.slane %v1606, 2
  %vm1608 = vcmp.lt.s32.totalorder %v1606, %v1607
  %v1609 = vsel %vm1608, %v1606, %v1607
  %v1610 = vrot.slane %v1609, 1
  %vm1611 = vcmp.lt.s32.totalorder %v1609, %v1610
  %v1612 = vsel %vm1611, %v1609, %v1610
  %v1613 = vsel %vm1270, %v1578, 2147483647
  %v1614 = vrot.slane %v1613, 4
  %vm1615 = vcmp.lt.s32.totalorder %v1613, %v1614
  %v1616 = vsel %vm1615, %v1613, %v1614
  %v1617 = vrot.slane %v1616, 2
  %vm1618 = vcmp.lt.s32.totalorder %v1616, %v1617
  %v1619 = vsel %vm1618, %v1616, %v1617
  %v1620 = vrot.slane %v1619, 1
  %vm1621 = vcmp.lt.s32.totalorder %v1619, %v1620
  %v1622 = vsel %vm1621, %v1619, %v1620
  %v1623 = vsel %vm1270, %v1579, 2147483647
  %v1624 = vrot.slane %v1623, 4
  %vm1625 = vcmp.lt.s32.totalorder %v1623, %v1624
  %v1626 = vsel %vm1625, %v1623, %v1624
  %v1627 = vrot.slane %v1626, 2
  %vm1628 = vcmp.lt.s32.totalorder %v1626, %v1627
  %v1629 = vsel %vm1628, %v1626, %v1627
  %v1630 = vrot.slane %v1629, 1
  %vm1631 = vcmp.lt.s32.totalorder %v1629, %v1630
  %v1632 = vsel %vm1631, %v1629, %v1630
  %v1633 = vsel %vm1270, %v1580, 2147483647
  %v1634 = vrot.slane %v1633, 4
  %vm1635 = vcmp.lt.s32.totalorder %v1633, %v1634
  %v1636 = vsel %vm1635, %v1633, %v1634
  %v1637 = vrot.slane %v1636, 2
  %vm1638 = vcmp.lt.s32.totalorder %v1636, %v1637
  %v1639 = vsel %vm1638, %v1636, %v1637
  %v1640 = vrot.slane %v1639, 1
  %vm1641 = vcmp.lt.s32.totalorder %v1639, %v1640
  %v1642 = vsel %vm1641, %v1639, %v1640
  %v1643 = vsel %vm1270, %v1581, 2147483647
  %v1644 = vrot.slane %v1643, 4
  %vm1645 = vcmp.lt.s32.totalorder %v1643, %v1644
  %v1646 = vsel %vm1645, %v1643, %v1644
  %v1647 = vrot.slane %v1646, 2
  %vm1648 = vcmp.lt.s32.totalorder %v1646, %v1647
  %v1649 = vsel %vm1648, %v1646, %v1647
  %v1650 = vrot.slane %v1649, 1
  %vm1651 = vcmp.lt.s32.totalorder %v1649, %v1650
  %v1652 = vsel %vm1651, %v1649, %v1650
  %v1653 = vsel %vm1270, %v1582, 2147483647
  %v1654 = vrot.slane %v1653, 4
  %vm1655 = vcmp.lt.s32.totalorder %v1653, %v1654
  %v1656 = vsel %vm1655, %v1653, %v1654
  %v1657 = vrot.slane %v1656, 2
  %vm1658 = vcmp.lt.s32.totalorder %v1656, %v1657
  %v1659 = vsel %vm1658, %v1656, %v1657
  %v1660 = vrot.slane %v1659, 1
  %vm1661 = vcmp.lt.s32.totalorder %v1659, %v1660
  %v1662 = vsel %vm1661, %v1659, %v1660
  %v1664 = vrot.slane %v1168, 1
  %v1665 = vrot.slane %v1168, 2
  %v1666 = vrot.slane %v1168, 3
  %v1667 = vrot.slane %v1168, 4
  %v1668 = vrot.slane %v1168, 5
  %v1669 = vrot.slane %v1168, 6
  %v1670 = vrot.slane %v1168, 7
  %v1679 = vadd.f32 %v1517, %v1168
  %v1680 = vadd.f32 %v1524, %v1664
  %v1681 = vadd.f32 %v1531, %v1665
  %v1682 = vadd.f32 %v1538, %v1666
  %v1683 = vadd.f32 %v1545, %v1667
  %v1684 = vadd.f32 %v1552, %v1668
  %v1685 = vadd.f32 %v1559, %v1669
  %v1686 = vadd.f32 %v1566, %v1670
  %v1687 = vlaneseq
  %v1688 = vshrl.u32 %v1687, 7
  %v1689 = vsub.s32 0, %v1688
  %v1690 = vrot.slane %v1679, %v1689
  %1692 = vbcast.lane.b32.xlu0 %v1690, 256
  %v1693 = vpop.permute.xlu0 %1692
  %v1694 = vlaneseq
  %v1695 = vshrl.u32 %v1694, 7
  %v1696 = vsub.s32 0, %v1695
  %v1697 = vrot.slane %v1680, %v1696
  %1699 = vbcast.lane.b32.xlu0 %v1697, 256
  %v1700 = vpop.permute.xlu0 %1699
  %v1701 = vlaneseq
  %v1702 = vshrl.u32 %v1701, 7
  %v1703 = vsub.s32 0, %v1702
  %v1704 = vrot.slane %v1681, %v1703
  %1706 = vbcast.lane.b32.xlu0 %v1704, 256
  %v1707 = vpop.permute.xlu0 %1706
  %v1708 = vlaneseq
  %v1709 = vshrl.u32 %v1708, 7
  %v1710 = vsub.s32 0, %v1709
  %v1711 = vrot.slane %v1682, %v1710
  %1713 = vbcast.lane.b32.xlu0 %v1711, 256
  %v1714 = vpop.permute.xlu0 %1713
  %v1715 = vlaneseq
  %v1716 = vshrl.u32 %v1715, 7
  %v1717 = vsub.s32 0, %v1716
  %v1718 = vrot.slane %v1683, %v1717
  %1720 = vbcast.lane.b32.xlu0 %v1718, 256
  %v1721 = vpop.permute.xlu0 %1720
  %v1722 = vlaneseq
  %v1723 = vshrl.u32 %v1722, 7
  %v1724 = vsub.s32 0, %v1723
  %v1725 = vrot.slane %v1684, %v1724
  %1727 = vbcast.lane.b32.xlu0 %v1725, 256
  %v1728 = vpop.permute.xlu0 %1727
  %v1729 = vlaneseq
  %v1730 = vshrl.u32 %v1729, 7
  %v1731 = vsub.s32 0, %v1730
  %v1732 = vrot.slane %v1685, %v1731
  %1734 = vbcast.lane.b32.xlu0 %v1732, 256
  %v1735 = vpop.permute.xlu0 %1734
  %v1736 = vlaneseq
  %v1737 = vshrl.u32 %v1736, 7
  %v1738 = vsub.s32 0, %v1737
  %v1739 = vrot.slane %v1686, %v1738
  %1741 = vbcast.lane.b32.xlu0 %v1739, 256
  %v1742 = vpop.permute.xlu0 %1741
  %v1743 = vadd.f32 %v1693, %v1196
  %v1744 = vadd.f32 %v1700, %v1196
  %v1745 = vadd.f32 %v1707, %v1196
  %v1746 = vadd.f32 %v1714, %v1196
  %v1747 = vadd.f32 %v1721, %v1196
  %v1748 = vadd.f32 %v1728, %v1196
  %v1749 = vadd.f32 %v1735, %v1196
  %v1750 = vadd.f32 %v1742, %v1196
  %v1751 = vsel %vm1270, %v1743, -inf
  %v1752 = vrot.slane %v1751, 4
  %v1753 = vmax.f32 %v1751, %v1752
  %v1754 = vrot.slane %v1753, 2
  %v1755 = vmax.f32 %v1753, %v1754
  %v1756 = vrot.slane %v1755, 1
  %v1757 = vmax.f32 %v1755, %v1756
  %v1758 = vsel %vm1270, %v1744, -inf
  %v1759 = vrot.slane %v1758, 4
  %v1760 = vmax.f32 %v1758, %v1759
  %v1761 = vrot.slane %v1760, 2
  %v1762 = vmax.f32 %v1760, %v1761
  %v1763 = vrot.slane %v1762, 1
  %v1764 = vmax.f32 %v1762, %v1763
  %v1765 = vsel %vm1270, %v1745, -inf
  %v1766 = vrot.slane %v1765, 4
  %v1767 = vmax.f32 %v1765, %v1766
  %v1768 = vrot.slane %v1767, 2
  %v1769 = vmax.f32 %v1767, %v1768
  %v1770 = vrot.slane %v1769, 1
  %v1771 = vmax.f32 %v1769, %v1770
  %v1772 = vsel %vm1270, %v1746, -inf
  %v1773 = vrot.slane %v1772, 4
  %v1774 = vmax.f32 %v1772, %v1773
  %v1775 = vrot.slane %v1774, 2
  %v1776 = vmax.f32 %v1774, %v1775
  %v1777 = vrot.slane %v1776, 1
  %v1778 = vmax.f32 %v1776, %v1777
  %v1779 = vsel %vm1270, %v1747, -inf
  %v1780 = vrot.slane %v1779, 4
  %v1781 = vmax.f32 %v1779, %v1780
  %v1782 = vrot.slane %v1781, 2
  %v1783 = vmax.f32 %v1781, %v1782
  %v1784 = vrot.slane %v1783, 1
  %v1785 = vmax.f32 %v1783, %v1784
  %v1786 = vsel %vm1270, %v1748, -inf
  %v1787 = vrot.slane %v1786, 4
  %v1788 = vmax.f32 %v1786, %v1787
  %v1789 = vrot.slane %v1788, 2
  %v1790 = vmax.f32 %v1788, %v1789
  %v1791 = vrot.slane %v1790, 1
  %v1792 = vmax.f32 %v1790, %v1791
  %v1793 = vsel %vm1270, %v1749, -inf
  %v1794 = vrot.slane %v1793, 4
  %v1795 = vmax.f32 %v1793, %v1794
  %v1796 = vrot.slane %v1795, 2
  %v1797 = vmax.f32 %v1795, %v1796
  %v1798 = vrot.slane %v1797, 1
  %v1799 = vmax.f32 %v1797, %v1798
  %v1800 = vsel %vm1270, %v1750, -inf
  %v1801 = vrot.slane %v1800, 4
  %v1802 = vmax.f32 %v1800, %v1801
  %v1803 = vrot.slane %v1802, 2
  %v1804 = vmax.f32 %v1802, %v1803
  %v1805 = vrot.slane %v1804, 1
  %v1806 = vmax.f32 %v1804, %v1805
  %vm1807 = vcmp.eq.f32.partialorder %v1743, %v1757
  %vm1808 = vcmp.eq.f32.partialorder %v1744, %v1764
  %vm1809 = vcmp.eq.f32.partialorder %v1745, %v1771
  %vm1810 = vcmp.eq.f32.partialorder %v1746, %v1778
  %vm1811 = vcmp.eq.f32.partialorder %v1747, %v1785
  %vm1812 = vcmp.eq.f32.partialorder %v1748, %v1792
  %vm1813 = vcmp.eq.f32.partialorder %v1749, %v1799
  %vm1814 = vcmp.eq.f32.partialorder %v1750, %v1806
  %v1815 = vsel %vm1807, %v1198, 8
  %v1816 = vsel %vm1808, %v1198, 8
  %v1817 = vsel %vm1809, %v1198, 8
  %v1818 = vsel %vm1810, %v1198, 8
  %v1819 = vsel %vm1811, %v1198, 8
  %v1820 = vsel %vm1812, %v1198, 8
  %v1821 = vsel %vm1813, %v1198, 8
  %v1822 = vsel %vm1814, %v1198, 8
  %v1823 = vsel %vm1270, %v1815, 2147483647
  %v1824 = vrot.slane %v1823, 4
  %vm1825 = vcmp.lt.s32.totalorder %v1823, %v1824
  %v1826 = vsel %vm1825, %v1823, %v1824
  %v1827 = vrot.slane %v1826, 2
  %vm1828 = vcmp.lt.s32.totalorder %v1826, %v1827
  %v1829 = vsel %vm1828, %v1826, %v1827
  %v1830 = vrot.slane %v1829, 1
  %vm1831 = vcmp.lt.s32.totalorder %v1829, %v1830
  %v1832 = vsel %vm1831, %v1829, %v1830
  %v1833 = vsel %vm1270, %v1816, 2147483647
  %v1834 = vrot.slane %v1833, 4
  %vm1835 = vcmp.lt.s32.totalorder %v1833, %v1834
  %v1836 = vsel %vm1835, %v1833, %v1834
  %v1837 = vrot.slane %v1836, 2
  %vm1838 = vcmp.lt.s32.totalorder %v1836, %v1837
  %v1839 = vsel %vm1838, %v1836, %v1837
  %v1840 = vrot.slane %v1839, 1
  %vm1841 = vcmp.lt.s32.totalorder %v1839, %v1840
  %v1842 = vsel %vm1841, %v1839, %v1840
  %v1843 = vsel %vm1270, %v1817, 2147483647
  %v1844 = vrot.slane %v1843, 4
  %vm1845 = vcmp.lt.s32.totalorder %v1843, %v1844
  %v1846 = vsel %vm1845, %v1843, %v1844
  %v1847 = vrot.slane %v1846, 2
  %vm1848 = vcmp.lt.s32.totalorder %v1846, %v1847
  %v1849 = vsel %vm1848, %v1846, %v1847
  %v1850 = vrot.slane %v1849, 1
  %vm1851 = vcmp.lt.s32.totalorder %v1849, %v1850
  %v1852 = vsel %vm1851, %v1849, %v1850
  %v1853 = vsel %vm1270, %v1818, 2147483647
  %v1854 = vrot.slane %v1853, 4
  %vm1855 = vcmp.lt.s32.totalorder %v1853, %v1854
  %v1856 = vsel %vm1855, %v1853, %v1854
  %v1857 = vrot.slane %v1856, 2
  %vm1858 = vcmp.lt.s32.totalorder %v1856, %v1857
  %v1859 = vsel %vm1858, %v1856, %v1857
  %v1860 = vrot.slane %v1859, 1
  %vm1861 = vcmp.lt.s32.totalorder %v1859, %v1860
  %v1862 = vsel %vm1861, %v1859, %v1860
  %v1863 = vsel %vm1270, %v1819, 2147483647
  %v1864 = vrot.slane %v1863, 4
  %vm1865 = vcmp.lt.s32.totalorder %v1863, %v1864
  %v1866 = vsel %vm1865, %v1863, %v1864
  %v1867 = vrot.slane %v1866, 2
  %vm1868 = vcmp.lt.s32.totalorder %v1866, %v1867
  %v1869 = vsel %vm1868, %v1866, %v1867
  %v1870 = vrot.slane %v1869, 1
  %vm1871 = vcmp.lt.s32.totalorder %v1869, %v1870
  %v1872 = vsel %vm1871, %v1869, %v1870
  %v1873 = vsel %vm1270, %v1820, 2147483647
  %v1874 = vrot.slane %v1873, 4
  %vm1875 = vcmp.lt.s32.totalorder %v1873, %v1874
  %v1876 = vsel %vm1875, %v1873, %v1874
  %v1877 = vrot.slane %v1876, 2
  %vm1878 = vcmp.lt.s32.totalorder %v1876, %v1877
  %v1879 = vsel %vm1878, %v1876, %v1877
  %v1880 = vrot.slane %v1879, 1
  %vm1881 = vcmp.lt.s32.totalorder %v1879, %v1880
  %v1882 = vsel %vm1881, %v1879, %v1880
  %v1883 = vsel %vm1270, %v1821, 2147483647
  %v1884 = vrot.slane %v1883, 4
  %vm1885 = vcmp.lt.s32.totalorder %v1883, %v1884
  %v1886 = vsel %vm1885, %v1883, %v1884
  %v1887 = vrot.slane %v1886, 2
  %vm1888 = vcmp.lt.s32.totalorder %v1886, %v1887
  %v1889 = vsel %vm1888, %v1886, %v1887
  %v1890 = vrot.slane %v1889, 1
  %vm1891 = vcmp.lt.s32.totalorder %v1889, %v1890
  %v1892 = vsel %vm1891, %v1889, %v1890
  %v1893 = vsel %vm1270, %v1822, 2147483647
  %v1894 = vrot.slane %v1893, 4
  %vm1895 = vcmp.lt.s32.totalorder %v1893, %v1894
  %v1896 = vsel %vm1895, %v1893, %v1894
  %v1897 = vrot.slane %v1896, 2
  %vm1898 = vcmp.lt.s32.totalorder %v1896, %v1897
  %v1899 = vsel %vm1898, %v1896, %v1897
  %v1900 = vrot.slane %v1899, 1
  %vm1901 = vcmp.lt.s32.totalorder %v1899, %v1900
  %v1902 = vsel %vm1901, %v1899, %v1900
  %v1904 = vrot.slane %v1173, 1
  %v1905 = vrot.slane %v1173, 2
  %v1906 = vrot.slane %v1173, 3
  %v1907 = vrot.slane %v1173, 4
  %v1908 = vrot.slane %v1173, 5
  %v1909 = vrot.slane %v1173, 6
  %v1910 = vrot.slane %v1173, 7
  %v1919 = vadd.f32 %v1757, %v1173
  %v1920 = vadd.f32 %v1764, %v1904
  %v1921 = vadd.f32 %v1771, %v1905
  %v1922 = vadd.f32 %v1778, %v1906
  %v1923 = vadd.f32 %v1785, %v1907
  %v1924 = vadd.f32 %v1792, %v1908
  %v1925 = vadd.f32 %v1799, %v1909
  %v1926 = vadd.f32 %v1806, %v1910
  %v1927 = vlaneseq
  %v1928 = vshrl.u32 %v1927, 7
  %v1929 = vsub.s32 0, %v1928
  %v1930 = vrot.slane %v1919, %v1929
  %1932 = vbcast.lane.b32.xlu0 %v1930, 256
  %v1933 = vpop.permute.xlu0 %1932
  %v1934 = vlaneseq
  %v1935 = vshrl.u32 %v1934, 7
  %v1936 = vsub.s32 0, %v1935
  %v1937 = vrot.slane %v1920, %v1936
  %1939 = vbcast.lane.b32.xlu0 %v1937, 256
  %v1940 = vpop.permute.xlu0 %1939
  %v1941 = vlaneseq
  %v1942 = vshrl.u32 %v1941, 7
  %v1943 = vsub.s32 0, %v1942
  %v1944 = vrot.slane %v1921, %v1943
  %1946 = vbcast.lane.b32.xlu0 %v1944, 256
  %v1947 = vpop.permute.xlu0 %1946
  %v1948 = vlaneseq
  %v1949 = vshrl.u32 %v1948, 7
  %v1950 = vsub.s32 0, %v1949
  %v1951 = vrot.slane %v1922, %v1950
  %1953 = vbcast.lane.b32.xlu0 %v1951, 256
  %v1954 = vpop.permute.xlu0 %1953
  %v1955 = vlaneseq
  %v1956 = vshrl.u32 %v1955, 7
  %v1957 = vsub.s32 0, %v1956
  %v1958 = vrot.slane %v1923, %v1957
  %1960 = vbcast.lane.b32.xlu0 %v1958, 256
  %v1961 = vpop.permute.xlu0 %1960
  %v1962 = vlaneseq
  %v1963 = vshrl.u32 %v1962, 7
  %v1964 = vsub.s32 0, %v1963
  %v1965 = vrot.slane %v1924, %v1964
  %1967 = vbcast.lane.b32.xlu0 %v1965, 256
  %v1968 = vpop.permute.xlu0 %1967
  %v1969 = vlaneseq
  %v1970 = vshrl.u32 %v1969, 7
  %v1971 = vsub.s32 0, %v1970
  %v1972 = vrot.slane %v1925, %v1971
  %1974 = vbcast.lane.b32.xlu0 %v1972, 256
  %v1975 = vpop.permute.xlu0 %1974
  %v1976 = vlaneseq
  %v1977 = vshrl.u32 %v1976, 7
  %v1978 = vsub.s32 0, %v1977
  %v1979 = vrot.slane %v1926, %v1978
  %1981 = vbcast.lane.b32.xlu0 %v1979, 256
  %v1982 = vpop.permute.xlu0 %1981
  %v1983 = vadd.f32 %v1933, %v1196
  %v1984 = vadd.f32 %v1940, %v1196
  %v1985 = vadd.f32 %v1947, %v1196
  %v1986 = vadd.f32 %v1954, %v1196
  %v1987 = vadd.f32 %v1961, %v1196
  %v1988 = vadd.f32 %v1968, %v1196
  %v1989 = vadd.f32 %v1975, %v1196
  %v1990 = vadd.f32 %v1982, %v1196
  %v1991 = vsel %vm1270, %v1983, -inf
  %v1992 = vrot.slane %v1991, 4
  %v1993 = vmax.f32 %v1991, %v1992
  %v1994 = vrot.slane %v1993, 2
  %v1995 = vmax.f32 %v1993, %v1994
  %v1996 = vrot.slane %v1995, 1
  %v1997 = vmax.f32 %v1995, %v1996
  %v1998 = vsel %vm1270, %v1984, -inf
  %v1999 = vrot.slane %v1998, 4
  %v2000 = vmax.f32 %v1998, %v1999
  %v2001 = vrot.slane %v2000, 2
  %v2002 = vmax.f32 %v2000, %v2001
  %v2003 = vrot.slane %v2002, 1
  %v2004 = vmax.f32 %v2002, %v2003
  %v2005 = vsel %vm1270, %v1985, -inf
  %v2006 = vrot.slane %v2005, 4
  %v2007 = vmax.f32 %v2005, %v2006
  %v2008 = vrot.slane %v2007, 2
  %v2009 = vmax.f32 %v2007, %v2008
  %v2010 = vrot.slane %v2009, 1
  %v2011 = vmax.f32 %v2009, %v2010
  %v2012 = vsel %vm1270, %v1986, -inf
  %v2013 = vrot.slane %v2012, 4
  %v2014 = vmax.f32 %v2012, %v2013
  %v2015 = vrot.slane %v2014, 2
  %v2016 = vmax.f32 %v2014, %v2015
  %v2017 = vrot.slane %v2016, 1
  %v2018 = vmax.f32 %v2016, %v2017
  %v2019 = vsel %vm1270, %v1987, -inf
  %v2020 = vrot.slane %v2019, 4
  %v2021 = vmax.f32 %v2019, %v2020
  %v2022 = vrot.slane %v2021, 2
  %v2023 = vmax.f32 %v2021, %v2022
  %v2024 = vrot.slane %v2023, 1
  %v2025 = vmax.f32 %v2023, %v2024
  %v2026 = vsel %vm1270, %v1988, -inf
  %v2027 = vrot.slane %v2026, 4
  %v2028 = vmax.f32 %v2026, %v2027
  %v2029 = vrot.slane %v2028, 2
  %v2030 = vmax.f32 %v2028, %v2029
  %v2031 = vrot.slane %v2030, 1
  %v2032 = vmax.f32 %v2030, %v2031
  %v2033 = vsel %vm1270, %v1989, -inf
  %v2034 = vrot.slane %v2033, 4
  %v2035 = vmax.f32 %v2033, %v2034
  %v2036 = vrot.slane %v2035, 2
  %v2037 = vmax.f32 %v2035, %v2036
  %v2038 = vrot.slane %v2037, 1
  %v2039 = vmax.f32 %v2037, %v2038
  %v2040 = vsel %vm1270, %v1990, -inf
  %v2041 = vrot.slane %v2040, 4
  %v2042 = vmax.f32 %v2040, %v2041
  %v2043 = vrot.slane %v2042, 2
  %v2044 = vmax.f32 %v2042, %v2043
  %v2045 = vrot.slane %v2044, 1
  %v2046 = vmax.f32 %v2044, %v2045
  %vm2047 = vcmp.eq.f32.partialorder %v1983, %v1997
  %vm2048 = vcmp.eq.f32.partialorder %v1984, %v2004
  %vm2049 = vcmp.eq.f32.partialorder %v1985, %v2011
  %vm2050 = vcmp.eq.f32.partialorder %v1986, %v2018
  %vm2051 = vcmp.eq.f32.partialorder %v1987, %v2025
  %vm2052 = vcmp.eq.f32.partialorder %v1988, %v2032
  %vm2053 = vcmp.eq.f32.partialorder %v1989, %v2039
  %vm2054 = vcmp.eq.f32.partialorder %v1990, %v2046
  %v2055 = vsel %vm2047, %v1198, 8
  %v2056 = vsel %vm2048, %v1198, 8
  %v2057 = vsel %vm2049, %v1198, 8
  %v2058 = vsel %vm2050, %v1198, 8
  %v2059 = vsel %vm2051, %v1198, 8
  %v2060 = vsel %vm2052, %v1198, 8
  %v2061 = vsel %vm2053, %v1198, 8
  %v2062 = vsel %vm2054, %v1198, 8
  %v2063 = vsel %vm1270, %v2055, 2147483647
  %v2064 = vrot.slane %v2063, 4
  %vm2065 = vcmp.lt.s32.totalorder %v2063, %v2064
  %v2066 = vsel %vm2065, %v2063, %v2064
  %v2067 = vrot.slane %v2066, 2
  %vm2068 = vcmp.lt.s32.totalorder %v2066, %v2067
  %v2069 = vsel %vm2068, %v2066, %v2067
  %v2070 = vrot.slane %v2069, 1
  %vm2071 = vcmp.lt.s32.totalorder %v2069, %v2070
  %v2072 = vsel %vm2071, %v2069, %v2070
  %v2073 = vsel %vm1270, %v2056, 2147483647
  %v2074 = vrot.slane %v2073, 4
  %vm2075 = vcmp.lt.s32.totalorder %v2073, %v2074
  %v2076 = vsel %vm2075, %v2073, %v2074
  %v2077 = vrot.slane %v2076, 2
  %vm2078 = vcmp.lt.s32.totalorder %v2076, %v2077
  %v2079 = vsel %vm2078, %v2076, %v2077
  %v2080 = vrot.slane %v2079, 1
  %vm2081 = vcmp.lt.s32.totalorder %v2079, %v2080
  %v2082 = vsel %vm2081, %v2079, %v2080
  %v2083 = vsel %vm1270, %v2057, 2147483647
  %v2084 = vrot.slane %v2083, 4
  %vm2085 = vcmp.lt.s32.totalorder %v2083, %v2084
  %v2086 = vsel %vm2085, %v2083, %v2084
  %v2087 = vrot.slane %v2086, 2
  %vm2088 = vcmp.lt.s32.totalorder %v2086, %v2087
  %v2089 = vsel %vm2088, %v2086, %v2087
  %v2090 = vrot.slane %v2089, 1
  %vm2091 = vcmp.lt.s32.totalorder %v2089, %v2090
  %v2092 = vsel %vm2091, %v2089, %v2090
  %v2093 = vsel %vm1270, %v2058, 2147483647
  %v2094 = vrot.slane %v2093, 4
  %vm2095 = vcmp.lt.s32.totalorder %v2093, %v2094
  %v2096 = vsel %vm2095, %v2093, %v2094
  %v2097 = vrot.slane %v2096, 2
  %vm2098 = vcmp.lt.s32.totalorder %v2096, %v2097
  %v2099 = vsel %vm2098, %v2096, %v2097
  %v2100 = vrot.slane %v2099, 1
  %vm2101 = vcmp.lt.s32.totalorder %v2099, %v2100
  %v2102 = vsel %vm2101, %v2099, %v2100
  %v2103 = vsel %vm1270, %v2059, 2147483647
  %v2104 = vrot.slane %v2103, 4
  %vm2105 = vcmp.lt.s32.totalorder %v2103, %v2104
  %v2106 = vsel %vm2105, %v2103, %v2104
  %v2107 = vrot.slane %v2106, 2
  %vm2108 = vcmp.lt.s32.totalorder %v2106, %v2107
  %v2109 = vsel %vm2108, %v2106, %v2107
  %v2110 = vrot.slane %v2109, 1
  %vm2111 = vcmp.lt.s32.totalorder %v2109, %v2110
  %v2112 = vsel %vm2111, %v2109, %v2110
  %v2113 = vsel %vm1270, %v2060, 2147483647
  %v2114 = vrot.slane %v2113, 4
  %vm2115 = vcmp.lt.s32.totalorder %v2113, %v2114
  %v2116 = vsel %vm2115, %v2113, %v2114
  %v2117 = vrot.slane %v2116, 2
  %vm2118 = vcmp.lt.s32.totalorder %v2116, %v2117
  %v2119 = vsel %vm2118, %v2116, %v2117
  %v2120 = vrot.slane %v2119, 1
  %vm2121 = vcmp.lt.s32.totalorder %v2119, %v2120
  %v2122 = vsel %vm2121, %v2119, %v2120
  %v2123 = vsel %vm1270, %v2061, 2147483647
  %v2124 = vrot.slane %v2123, 4
  %vm2125 = vcmp.lt.s32.totalorder %v2123, %v2124
  %v2126 = vsel %vm2125, %v2123, %v2124
  %v2127 = vrot.slane %v2126, 2
  %vm2128 = vcmp.lt.s32.totalorder %v2126, %v2127
  %v2129 = vsel %vm2128, %v2126, %v2127
  %v2130 = vrot.slane %v2129, 1
  %vm2131 = vcmp.lt.s32.totalorder %v2129, %v2130
  %v2132 = vsel %vm2131, %v2129, %v2130
  %v2133 = vsel %vm1270, %v2062, 2147483647
  %v2134 = vrot.slane %v2133, 4
  %vm2135 = vcmp.lt.s32.totalorder %v2133, %v2134
  %v2136 = vsel %vm2135, %v2133, %v2134
  %v2137 = vrot.slane %v2136, 2
  %vm2138 = vcmp.lt.s32.totalorder %v2136, %v2137
  %v2139 = vsel %vm2138, %v2136, %v2137
  %v2140 = vrot.slane %v2139, 1
  %vm2141 = vcmp.lt.s32.totalorder %v2139, %v2140
  %v2142 = vsel %vm2141, %v2139, %v2140
  %v2144 = vrot.slane %v1178, 1
  %v2145 = vrot.slane %v1178, 2
  %v2146 = vrot.slane %v1178, 3
  %v2147 = vrot.slane %v1178, 4
  %v2148 = vrot.slane %v1178, 5
  %v2149 = vrot.slane %v1178, 6
  %v2150 = vrot.slane %v1178, 7
  %v2159 = vadd.f32 %v1997, %v1178
  %v2160 = vadd.f32 %v2004, %v2144
  %v2161 = vadd.f32 %v2011, %v2145
  %v2162 = vadd.f32 %v2018, %v2146
  %v2163 = vadd.f32 %v2025, %v2147
  %v2164 = vadd.f32 %v2032, %v2148
  %v2165 = vadd.f32 %v2039, %v2149
  %v2166 = vadd.f32 %v2046, %v2150
  %v2167 = vlaneseq
  %v2168 = vshrl.u32 %v2167, 7
  %v2169 = vsub.s32 0, %v2168
  %v2170 = vrot.slane %v2159, %v2169
  %2172 = vbcast.lane.b32.xlu0 %v2170, 256
  %v2173 = vpop.permute.xlu0 %2172
  %v2174 = vlaneseq
  %v2175 = vshrl.u32 %v2174, 7
  %v2176 = vsub.s32 0, %v2175
  %v2177 = vrot.slane %v2160, %v2176
  %2179 = vbcast.lane.b32.xlu0 %v2177, 256
  %v2180 = vpop.permute.xlu0 %2179
  %v2181 = vlaneseq
  %v2182 = vshrl.u32 %v2181, 7
  %v2183 = vsub.s32 0, %v2182
  %v2184 = vrot.slane %v2161, %v2183
  %2186 = vbcast.lane.b32.xlu0 %v2184, 256
  %v2187 = vpop.permute.xlu0 %2186
  %v2188 = vlaneseq
  %v2189 = vshrl.u32 %v2188, 7
  %v2190 = vsub.s32 0, %v2189
  %v2191 = vrot.slane %v2162, %v2190
  %2193 = vbcast.lane.b32.xlu0 %v2191, 256
  %v2194 = vpop.permute.xlu0 %2193
  %v2195 = vlaneseq
  %v2196 = vshrl.u32 %v2195, 7
  %v2197 = vsub.s32 0, %v2196
  %v2198 = vrot.slane %v2163, %v2197
  %2200 = vbcast.lane.b32.xlu0 %v2198, 256
  %v2201 = vpop.permute.xlu0 %2200
  %v2202 = vlaneseq
  %v2203 = vshrl.u32 %v2202, 7
  %v2204 = vsub.s32 0, %v2203
  %v2205 = vrot.slane %v2164, %v2204
  %2207 = vbcast.lane.b32.xlu0 %v2205, 256
  %v2208 = vpop.permute.xlu0 %2207
  %v2209 = vlaneseq
  %v2210 = vshrl.u32 %v2209, 7
  %v2211 = vsub.s32 0, %v2210
  %v2212 = vrot.slane %v2165, %v2211
  %2214 = vbcast.lane.b32.xlu0 %v2212, 256
  %v2215 = vpop.permute.xlu0 %2214
  %v2216 = vlaneseq
  %v2217 = vshrl.u32 %v2216, 7
  %v2218 = vsub.s32 0, %v2217
  %v2219 = vrot.slane %v2166, %v2218
  %2221 = vbcast.lane.b32.xlu0 %v2219, 256
  %v2222 = vpop.permute.xlu0 %2221
  %v2223 = vadd.f32 %v2173, %v1196
  %v2224 = vadd.f32 %v2180, %v1196
  %v2225 = vadd.f32 %v2187, %v1196
  %v2226 = vadd.f32 %v2194, %v1196
  %v2227 = vadd.f32 %v2201, %v1196
  %v2228 = vadd.f32 %v2208, %v1196
  %v2229 = vadd.f32 %v2215, %v1196
  %v2230 = vadd.f32 %v2222, %v1196
  %v2231 = vsel %vm1270, %v2223, -inf
  %v2232 = vrot.slane %v2231, 4
  %v2233 = vmax.f32 %v2231, %v2232
  %v2234 = vrot.slane %v2233, 2
  %v2235 = vmax.f32 %v2233, %v2234
  %v2236 = vrot.slane %v2235, 1
  %v2237 = vmax.f32 %v2235, %v2236
  %v2238 = vsel %vm1270, %v2224, -inf
  %v2239 = vrot.slane %v2238, 4
  %v2240 = vmax.f32 %v2238, %v2239
  %v2241 = vrot.slane %v2240, 2
  %v2242 = vmax.f32 %v2240, %v2241
  %v2243 = vrot.slane %v2242, 1
  %v2244 = vmax.f32 %v2242, %v2243
  %v2245 = vsel %vm1270, %v2225, -inf
  %v2246 = vrot.slane %v2245, 4
  %v2247 = vmax.f32 %v2245, %v2246
  %v2248 = vrot.slane %v2247, 2
  %v2249 = vmax.f32 %v2247, %v2248
  %v2250 = vrot.slane %v2249, 1
  %v2251 = vmax.f32 %v2249, %v2250
  %v2252 = vsel %vm1270, %v2226, -inf
  %v2253 = vrot.slane %v2252, 4
  %v2254 = vmax.f32 %v2252, %v2253
  %v2255 = vrot.slane %v2254, 2
  %v2256 = vmax.f32 %v2254, %v2255
  %v2257 = vrot.slane %v2256, 1
  %v2258 = vmax.f32 %v2256, %v2257
  %v2259 = vsel %vm1270, %v2227, -inf
  %v2260 = vrot.slane %v2259, 4
  %v2261 = vmax.f32 %v2259, %v2260
  %v2262 = vrot.slane %v2261, 2
  %v2263 = vmax.f32 %v2261, %v2262
  %v2264 = vrot.slane %v2263, 1
  %v2265 = vmax.f32 %v2263, %v2264
  %v2266 = vsel %vm1270, %v2228, -inf
  %v2267 = vrot.slane %v2266, 4
  %v2268 = vmax.f32 %v2266, %v2267
  %v2269 = vrot.slane %v2268, 2
  %v2270 = vmax.f32 %v2268, %v2269
  %v2271 = vrot.slane %v2270, 1
  %v2272 = vmax.f32 %v2270, %v2271
  %v2273 = vsel %vm1270, %v2229, -inf
  %v2274 = vrot.slane %v2273, 4
  %v2275 = vmax.f32 %v2273, %v2274
  %v2276 = vrot.slane %v2275, 2
  %v2277 = vmax.f32 %v2275, %v2276
  %v2278 = vrot.slane %v2277, 1
  %v2279 = vmax.f32 %v2277, %v2278
  %v2280 = vsel %vm1270, %v2230, -inf
  %v2281 = vrot.slane %v2280, 4
  %v2282 = vmax.f32 %v2280, %v2281
  %v2283 = vrot.slane %v2282, 2
  %v2284 = vmax.f32 %v2282, %v2283
  %v2285 = vrot.slane %v2284, 1
  %v2286 = vmax.f32 %v2284, %v2285
  %vm2287 = vcmp.eq.f32.partialorder %v2223, %v2237
  %vm2288 = vcmp.eq.f32.partialorder %v2224, %v2244
  %vm2289 = vcmp.eq.f32.partialorder %v2225, %v2251
  %vm2290 = vcmp.eq.f32.partialorder %v2226, %v2258
  %vm2291 = vcmp.eq.f32.partialorder %v2227, %v2265
  %vm2292 = vcmp.eq.f32.partialorder %v2228, %v2272
  %vm2293 = vcmp.eq.f32.partialorder %v2229, %v2279
  %vm2294 = vcmp.eq.f32.partialorder %v2230, %v2286
  %v2295 = vsel %vm2287, %v1198, 8
  %v2296 = vsel %vm2288, %v1198, 8
  %v2297 = vsel %vm2289, %v1198, 8
  %v2298 = vsel %vm2290, %v1198, 8
  %v2299 = vsel %vm2291, %v1198, 8
  %v2300 = vsel %vm2292, %v1198, 8
  %v2301 = vsel %vm2293, %v1198, 8
  %v2302 = vsel %vm2294, %v1198, 8
  %v2303 = vsel %vm1270, %v2295, 2147483647
  %v2304 = vrot.slane %v2303, 4
  %vm2305 = vcmp.lt.s32.totalorder %v2303, %v2304
  %v2306 = vsel %vm2305, %v2303, %v2304
  %v2307 = vrot.slane %v2306, 2
  %vm2308 = vcmp.lt.s32.totalorder %v2306, %v2307
  %v2309 = vsel %vm2308, %v2306, %v2307
  %v2310 = vrot.slane %v2309, 1
  %vm2311 = vcmp.lt.s32.totalorder %v2309, %v2310
  %v2312 = vsel %vm2311, %v2309, %v2310
  %v2313 = vsel %vm1270, %v2296, 2147483647
  %v2314 = vrot.slane %v2313, 4
  %vm2315 = vcmp.lt.s32.totalorder %v2313, %v2314
  %v2316 = vsel %vm2315, %v2313, %v2314
  %v2317 = vrot.slane %v2316, 2
  %vm2318 = vcmp.lt.s32.totalorder %v2316, %v2317
  %v2319 = vsel %vm2318, %v2316, %v2317
  %v2320 = vrot.slane %v2319, 1
  %vm2321 = vcmp.lt.s32.totalorder %v2319, %v2320
  %v2322 = vsel %vm2321, %v2319, %v2320
  %v2323 = vsel %vm1270, %v2297, 2147483647
  %v2324 = vrot.slane %v2323, 4
  %vm2325 = vcmp.lt.s32.totalorder %v2323, %v2324
  %v2326 = vsel %vm2325, %v2323, %v2324
  %v2327 = vrot.slane %v2326, 2
  %vm2328 = vcmp.lt.s32.totalorder %v2326, %v2327
  %v2329 = vsel %vm2328, %v2326, %v2327
  %v2330 = vrot.slane %v2329, 1
  %vm2331 = vcmp.lt.s32.totalorder %v2329, %v2330
  %v2332 = vsel %vm2331, %v2329, %v2330
  %v2333 = vsel %vm1270, %v2298, 2147483647
  %v2334 = vrot.slane %v2333, 4
  %vm2335 = vcmp.lt.s32.totalorder %v2333, %v2334
  %v2336 = vsel %vm2335, %v2333, %v2334
  %v2337 = vrot.slane %v2336, 2
  %vm2338 = vcmp.lt.s32.totalorder %v2336, %v2337
  %v2339 = vsel %vm2338, %v2336, %v2337
  %v2340 = vrot.slane %v2339, 1
  %vm2341 = vcmp.lt.s32.totalorder %v2339, %v2340
  %v2342 = vsel %vm2341, %v2339, %v2340
  %v2343 = vsel %vm1270, %v2299, 2147483647
  %v2344 = vrot.slane %v2343, 4
  %vm2345 = vcmp.lt.s32.totalorder %v2343, %v2344
  %v2346 = vsel %vm2345, %v2343, %v2344
  %v2347 = vrot.slane %v2346, 2
  %vm2348 = vcmp.lt.s32.totalorder %v2346, %v2347
  %v2349 = vsel %vm2348, %v2346, %v2347
  %v2350 = vrot.slane %v2349, 1
  %vm2351 = vcmp.lt.s32.totalorder %v2349, %v2350
  %v2352 = vsel %vm2351, %v2349, %v2350
  %v2353 = vsel %vm1270, %v2300, 2147483647
  %v2354 = vrot.slane %v2353, 4
  %vm2355 = vcmp.lt.s32.totalorder %v2353, %v2354
  %v2356 = vsel %vm2355, %v2353, %v2354
  %v2357 = vrot.slane %v2356, 2
  %vm2358 = vcmp.lt.s32.totalorder %v2356, %v2357
  %v2359 = vsel %vm2358, %v2356, %v2357
  %v2360 = vrot.slane %v2359, 1
  %vm2361 = vcmp.lt.s32.totalorder %v2359, %v2360
  %v2362 = vsel %vm2361, %v2359, %v2360
  %v2363 = vsel %vm1270, %v2301, 2147483647
  %v2364 = vrot.slane %v2363, 4
  %vm2365 = vcmp.lt.s32.totalorder %v2363, %v2364
  %v2366 = vsel %vm2365, %v2363, %v2364
  %v2367 = vrot.slane %v2366, 2
  %vm2368 = vcmp.lt.s32.totalorder %v2366, %v2367
  %v2369 = vsel %vm2368, %v2366, %v2367
  %v2370 = vrot.slane %v2369, 1
  %vm2371 = vcmp.lt.s32.totalorder %v2369, %v2370
  %v2372 = vsel %vm2371, %v2369, %v2370
  %v2373 = vsel %vm1270, %v2302, 2147483647
  %v2374 = vrot.slane %v2373, 4
  %vm2375 = vcmp.lt.s32.totalorder %v2373, %v2374
  %v2376 = vsel %vm2375, %v2373, %v2374
  %v2377 = vrot.slane %v2376, 2
  %vm2378 = vcmp.lt.s32.totalorder %v2376, %v2377
  %v2379 = vsel %vm2378, %v2376, %v2377
  %v2380 = vrot.slane %v2379, 1
  %vm2381 = vcmp.lt.s32.totalorder %v2379, %v2380
  %v2382 = vsel %vm2381, %v2379, %v2380
  %v2384 = vrot.slane %v1183, 1
  %v2385 = vrot.slane %v1183, 2
  %v2386 = vrot.slane %v1183, 3
  %v2387 = vrot.slane %v1183, 4
  %v2388 = vrot.slane %v1183, 5
  %v2389 = vrot.slane %v1183, 6
  %v2390 = vrot.slane %v1183, 7
  %v2399 = vadd.f32 %v2237, %v1183
  %v2400 = vadd.f32 %v2244, %v2384
  %v2401 = vadd.f32 %v2251, %v2385
  %v2402 = vadd.f32 %v2258, %v2386
  %v2403 = vadd.f32 %v2265, %v2387
  %v2404 = vadd.f32 %v2272, %v2388
  %v2405 = vadd.f32 %v2279, %v2389
  %v2406 = vadd.f32 %v2286, %v2390
  %v2407 = vlaneseq
  %v2408 = vshrl.u32 %v2407, 7
  %v2409 = vsub.s32 0, %v2408
  %v2410 = vrot.slane %v2399, %v2409
  %2412 = vbcast.lane.b32.xlu0 %v2410, 256
  %v2413 = vpop.permute.xlu0 %2412
  %v2414 = vlaneseq
  %v2415 = vshrl.u32 %v2414, 7
  %v2416 = vsub.s32 0, %v2415
  %v2417 = vrot.slane %v2400, %v2416
  %2419 = vbcast.lane.b32.xlu0 %v2417, 256
  %v2420 = vpop.permute.xlu0 %2419
  %v2421 = vlaneseq
  %v2422 = vshrl.u32 %v2421, 7
  %v2423 = vsub.s32 0, %v2422
  %v2424 = vrot.slane %v2401, %v2423
  %2426 = vbcast.lane.b32.xlu0 %v2424, 256
  %v2427 = vpop.permute.xlu0 %2426
  %v2428 = vlaneseq
  %v2429 = vshrl.u32 %v2428, 7
  %v2430 = vsub.s32 0, %v2429
  %v2431 = vrot.slane %v2402, %v2430
  %2433 = vbcast.lane.b32.xlu0 %v2431, 256
  %v2434 = vpop.permute.xlu0 %2433
  %v2435 = vlaneseq
  %v2436 = vshrl.u32 %v2435, 7
  %v2437 = vsub.s32 0, %v2436
  %v2438 = vrot.slane %v2403, %v2437
  %2440 = vbcast.lane.b32.xlu0 %v2438, 256
  %v2441 = vpop.permute.xlu0 %2440
  %v2442 = vlaneseq
  %v2443 = vshrl.u32 %v2442, 7
  %v2444 = vsub.s32 0, %v2443
  %v2445 = vrot.slane %v2404, %v2444
  %2447 = vbcast.lane.b32.xlu0 %v2445, 256
  %v2448 = vpop.permute.xlu0 %2447
  %v2449 = vlaneseq
  %v2450 = vshrl.u32 %v2449, 7
  %v2451 = vsub.s32 0, %v2450
  %v2452 = vrot.slane %v2405, %v2451
  %2454 = vbcast.lane.b32.xlu0 %v2452, 256
  %v2455 = vpop.permute.xlu0 %2454
  %v2456 = vlaneseq
  %v2457 = vshrl.u32 %v2456, 7
  %v2458 = vsub.s32 0, %v2457
  %v2459 = vrot.slane %v2406, %v2458
  %2461 = vbcast.lane.b32.xlu0 %v2459, 256
  %v2462 = vpop.permute.xlu0 %2461
  %v2463 = vadd.f32 %v2413, %v1196
  %v2464 = vadd.f32 %v2420, %v1196
  %v2465 = vadd.f32 %v2427, %v1196
  %v2466 = vadd.f32 %v2434, %v1196
  %v2467 = vadd.f32 %v2441, %v1196
  %v2468 = vadd.f32 %v2448, %v1196
  %v2469 = vadd.f32 %v2455, %v1196
  %v2470 = vadd.f32 %v2462, %v1196
  %v2471 = vsel %vm1270, %v2463, -inf
  %v2472 = vrot.slane %v2471, 4
  %v2473 = vmax.f32 %v2471, %v2472
  %v2474 = vrot.slane %v2473, 2
  %v2475 = vmax.f32 %v2473, %v2474
  %v2476 = vrot.slane %v2475, 1
  %v2477 = vmax.f32 %v2475, %v2476
  %v2478 = vsel %vm1270, %v2464, -inf
  %v2479 = vrot.slane %v2478, 4
  %v2480 = vmax.f32 %v2478, %v2479
  %v2481 = vrot.slane %v2480, 2
  %v2482 = vmax.f32 %v2480, %v2481
  %v2483 = vrot.slane %v2482, 1
  %v2484 = vmax.f32 %v2482, %v2483
  %v2485 = vsel %vm1270, %v2465, -inf
  %v2486 = vrot.slane %v2485, 4
  %v2487 = vmax.f32 %v2485, %v2486
  %v2488 = vrot.slane %v2487, 2
  %v2489 = vmax.f32 %v2487, %v2488
  %v2490 = vrot.slane %v2489, 1
  %v2491 = vmax.f32 %v2489, %v2490
  %v2492 = vsel %vm1270, %v2466, -inf
  %v2493 = vrot.slane %v2492, 4
  %v2494 = vmax.f32 %v2492, %v2493
  %v2495 = vrot.slane %v2494, 2
  %v2496 = vmax.f32 %v2494, %v2495
  %v2497 = vrot.slane %v2496, 1
  %v2498 = vmax.f32 %v2496, %v2497
  %v2499 = vsel %vm1270, %v2467, -inf
  %v2500 = vrot.slane %v2499, 4
  %v2501 = vmax.f32 %v2499, %v2500
  %v2502 = vrot.slane %v2501, 2
  %v2503 = vmax.f32 %v2501, %v2502
  %v2504 = vrot.slane %v2503, 1
  %v2505 = vmax.f32 %v2503, %v2504
  %v2506 = vsel %vm1270, %v2468, -inf
  %v2507 = vrot.slane %v2506, 4
  %v2508 = vmax.f32 %v2506, %v2507
  %v2509 = vrot.slane %v2508, 2
  %v2510 = vmax.f32 %v2508, %v2509
  %v2511 = vrot.slane %v2510, 1
  %v2512 = vmax.f32 %v2510, %v2511
  %v2513 = vsel %vm1270, %v2469, -inf
  %v2514 = vrot.slane %v2513, 4
  %v2515 = vmax.f32 %v2513, %v2514
  %v2516 = vrot.slane %v2515, 2
  %v2517 = vmax.f32 %v2515, %v2516
  %v2518 = vrot.slane %v2517, 1
  %v2519 = vmax.f32 %v2517, %v2518
  %v2520 = vsel %vm1270, %v2470, -inf
  %v2521 = vrot.slane %v2520, 4
  %v2522 = vmax.f32 %v2520, %v2521
  %v2523 = vrot.slane %v2522, 2
  %v2524 = vmax.f32 %v2522, %v2523
  %v2525 = vrot.slane %v2524, 1
  %v2526 = vmax.f32 %v2524, %v2525
  %vm2527 = vcmp.eq.f32.partialorder %v2463, %v2477
  %vm2528 = vcmp.eq.f32.partialorder %v2464, %v2484
  %vm2529 = vcmp.eq.f32.partialorder %v2465, %v2491
  %vm2530 = vcmp.eq.f32.partialorder %v2466, %v2498
  %vm2531 = vcmp.eq.f32.partialorder %v2467, %v2505
  %vm2532 = vcmp.eq.f32.partialorder %v2468, %v2512
  %vm2533 = vcmp.eq.f32.partialorder %v2469, %v2519
  %vm2534 = vcmp.eq.f32.partialorder %v2470, %v2526
  %v2535 = vsel %vm2527, %v1198, 8
  %v2536 = vsel %vm2528, %v1198, 8
  %v2537 = vsel %vm2529, %v1198, 8
  %v2538 = vsel %vm2530, %v1198, 8
  %v2539 = vsel %vm2531, %v1198, 8
  %v2540 = vsel %vm2532, %v1198, 8
  %v2541 = vsel %vm2533, %v1198, 8
  %v2542 = vsel %vm2534, %v1198, 8
  %v2543 = vsel %vm1270, %v2535, 2147483647
  %v2544 = vrot.slane %v2543, 4
  %vm2545 = vcmp.lt.s32.totalorder %v2543, %v2544
  %v2546 = vsel %vm2545, %v2543, %v2544
  %v2547 = vrot.slane %v2546, 2
  %vm2548 = vcmp.lt.s32.totalorder %v2546, %v2547
  %v2549 = vsel %vm2548, %v2546, %v2547
  %v2550 = vrot.slane %v2549, 1
  %vm2551 = vcmp.lt.s32.totalorder %v2549, %v2550
  %v2552 = vsel %vm2551, %v2549, %v2550
  %v2553 = vsel %vm1270, %v2536, 2147483647
  %v2554 = vrot.slane %v2553, 4
  %vm2555 = vcmp.lt.s32.totalorder %v2553, %v2554
  %v2556 = vsel %vm2555, %v2553, %v2554
  %v2557 = vrot.slane %v2556, 2
  %vm2558 = vcmp.lt.s32.totalorder %v2556, %v2557
  %v2559 = vsel %vm2558, %v2556, %v2557
  %v2560 = vrot.slane %v2559, 1
  %vm2561 = vcmp.lt.s32.totalorder %v2559, %v2560
  %v2562 = vsel %vm2561, %v2559, %v2560
  %v2563 = vsel %vm1270, %v2537, 2147483647
  %v2564 = vrot.slane %v2563, 4
  %vm2565 = vcmp.lt.s32.totalorder %v2563, %v2564
  %v2566 = vsel %vm2565, %v2563, %v2564
  %v2567 = vrot.slane %v2566, 2
  %vm2568 = vcmp.lt.s32.totalorder %v2566, %v2567
  %v2569 = vsel %vm2568, %v2566, %v2567
  %v2570 = vrot.slane %v2569, 1
  %vm2571 = vcmp.lt.s32.totalorder %v2569, %v2570
  %v2572 = vsel %vm2571, %v2569, %v2570
  %v2573 = vsel %vm1270, %v2538, 2147483647
  %v2574 = vrot.slane %v2573, 4
  %vm2575 = vcmp.lt.s32.totalorder %v2573, %v2574
  %v2576 = vsel %vm2575, %v2573, %v2574
  %v2577 = vrot.slane %v2576, 2
  %vm2578 = vcmp.lt.s32.totalorder %v2576, %v2577
  %v2579 = vsel %vm2578, %v2576, %v2577
  %v2580 = vrot.slane %v2579, 1
  %vm2581 = vcmp.lt.s32.totalorder %v2579, %v2580
  %v2582 = vsel %vm2581, %v2579, %v2580
  %v2583 = vsel %vm1270, %v2539, 2147483647
  %v2584 = vrot.slane %v2583, 4
  %vm2585 = vcmp.lt.s32.totalorder %v2583, %v2584
  %v2586 = vsel %vm2585, %v2583, %v2584
  %v2587 = vrot.slane %v2586, 2
  %vm2588 = vcmp.lt.s32.totalorder %v2586, %v2587
  %v2589 = vsel %vm2588, %v2586, %v2587
  %v2590 = vrot.slane %v2589, 1
  %vm2591 = vcmp.lt.s32.totalorder %v2589, %v2590
  %v2592 = vsel %vm2591, %v2589, %v2590
  %v2593 = vsel %vm1270, %v2540, 2147483647
  %v2594 = vrot.slane %v2593, 4
  %vm2595 = vcmp.lt.s32.totalorder %v2593, %v2594
  %v2596 = vsel %vm2595, %v2593, %v2594
  %v2597 = vrot.slane %v2596, 2
  %vm2598 = vcmp.lt.s32.totalorder %v2596, %v2597
  %v2599 = vsel %vm2598, %v2596, %v2597
  %v2600 = vrot.slane %v2599, 1
  %vm2601 = vcmp.lt.s32.totalorder %v2599, %v2600
  %v2602 = vsel %vm2601, %v2599, %v2600
  %v2603 = vsel %vm1270, %v2541, 2147483647
  %v2604 = vrot.slane %v2603, 4
  %vm2605 = vcmp.lt.s32.totalorder %v2603, %v2604
  %v2606 = vsel %vm2605, %v2603, %v2604
  %v2607 = vrot.slane %v2606, 2
  %vm2608 = vcmp.lt.s32.totalorder %v2606, %v2607
  %v2609 = vsel %vm2608, %v2606, %v2607
  %v2610 = vrot.slane %v2609, 1
  %vm2611 = vcmp.lt.s32.totalorder %v2609, %v2610
  %v2612 = vsel %vm2611, %v2609, %v2610
  %v2613 = vsel %vm1270, %v2542, 2147483647
  %v2614 = vrot.slane %v2613, 4
  %vm2615 = vcmp.lt.s32.totalorder %v2613, %v2614
  %v2616 = vsel %vm2615, %v2613, %v2614
  %v2617 = vrot.slane %v2616, 2
  %vm2618 = vcmp.lt.s32.totalorder %v2616, %v2617
  %v2619 = vsel %vm2618, %v2616, %v2617
  %v2620 = vrot.slane %v2619, 1
  %vm2621 = vcmp.lt.s32.totalorder %v2619, %v2620
  %v2622 = vsel %vm2621, %v2619, %v2620
  %v2624 = vrot.slane %v1188, 1
  %v2625 = vrot.slane %v1188, 2
  %v2626 = vrot.slane %v1188, 3
  %v2627 = vrot.slane %v1188, 4
  %v2628 = vrot.slane %v1188, 5
  %v2629 = vrot.slane %v1188, 6
  %v2630 = vrot.slane %v1188, 7
  %v2639 = vadd.f32 %v2477, %v1188
  %v2640 = vadd.f32 %v2484, %v2624
  %v2641 = vadd.f32 %v2491, %v2625
  %v2642 = vadd.f32 %v2498, %v2626
  %v2643 = vadd.f32 %v2505, %v2627
  %v2644 = vadd.f32 %v2512, %v2628
  %v2645 = vadd.f32 %v2519, %v2629
  %v2646 = vadd.f32 %v2526, %v2630
  %v2647 = vlaneseq
  %v2648 = vshrl.u32 %v2647, 7
  %v2649 = vsub.s32 0, %v2648
  %v2650 = vrot.slane %v2639, %v2649
  %2652 = vbcast.lane.b32.xlu0 %v2650, 256
  %v2653 = vpop.permute.xlu0 %2652
  %v2654 = vlaneseq
  %v2655 = vshrl.u32 %v2654, 7
  %v2656 = vsub.s32 0, %v2655
  %v2657 = vrot.slane %v2640, %v2656
  %2659 = vbcast.lane.b32.xlu0 %v2657, 256
  %v2660 = vpop.permute.xlu0 %2659
  %v2661 = vlaneseq
  %v2662 = vshrl.u32 %v2661, 7
  %v2663 = vsub.s32 0, %v2662
  %v2664 = vrot.slane %v2641, %v2663
  %2666 = vbcast.lane.b32.xlu0 %v2664, 256
  %v2667 = vpop.permute.xlu0 %2666
  %v2668 = vlaneseq
  %v2669 = vshrl.u32 %v2668, 7
  %v2670 = vsub.s32 0, %v2669
  %v2671 = vrot.slane %v2642, %v2670
  %2673 = vbcast.lane.b32.xlu0 %v2671, 256
  %v2674 = vpop.permute.xlu0 %2673
  %v2675 = vlaneseq
  %v2676 = vshrl.u32 %v2675, 7
  %v2677 = vsub.s32 0, %v2676
  %v2678 = vrot.slane %v2643, %v2677
  %2680 = vbcast.lane.b32.xlu0 %v2678, 256
  %v2681 = vpop.permute.xlu0 %2680
  %v2682 = vlaneseq
  %v2683 = vshrl.u32 %v2682, 7
  %v2684 = vsub.s32 0, %v2683
  %v2685 = vrot.slane %v2644, %v2684
  %2687 = vbcast.lane.b32.xlu0 %v2685, 256
  %v2688 = vpop.permute.xlu0 %2687
  %v2689 = vlaneseq
  %v2690 = vshrl.u32 %v2689, 7
  %v2691 = vsub.s32 0, %v2690
  %v2692 = vrot.slane %v2645, %v2691
  %2694 = vbcast.lane.b32.xlu0 %v2692, 256
  %v2695 = vpop.permute.xlu0 %2694
  %v2696 = vlaneseq
  %v2697 = vshrl.u32 %v2696, 7
  %v2698 = vsub.s32 0, %v2697
  %v2699 = vrot.slane %v2646, %v2698
  %2701 = vbcast.lane.b32.xlu0 %v2699, 256
  %v2702 = vpop.permute.xlu0 %2701
  %v2703 = vadd.f32 %v2653, %v1196
  %v2704 = vadd.f32 %v2660, %v1196
  %v2705 = vadd.f32 %v2667, %v1196
  %v2706 = vadd.f32 %v2674, %v1196
  %v2707 = vadd.f32 %v2681, %v1196
  %v2708 = vadd.f32 %v2688, %v1196
  %v2709 = vadd.f32 %v2695, %v1196
  %v2710 = vadd.f32 %v2702, %v1196
  %v2711 = vsel %vm1270, %v2703, -inf
  %v2712 = vrot.slane %v2711, 4
  %v2713 = vmax.f32 %v2711, %v2712
  %v2714 = vrot.slane %v2713, 2
  %v2715 = vmax.f32 %v2713, %v2714
  %v2716 = vrot.slane %v2715, 1
  %v2717 = vmax.f32 %v2715, %v2716
  %v2718 = vsel %vm1270, %v2704, -inf
  %v2719 = vrot.slane %v2718, 4
  %v2720 = vmax.f32 %v2718, %v2719
  %v2721 = vrot.slane %v2720, 2
  %v2722 = vmax.f32 %v2720, %v2721
  %v2723 = vrot.slane %v2722, 1
  %v2724 = vmax.f32 %v2722, %v2723
  %v2725 = vsel %vm1270, %v2705, -inf
  %v2726 = vrot.slane %v2725, 4
  %v2727 = vmax.f32 %v2725, %v2726
  %v2728 = vrot.slane %v2727, 2
  %v2729 = vmax.f32 %v2727, %v2728
  %v2730 = vrot.slane %v2729, 1
  %v2731 = vmax.f32 %v2729, %v2730
  %v2732 = vsel %vm1270, %v2706, -inf
  %v2733 = vrot.slane %v2732, 4
  %v2734 = vmax.f32 %v2732, %v2733
  %v2735 = vrot.slane %v2734, 2
  %v2736 = vmax.f32 %v2734, %v2735
  %v2737 = vrot.slane %v2736, 1
  %v2738 = vmax.f32 %v2736, %v2737
  %v2739 = vsel %vm1270, %v2707, -inf
  %v2740 = vrot.slane %v2739, 4
  %v2741 = vmax.f32 %v2739, %v2740
  %v2742 = vrot.slane %v2741, 2
  %v2743 = vmax.f32 %v2741, %v2742
  %v2744 = vrot.slane %v2743, 1
  %v2745 = vmax.f32 %v2743, %v2744
  %v2746 = vsel %vm1270, %v2708, -inf
  %v2747 = vrot.slane %v2746, 4
  %v2748 = vmax.f32 %v2746, %v2747
  %v2749 = vrot.slane %v2748, 2
  %v2750 = vmax.f32 %v2748, %v2749
  %v2751 = vrot.slane %v2750, 1
  %v2752 = vmax.f32 %v2750, %v2751
  %v2753 = vsel %vm1270, %v2709, -inf
  %v2754 = vrot.slane %v2753, 4
  %v2755 = vmax.f32 %v2753, %v2754
  %v2756 = vrot.slane %v2755, 2
  %v2757 = vmax.f32 %v2755, %v2756
  %v2758 = vrot.slane %v2757, 1
  %v2759 = vmax.f32 %v2757, %v2758
  %v2760 = vsel %vm1270, %v2710, -inf
  %v2761 = vrot.slane %v2760, 4
  %v2762 = vmax.f32 %v2760, %v2761
  %v2763 = vrot.slane %v2762, 2
  %v2764 = vmax.f32 %v2762, %v2763
  %v2765 = vrot.slane %v2764, 1
  %v2766 = vmax.f32 %v2764, %v2765
  %vm2767 = vcmp.eq.f32.partialorder %v2703, %v2717
  %vm2768 = vcmp.eq.f32.partialorder %v2704, %v2724
  %vm2769 = vcmp.eq.f32.partialorder %v2705, %v2731
  %vm2770 = vcmp.eq.f32.partialorder %v2706, %v2738
  %vm2771 = vcmp.eq.f32.partialorder %v2707, %v2745
  %vm2772 = vcmp.eq.f32.partialorder %v2708, %v2752
  %vm2773 = vcmp.eq.f32.partialorder %v2709, %v2759
  %vm2774 = vcmp.eq.f32.partialorder %v2710, %v2766
  %v2775 = vsel %vm2767, %v1198, 8
  %v2776 = vsel %vm2768, %v1198, 8
  %v2777 = vsel %vm2769, %v1198, 8
  %v2778 = vsel %vm2770, %v1198, 8
  %v2779 = vsel %vm2771, %v1198, 8
  %v2780 = vsel %vm2772, %v1198, 8
  %v2781 = vsel %vm2773, %v1198, 8
  %v2782 = vsel %vm2774, %v1198, 8
  %v2783 = vsel %vm1270, %v2775, 2147483647
  %v2784 = vrot.slane %v2783, 4
  %vm2785 = vcmp.lt.s32.totalorder %v2783, %v2784
  %v2786 = vsel %vm2785, %v2783, %v2784
  %v2787 = vrot.slane %v2786, 2
  %vm2788 = vcmp.lt.s32.totalorder %v2786, %v2787
  %v2789 = vsel %vm2788, %v2786, %v2787
  %v2790 = vrot.slane %v2789, 1
  %vm2791 = vcmp.lt.s32.totalorder %v2789, %v2790
  %v2792 = vsel %vm2791, %v2789, %v2790
  %v2793 = vsel %vm1270, %v2776, 2147483647
  %v2794 = vrot.slane %v2793, 4
  %vm2795 = vcmp.lt.s32.totalorder %v2793, %v2794
  %v2796 = vsel %vm2795, %v2793, %v2794
  %v2797 = vrot.slane %v2796, 2
  %vm2798 = vcmp.lt.s32.totalorder %v2796, %v2797
  %v2799 = vsel %vm2798, %v2796, %v2797
  %v2800 = vrot.slane %v2799, 1
  %vm2801 = vcmp.lt.s32.totalorder %v2799, %v2800
  %v2802 = vsel %vm2801, %v2799, %v2800
  %v2803 = vsel %vm1270, %v2777, 2147483647
  %v2804 = vrot.slane %v2803, 4
  %vm2805 = vcmp.lt.s32.totalorder %v2803, %v2804
  %v2806 = vsel %vm2805, %v2803, %v2804
  %v2807 = vrot.slane %v2806, 2
  %vm2808 = vcmp.lt.s32.totalorder %v2806, %v2807
  %v2809 = vsel %vm2808, %v2806, %v2807
  %v2810 = vrot.slane %v2809, 1
  %vm2811 = vcmp.lt.s32.totalorder %v2809, %v2810
  %v2812 = vsel %vm2811, %v2809, %v2810
  %v2813 = vsel %vm1270, %v2778, 2147483647
  %v2814 = vrot.slane %v2813, 4
  %vm2815 = vcmp.lt.s32.totalorder %v2813, %v2814
  %v2816 = vsel %vm2815, %v2813, %v2814
  %v2817 = vrot.slane %v2816, 2
  %vm2818 = vcmp.lt.s32.totalorder %v2816, %v2817
  %v2819 = vsel %vm2818, %v2816, %v2817
  %v2820 = vrot.slane %v2819, 1
  %vm2821 = vcmp.lt.s32.totalorder %v2819, %v2820
  %v2822 = vsel %vm2821, %v2819, %v2820
  %v2823 = vsel %vm1270, %v2779, 2147483647
  %v2824 = vrot.slane %v2823, 4
  %vm2825 = vcmp.lt.s32.totalorder %v2823, %v2824
  %v2826 = vsel %vm2825, %v2823, %v2824
  %v2827 = vrot.slane %v2826, 2
  %vm2828 = vcmp.lt.s32.totalorder %v2826, %v2827
  %v2829 = vsel %vm2828, %v2826, %v2827
  %v2830 = vrot.slane %v2829, 1
  %vm2831 = vcmp.lt.s32.totalorder %v2829, %v2830
  %v2832 = vsel %vm2831, %v2829, %v2830
  %v2833 = vsel %vm1270, %v2780, 2147483647
  %v2834 = vrot.slane %v2833, 4
  %vm2835 = vcmp.lt.s32.totalorder %v2833, %v2834
  %v2836 = vsel %vm2835, %v2833, %v2834
  %v2837 = vrot.slane %v2836, 2
  %vm2838 = vcmp.lt.s32.totalorder %v2836, %v2837
  %v2839 = vsel %vm2838, %v2836, %v2837
  %v2840 = vrot.slane %v2839, 1
  %vm2841 = vcmp.lt.s32.totalorder %v2839, %v2840
  %v2842 = vsel %vm2841, %v2839, %v2840
  %v2843 = vsel %vm1270, %v2781, 2147483647
  %v2844 = vrot.slane %v2843, 4
  %vm2845 = vcmp.lt.s32.totalorder %v2843, %v2844
  %v2846 = vsel %vm2845, %v2843, %v2844
  %v2847 = vrot.slane %v2846, 2
  %vm2848 = vcmp.lt.s32.totalorder %v2846, %v2847
  %v2849 = vsel %vm2848, %v2846, %v2847
  %v2850 = vrot.slane %v2849, 1
  %vm2851 = vcmp.lt.s32.totalorder %v2849, %v2850
  %v2852 = vsel %vm2851, %v2849, %v2850
  %v2853 = vsel %vm1270, %v2782, 2147483647
  %v2854 = vrot.slane %v2853, 4
  %vm2855 = vcmp.lt.s32.totalorder %v2853, %v2854
  %v2856 = vsel %vm2855, %v2853, %v2854
  %v2857 = vrot.slane %v2856, 2
  %vm2858 = vcmp.lt.s32.totalorder %v2856, %v2857
  %v2859 = vsel %vm2858, %v2856, %v2857
  %v2860 = vrot.slane %v2859, 1
  %vm2861 = vcmp.lt.s32.totalorder %v2859, %v2860
  %v2862 = vsel %vm2861, %v2859, %v2860
  %v2864 = vrot.slane %v1193, 1
  %v2865 = vrot.slane %v1193, 2
  %v2866 = vrot.slane %v1193, 3
  %v2867 = vrot.slane %v1193, 4
  %v2868 = vrot.slane %v1193, 5
  %v2869 = vrot.slane %v1193, 6
  %v2870 = vrot.slane %v1193, 7
  %v2879 = vadd.f32 %v2717, %v1193
  %v2880 = vadd.f32 %v2724, %v2864
  %v2881 = vadd.f32 %v2731, %v2865
  %v2882 = vadd.f32 %v2738, %v2866
  %v2883 = vadd.f32 %v2745, %v2867
  %v2884 = vadd.f32 %v2752, %v2868
  %v2885 = vadd.f32 %v2759, %v2869
  %v2886 = vadd.f32 %v2766, %v2870
  %v2887 = vlaneseq
  %v2888 = vshrl.u32 %v2887, 7
  %v2889 = vsub.s32 0, %v2888
  %v2890 = vrot.slane %v26, %v2889
  %v2891 = vadd.f32 %v2879, %v2890
  %v2892 = vadd.f32 %v2880, %v2890
  %v2893 = vadd.f32 %v2881, %v2890
  %v2894 = vadd.f32 %v2882, %v2890
  %v2895 = vadd.f32 %v2883, %v2890
  %v2896 = vadd.f32 %v2884, %v2890
  %v2897 = vadd.f32 %v2885, %v2890
  %v2898 = vadd.f32 %v2886, %v2890
  %v2907 = vrot.slane %v2892, 7
  %vm2908 = vcmask 1041409
  %v2909 = vsel %vm2908, %v2907, %v2891
  %v2910 = vrot.slane %v2893, 6
  %vm2911 = vcmask 1042434
  %v2912 = vsel %vm2911, %v2910, %v2909
  %v2913 = vrot.slane %v2894, 5
  %vm2914 = vcmask 1043459
  %v2915 = vsel %vm2914, %v2913, %v2912
  %v2916 = vrot.slane %v2895, 4
  %vm2917 = vcmask 1044484
  %v2918 = vsel %vm2917, %v2916, %v2915
  %v2919 = vrot.slane %v2896, 3
  %vm2920 = vcmask 1045509
  %v2921 = vsel %vm2920, %v2919, %v2918
  %v2922 = vrot.slane %v2897, 2
  %vm2923 = vcmask 1046534
  %v2924 = vsel %vm2923, %v2922, %v2921
  %v2925 = vrot.slane %v2898, 1
  %vm2926 = vcmask 1047559
  %v2927 = vsel %vm2926, %v2925, %v2924
  %v2929 = vsel %vm1270, %v2927, -inf
  %2930 = vmax.xlane.f32.xlu0 %v2929
  %v2931 = vpop.xlane.xlu0 %2930
  %v2933 = vrot.slane %v2931, 1
  %v2934 = vrot.slane %v2931, 2
  %v2935 = vrot.slane %v2931, 3
  %v2936 = vrot.slane %v2931, 4
  %v2937 = vrot.slane %v2931, 5
  %v2938 = vrot.slane %v2931, 6
  %v2939 = vrot.slane %v2931, 7
  %vm2948 = vcmp.eq.f32.partialorder %v2891, %v2931
  %vm2949 = vcmp.eq.f32.partialorder %v2892, %v2933
  %vm2950 = vcmp.eq.f32.partialorder %v2893, %v2934
  %vm2951 = vcmp.eq.f32.partialorder %v2894, %v2935
  %vm2952 = vcmp.eq.f32.partialorder %v2895, %v2936
  %vm2953 = vcmp.eq.f32.partialorder %v2896, %v2937
  %vm2954 = vcmp.eq.f32.partialorder %v2897, %v2938
  %vm2955 = vcmp.eq.f32.partialorder %v2898, %v2939
  %v2956 = vsel %vm2948, %v1200, 8
  %v2957 = vsel %vm2949, %v1200, 8
  %v2958 = vsel %vm2950, %v1200, 8
  %v2959 = vsel %vm2951, %v1200, 8
  %v2960 = vsel %vm2952, %v1200, 8
  %v2961 = vsel %vm2953, %v1200, 8
  %v2962 = vsel %vm2954, %v1200, 8
  %v2963 = vsel %vm2955, %v1200, 8
  %v2964 = vrot.slane %v2957, 7
  %v2965 = vsel %vm2908, %v2964, %v2956
  %v2966 = vrot.slane %v2958, 6
  %v2967 = vsel %vm2911, %v2966, %v2965
  %v2968 = vrot.slane %v2959, 5
  %v2969 = vsel %vm2914, %v2968, %v2967
  %v2970 = vrot.slane %v2960, 4
  %v2971 = vsel %vm2917, %v2970, %v2969
  %v2972 = vrot.slane %v2961, 3
  %v2973 = vsel %vm2920, %v2972, %v2971
  %v2974 = vrot.slane %v2962, 2
  %v2975 = vsel %vm2923, %v2974, %v2973
  %v2976 = vrot.slane %v2963, 1
  %v2977 = vsel %vm2926, %v2976, %v2975
  %v2978 = vsel %vm1270, %v2977, 2147483647
  %v2979 = vand.u32 %v2978, 65535
  %v2980 = vshra.s32 %v2978, 16
  %v2981 = vcvt.s32.f32 %v2979
  %v2982 = vcvt.s32.f32 %v2980
  %2983 = vmin.xlane.f32.xlu0 %v2982
  %v2984 = vpop.xlane.xlu0 %2983
  %vm2985 = vcmp.eq.f32.partialorder %v2982, %v2984
  %v2986 = vsel %vm2985, %v2981, inf
  %2987 = vmin.xlane.f32.xlu0 %v2986
  %v2988 = vpop.xlane.xlu0 %2987
  %v2989 = vcvt.f32.s32 %v2988
  %v2990 = vcvt.f32.s32 %v2984
  %v2991 = vshll.u32 %v2990, 16
  %v2992 = vadd.s32 %v2991, %v2989
  %vm2993 = vcmp.eq.s32.totalorder %v1200, 7
  %v2994 = vsel %vm2993, %v2992, 0
  %vm2995 = vcmp.eq.s32.totalorder %v1200, %v2992
  %v2996 = vsel %vm2908, %v2802, %v2792
  %v2997 = vsel %vm2911, %v2812, %v2996
  %v2998 = vsel %vm2914, %v2822, %v2997
  %v2999 = vsel %vm2917, %v2832, %v2998
  %v3000 = vsel %vm2920, %v2842, %v2999
  %v3001 = vsel %vm2923, %v2852, %v3000
  %v3002 = vsel %vm2926, %v2862, %v3001
  %v3003 = vsel %vm2995, %v3002, 0
  %v3004 = vsel %vm1270, %v3003, 0
  %v3005 = vand.u32 %v3004, 65535
  %v3006 = vshrl.u32 %v3004, 16
  %v3007 = vcvt.s32.f32 %v3005
  %v3008 = vcvt.s32.f32 %v3006
  %3009 = vadd.xlane.f32.xlu0 %v3007
  %v3010 = vpop.xlane.xlu0 %3009
  %3011 = vadd.xlane.f32.xlu0 %v3008
  %v3012 = vpop.xlane.xlu0 %3011
  %v3013 = vcvt.f32.s32 %v3010
  %v3014 = vcvt.f32.s32 %v3012
  %v3015 = vshll.u32 %v3014, 16
  %v3016 = vadd.s32 %v3015, %v3013
  %vm3017 = vcmp.eq.s32.totalorder %v1200, 6
  %v3018 = vsel %vm3017, %v3016, %v2994
  %vm3019 = vcmp.eq.s32.totalorder %v1200, %v3016
  %v3020 = vsel %vm2908, %v2562, %v2552
  %v3021 = vsel %vm2911, %v2572, %v3020
  %v3022 = vsel %vm2914, %v2582, %v3021
  %v3023 = vsel %vm2917, %v2592, %v3022
  %v3024 = vsel %vm2920, %v2602, %v3023
  %v3025 = vsel %vm2923, %v2612, %v3024
  %v3026 = vsel %vm2926, %v2622, %v3025
  %v3027 = vsel %vm3019, %v3026, 0
  %v3028 = vsel %vm1270, %v3027, 0
  %v3029 = vand.u32 %v3028, 65535
  %v3030 = vshrl.u32 %v3028, 16
  %v3031 = vcvt.s32.f32 %v3029
  %v3032 = vcvt.s32.f32 %v3030
  %3033 = vadd.xlane.f32.xlu0 %v3031
  %v3034 = vpop.xlane.xlu0 %3033
  %3035 = vadd.xlane.f32.xlu0 %v3032
  %v3036 = vpop.xlane.xlu0 %3035
  %v3037 = vcvt.f32.s32 %v3034
  %v3038 = vcvt.f32.s32 %v3036
  %v3039 = vshll.u32 %v3038, 16
  %v3040 = vadd.s32 %v3039, %v3037
  %vm3041 = vcmp.eq.s32.totalorder %v1200, 5
  %v3042 = vsel %vm3041, %v3040, %v3018
  %vm3043 = vcmp.eq.s32.totalorder %v1200, %v3040
  %v3044 = vsel %vm2908, %v2322, %v2312
  %v3045 = vsel %vm2911, %v2332, %v3044
  %v3046 = vsel %vm2914, %v2342, %v3045
  %v3047 = vsel %vm2917, %v2352, %v3046
  %v3048 = vsel %vm2920, %v2362, %v3047
  %v3049 = vsel %vm2923, %v2372, %v3048
  %v3050 = vsel %vm2926, %v2382, %v3049
  %v3051 = vsel %vm3043, %v3050, 0
  %v3052 = vsel %vm1270, %v3051, 0
  %v3053 = vand.u32 %v3052, 65535
  %v3054 = vshrl.u32 %v3052, 16
  %v3055 = vcvt.s32.f32 %v3053
  %v3056 = vcvt.s32.f32 %v3054
  %3057 = vadd.xlane.f32.xlu0 %v3055
  %v3058 = vpop.xlane.xlu0 %3057
  %3059 = vadd.xlane.f32.xlu0 %v3056
  %v3060 = vpop.xlane.xlu0 %3059
  %v3061 = vcvt.f32.s32 %v3058
  %v3062 = vcvt.f32.s32 %v3060
  %v3063 = vshll.u32 %v3062, 16
  %v3064 = vadd.s32 %v3063, %v3061
  %vm3065 = vcmp.eq.s32.totalorder %v1200, 4
  %v3066 = vsel %vm3065, %v3064, %v3042
  %vm3067 = vcmp.eq.s32.totalorder %v1200, %v3064
  %v3068 = vsel %vm2908, %v2082, %v2072
  %v3069 = vsel %vm2911, %v2092, %v3068
  %v3070 = vsel %vm2914, %v2102, %v3069
  %v3071 = vsel %vm2917, %v2112, %v3070
  %v3072 = vsel %vm2920, %v2122, %v3071
  %v3073 = vsel %vm2923, %v2132, %v3072
  %v3074 = vsel %vm2926, %v2142, %v3073
  %v3075 = vsel %vm3067, %v3074, 0
  %v3076 = vsel %vm1270, %v3075, 0
  %v3077 = vand.u32 %v3076, 65535
  %v3078 = vshrl.u32 %v3076, 16
  %v3079 = vcvt.s32.f32 %v3077
  %v3080 = vcvt.s32.f32 %v3078
  %3081 = vadd.xlane.f32.xlu0 %v3079
  %v3082 = vpop.xlane.xlu0 %3081
  %3083 = vadd.xlane.f32.xlu0 %v3080
  %v3084 = vpop.xlane.xlu0 %3083
  %v3085 = vcvt.f32.s32 %v3082
  %v3086 = vcvt.f32.s32 %v3084
  %v3087 = vshll.u32 %v3086, 16
  %v3088 = vadd.s32 %v3087, %v3085
  %vm3089 = vcmp.eq.s32.totalorder %v1200, 3
  %v3090 = vsel %vm3089, %v3088, %v3066
  %vm3091 = vcmp.eq.s32.totalorder %v1200, %v3088
  %v3092 = vsel %vm2908, %v1842, %v1832
  %v3093 = vsel %vm2911, %v1852, %v3092
  %v3094 = vsel %vm2914, %v1862, %v3093
  %v3095 = vsel %vm2917, %v1872, %v3094
  %v3096 = vsel %vm2920, %v1882, %v3095
  %v3097 = vsel %vm2923, %v1892, %v3096
  %v3098 = vsel %vm2926, %v1902, %v3097
  %v3099 = vsel %vm3091, %v3098, 0
  %v3100 = vsel %vm1270, %v3099, 0
  %v3101 = vand.u32 %v3100, 65535
  %v3102 = vshrl.u32 %v3100, 16
  %v3103 = vcvt.s32.f32 %v3101
  %v3104 = vcvt.s32.f32 %v3102
  %3105 = vadd.xlane.f32.xlu0 %v3103
  %v3106 = vpop.xlane.xlu0 %3105
  %3107 = vadd.xlane.f32.xlu0 %v3104
  %v3108 = vpop.xlane.xlu0 %3107
  %v3109 = vcvt.f32.s32 %v3106
  %v3110 = vcvt.f32.s32 %v3108
  %v3111 = vshll.u32 %v3110, 16
  %v3112 = vadd.s32 %v3111, %v3109
  %vm3113 = vcmp.eq.s32.totalorder %v1200, 2
  %v3114 = vsel %vm3113, %v3112, %v3090
  %vm3115 = vcmp.eq.s32.totalorder %v1200, %v3112
  %v3116 = vsel %vm2908, %v1602, %v1592
  %v3117 = vsel %vm2911, %v1612, %v3116
  %v3118 = vsel %vm2914, %v1622, %v3117
  %v3119 = vsel %vm2917, %v1632, %v3118
  %v3120 = vsel %vm2920, %v1642, %v3119
  %v3121 = vsel %vm2923, %v1652, %v3120
  %v3122 = vsel %vm2926, %v1662, %v3121
  %v3123 = vsel %vm3115, %v3122, 0
  %v3124 = vsel %vm1270, %v3123, 0
  %v3125 = vand.u32 %v3124, 65535
  %v3126 = vshrl.u32 %v3124, 16
  %v3127 = vcvt.s32.f32 %v3125
  %v3128 = vcvt.s32.f32 %v3126
  %3129 = vadd.xlane.f32.xlu0 %v3127
  %v3130 = vpop.xlane.xlu0 %3129
  %3131 = vadd.xlane.f32.xlu0 %v3128
  %v3132 = vpop.xlane.xlu0 %3131
  %v3133 = vcvt.f32.s32 %v3130
  %v3134 = vcvt.f32.s32 %v3132
  %v3135 = vshll.u32 %v3134, 16
  %v3136 = vadd.s32 %v3135, %v3133
  %vm3137 = vcmp.eq.s32.totalorder %v1200, 1
  %v3138 = vsel %vm3137, %v3136, %v3114
  %vm3139 = vcmp.eq.s32.totalorder %v1200, %v3136
  %v3140 = vsel %vm2908, %v1362, %v1352
  %v3141 = vsel %vm2911, %v1372, %v3140
  %v3142 = vsel %vm2914, %v1382, %v3141
  %v3143 = vsel %vm2917, %v1392, %v3142
  %v3144 = vsel %vm2920, %v1402, %v3143
  %v3145 = vsel %vm2923, %v1412, %v3144
  %v3146 = vsel %vm2926, %v1422, %v3145
  %v3147 = vsel %vm3139, %v3146, 0
  %v3148 = vsel %vm1270, %v3147, 0
  %v3149 = vand.u32 %v3148, 65535
  %v3150 = vshrl.u32 %v3148, 16
  %v3151 = vcvt.s32.f32 %v3149
  %v3152 = vcvt.s32.f32 %v3150
  %3153 = vadd.xlane.f32.xlu0 %v3151
  %v3154 = vpop.xlane.xlu0 %3153
  %3155 = vadd.xlane.f32.xlu0 %v3152
  %v3156 = vpop.xlane.xlu0 %3155
  %v3157 = vcvt.f32.s32 %v3154
  %v3158 = vcvt.f32.s32 %v3156
  %v3159 = vshll.u32 %v3158, 16
  %v3160 = vadd.s32 %v3159, %v3157
  %vm3161 = vcmp.eq.s32.totalorder %v1200, 0
  %v3162 = vsel %vm3161, %v3160, %v3138
  %3163 = vst.msk [vmem:[%s6] sm:$0xff] %vm1270, %v3162
  // Predicated region
  $region26: #{hlstm_crf_forward.1} parent=0 // pred_check
    _
  $region27: #{hlstm_crf_forward.1} parent=0 // pred_check_branch
    %3165 = sbr.rel (0) target = $region29
  $region28: #{hlstm_crf_forward.1} parent=0 // pred_region
    _
  $region29: #{hlstm_crf_forward.1} parent=0 // pred_fallthru
    _
  // Predicated region
  $region30: #{hlstm_crf_forward.1} parent=0 // pred_check
    _
  $region31: #{hlstm_crf_forward.1} parent=0 // pred_check_branch
    %3167 = sbr.rel (0) target = $region33
  $region32: #{hlstm_crf_forward.1} parent=0 // pred_region
    _
  $region33: #{hlstm_crf_forward.1} parent=0 // pred_fallthru
    _

</llo_original>
